<compile_context>
chip_gen: v5e
topology: v5e:2x2
jax: 0.10.0
libtpu: 0.0.40
codegen_flags: <defaults>
</compile_context>

<pallas_src>
import jax
import jax.numpy as jnp
from jax.experimental import pallas as pl
from jax.experimental.pallas import tpu as pltpu

IN_FEATURES = 28 * 28        # 784 (full-dim block on the contraction axis, no pad)
HIDDEN = 512
N_OUT = 10
N_OUT_PAD = 128              # lane-dense output width
MAX_TILE_B = 1024            # large steady-state batch tile (fits VMEM easily)


def _round_up(n, m):
    return ((n + m - 1) // m) * m


def _pick_tile_b(B):
    """Adaptive batch tile: small batches get a tight (64-aligned) tile; large
    batches get big tiles, but always >= 2 grid steps so v7x's 2 TCs share work."""
    tile = max(64, min(MAX_TILE_B, _round_up(B, 64)))
    if B > 128 and _round_up(B, tile) // tile < 2:
        tile = max(64, _round_up((B + 1) // 2, 64))
    return tile


def mnist_mlp_kernel(x_ref, w1_ref, b1_ref, w2_ref, b2_ref, w3_ref, b3_ref, out_ref):
    # fc1 + relu  (bf16 MXU inputs, f32 accumulate, f32 elementwise)
    h1 = jnp.dot(x_ref[...], w1_ref[...], preferred_element_type=jnp.float32)
    h1 = jnp.maximum(h1 + b1_ref[...], 0.0).astype(jnp.bfloat16)

    # fc2 + relu
    h2 = jnp.dot(h1, w2_ref[...], preferred_element_type=jnp.float32)
    h2 = jnp.maximum(h2 + b2_ref[...], 0.0).astype(jnp.bfloat16)

    # fc3 (padded to 128 lanes) + numerically-stable softmax over the padded lanes.
    # Padding lanes have bias -1e30 (f32), so exp() there is exactly 0 and the
    # denominator equals the sum over the 10 real classes.
    logits = jnp.dot(h2, w3_ref[...], preferred_element_type=jnp.float32) + b3_ref[...]
    m = jnp.max(logits, axis=-1, keepdims=True)
    e = jnp.exp(logits - m)
    denom = jnp.sum(e, axis=-1, keepdims=True)
    out_ref[...] = (e * pl.reciprocal(denom, approx=True)).astype(out_ref.dtype)


def prepare_params(params):
    """One-time weight preprocessing (hoisted off the per-call hot path)."""
    w1, b1, w2, b2, w3, b3 = params
    w1p = jnp.asarray(w1, jnp.bfloat16)                                   # (784, 512)
    w2p = jnp.asarray(w2, jnp.bfloat16)                                   # (512, 512)
    w3p = jnp.pad(jnp.asarray(w3, jnp.float32),
                  ((0, 0), (0, N_OUT_PAD - N_OUT))).astype(jnp.bfloat16)  # (512, 128)
    b1p = jnp.asarray(b1, jnp.float32).reshape(1, HIDDEN)
    b2p = jnp.asarray(b2, jnp.float32).reshape(1, HIDDEN)
    # Keep b3 padding in f32: -1e30 must not be cast to bf16.
    b3p = jnp.pad(jnp.asarray(b3, jnp.float32).reshape(1, N_OUT),
                  ((0, 0), (0, N_OUT_PAD - N_OUT)), constant_values=-1e30)
    return (w1p, b1p, w2p, b2p, w3p, b3p)


def mnist_forward(x, prepared_params, *, tile_b=None):
    """x: (B, 1, 28, 28) / (B, 28, 28) / (B, 784) -> (B, 10) softmax probabilities."""
    w1p, b1p, w2p, b2p, w3p, b3p = prepared_params

    xb = jnp.asarray(x).reshape(-1, IN_FEATURES).astype(jnp.bfloat16)  # x.view(-1, 784)
    B = xb.shape[0]
    if tile_b is None:
        tile_b = _pick_tile_b(B)
    B_pad = _round_up(B, tile_b)
    if B_pad != B:
        xb = jnp.pad(xb, ((0, B_pad - B), (0, 0)))   # padded rows discarded below

    grid = (B_pad // tile_b,)
    resident = lambda i: (0, 0)   # same block every step -> stays VMEM-resident
    single = pl.Buffered(1)       # no point double-buffering never-changing blocks

    out = pl.pallas_call(
        mnist_mlp_kernel,
        out_shape=jax.ShapeDtypeStruct((B_pad, N_OUT_PAD), jnp.bfloat16),
        grid_spec=pltpu.PrefetchScalarGridSpec(
            num_scalar_prefetch=0,
            grid=grid,
            in_specs=[
                pl.BlockSpec((tile_b, IN_FEATURES), lambda i: (i, 0)),   # x tile
                pl.BlockSpec((IN_FEATURES, HIDDEN), resident, pipeline_mode=single),  # w1
                pl.BlockSpec((1, HIDDEN), resident, pipeline_mode=single),            # b1
                pl.BlockSpec((HIDDEN, HIDDEN), resident, pipeline_mode=single),       # w2
                pl.BlockSpec((1, HIDDEN), resident, pipeline_mode=single),            # b2
                pl.BlockSpec((HIDDEN, N_OUT_PAD), resident, pipeline_mode=single),    # w3
                pl.BlockSpec((1, N_OUT_PAD), resident, pipeline_mode=single),         # b3
            ],
            out_specs=pl.BlockSpec((tile_b, N_OUT_PAD), lambda i: (i, 0)),
        ),
        compiler_params=pltpu.CompilerParams(
            dimension_semantics=("parallel",),   # megacore-shard the batch axis
        ),
    )(xb, w1p, b1p, w2p, b2p, w3p, b3p)

    return out[:B, :N_OUT].astype(jnp.float32)


def init_params(key):
    """nn.Linear default init: U(-1/sqrt(fan_in), 1/sqrt(fan_in)) for W and b."""
    def linear(key, fan_in, fan_out):
        kw, kb = jax.random.split(key)
        bound = 1.0 / jnp.sqrt(fan_in)
        w = jax.random.uniform(kw, (fan_in, fan_out), jnp.float32, -bound, bound)
        b = jax.random.uniform(kb, (1, fan_out), jnp.float32, -bound, bound)
        return w, b

    k1, k2, k3 = jax.random.split(key, 3)
    w1, b1 = linear(k1, IN_FEATURES, HIDDEN)
    w2, b2 = linear(k2, HIDDEN, HIDDEN)
    w3, b3 = linear(k3, HIDDEN, N_OUT)
    return (w1, b1, w2, b2, w3, b3)


def reference_forward(x, params):
    """Pure-JAX f32 reference matching the PyTorch module."""
    w1, b1, w2, b2, w3, b3 = params
    xb = jnp.asarray(x, jnp.float32).reshape(-1, IN_FEATURES)
    h1 = jnp.maximum(xb @ w1 + b1, 0.0)
    h2 = jnp.maximum(h1 @ w2 + b2, 0.0)
    return jax.nn.softmax(h2 @ w3 + b3, axis=-1)


if __name__ == "__main__":
    key = jax.random.PRNGKey(0)
    kx, kp = jax.random.split(key)

    # Small MNIST-like batch: (B, C, H, W) = (8, 1, 28, 28)
    x = jax.random.normal(kx, (8, 1, 28, 28), jnp.float32)
    params = init_params(kp)
    prepared = prepare_params(params)   # one-time weight prep (off the hot path)

    out = mnist_forward(x, prepared)
    out = jax.block_until_ready(out)

    # Sanity checks: shape, non-negativity, softmax rows ~1, close to f32 reference
    # (bf16 matmuls + bf16 output + approx reciprocal -> loose tolerances).
    ref = reference_forward(x, params)
    assert out.shape == (8, 10)
    assert bool(jnp.all(out >= 0.0))
    assert jnp.allclose(jnp.sum(out, axis=-1), 1.0, atol=2e-2)
    assert jnp.allclose(out, ref, atol=2e-2)
    print("KERNEL_OK")
</pallas_src>

<mosaic_0001>
module attributes {stable_mosaic.version = 11 : i64} {
  func.func @mnist_mlp_kernel(%arg0: i32, %arg1: memref<64x784xbf16, #tpu.memory_space<vmem>>, %arg2: memref<784x512xbf16, #tpu.memory_space<vmem>>, %arg3: memref<1x512xf32, #tpu.memory_space<vmem>>, %arg4: memref<512x512xbf16, #tpu.memory_space<vmem>>, %arg5: memref<1x512xf32, #tpu.memory_space<vmem>>, %arg6: memref<512x128xbf16, #tpu.memory_space<vmem>>, %arg7: memref<1x128xf32, #tpu.memory_space<vmem>>, %arg8: memref<64x128xbf16, #tpu.memory_space<vmem>>) attributes {dimension_semantics = [#tpu.dimension_semantics<parallel>], iteration_bounds = array<i64: 1>, scalar_prefetch = 0 : i64, scratch_operands = 0 : i64, tpu.core_type = #tpu.core_type<tc>, window_params = [{transform_indices = @transform_0, window_bounds = array<i64: 64, 784>}, {pipeline_mode = #tpu.pipeline_mode<synchronous>, transform_indices = @transform_1, window_bounds = array<i64: 784, 512>}, {pipeline_mode = #tpu.pipeline_mode<synchronous>, transform_indices = @transform_2, window_bounds = array<i64: 1, 512>}, {pipeline_mode = #tpu.pipeline_mode<synchronous>, transform_indices = @transform_3, window_bounds = array<i64: 512, 512>}, {pipeline_mode = #tpu.pipeline_mode<synchronous>, transform_indices = @transform_4, window_bounds = array<i64: 1, 512>}, {pipeline_mode = #tpu.pipeline_mode<synchronous>, transform_indices = @transform_5, window_bounds = array<i64: 512, 128>}, {pipeline_mode = #tpu.pipeline_mode<synchronous>, transform_indices = @transform_6, window_bounds = array<i64: 1, 128>}, {transform_indices = @transform_7, window_bounds = array<i64: 64, 128>}]} {
    %c0 = arith.constant 0 : index
    %c0_0 = arith.constant 0 : index
    %0 = vector.load %arg1[%c0, %c0_0] : memref<64x784xbf16, #tpu.memory_space<vmem>>, vector<64x784xbf16>
    %c0_1 = arith.constant 0 : index
    %c0_2 = arith.constant 0 : index
    %1 = vector.load %arg2[%c0_1, %c0_2] : memref<784x512xbf16, #tpu.memory_space<vmem>>, vector<784x512xbf16>
    %cst = arith.constant dense<0.000000e+00> : vector<64x512xf32>
    %2 = tpu.matmul %0, %1, %cst {dimension_numbers = #tpu.dot_dimension_numbers<[1], [0], [0], [1], [0, 0, 1, 1], [], []>} : vector<64x784xbf16>, vector<784x512xbf16>, vector<64x512xf32> -> vector<64x512xf32>
    %c0_3 = arith.constant 0 : index
    %c0_4 = arith.constant 0 : index
    %3 = vector.load %arg3[%c0_3, %c0_4] : memref<1x512xf32, #tpu.memory_space<vmem>>, vector<1x512xf32>
    %4 = vector.broadcast %3 : vector<1x512xf32> to vector<64x512xf32>
    %5 = arith.addf %2, %4 : vector<64x512xf32>
    %cst_5 = arith.constant 0.000000e+00 : f32
    %6 = vector.broadcast %cst_5 : f32 to vector<64x512xf32>
    %7 = arith.maximumf %5, %6 : vector<64x512xf32>
    %8 = arith.truncf %7 : vector<64x512xf32> to vector<64x512xbf16>
    %c0_6 = arith.constant 0 : index
    %c0_7 = arith.constant 0 : index
    %9 = vector.load %arg4[%c0_6, %c0_7] : memref<512x512xbf16, #tpu.memory_space<vmem>>, vector<512x512xbf16>
    %cst_8 = arith.constant dense<0.000000e+00> : vector<64x512xf32>
    %10 = tpu.matmul %8, %9, %cst_8 {dimension_numbers = #tpu.dot_dimension_numbers<[1], [0], [0], [1], [0, 0, 1, 1], [], []>} : vector<64x512xbf16>, vector<512x512xbf16>, vector<64x512xf32> -> vector<64x512xf32>
    %c0_9 = arith.constant 0 : index
    %c0_10 = arith.constant 0 : index
    %11 = vector.load %arg5[%c0_9, %c0_10] : memref<1x512xf32, #tpu.memory_space<vmem>>, vector<1x512xf32>
    %12 = vector.broadcast %11 : vector<1x512xf32> to vector<64x512xf32>
    %13 = arith.addf %10, %12 : vector<64x512xf32>
    %cst_11 = arith.constant 0.000000e+00 : f32
    %14 = vector.broadcast %cst_11 : f32 to vector<64x512xf32>
    %15 = arith.maximumf %13, %14 : vector<64x512xf32>
    %16 = arith.truncf %15 : vector<64x512xf32> to vector<64x512xbf16>
    %c0_12 = arith.constant 0 : index
    %c0_13 = arith.constant 0 : index
    %17 = vector.load %arg6[%c0_12, %c0_13] : memref<512x128xbf16, #tpu.memory_space<vmem>>, vector<512x128xbf16>
    %cst_14 = arith.constant dense<0.000000e+00> : vector<64x128xf32>
    %18 = tpu.matmul %16, %17, %cst_14 {dimension_numbers = #tpu.dot_dimension_numbers<[1], [0], [0], [1], [0, 0, 1, 1], [], []>} : vector<64x512xbf16>, vector<512x128xbf16>, vector<64x128xf32> -> vector<64x128xf32>
    %c0_15 = arith.constant 0 : index
    %c0_16 = arith.constant 0 : index
    %19 = vector.load %arg7[%c0_15, %c0_16] : memref<1x128xf32, #tpu.memory_space<vmem>>, vector<1x128xf32>
    %20 = vector.broadcast %19 : vector<1x128xf32> to vector<64x128xf32>
    %21 = arith.addf %18, %20 : vector<64x128xf32>
    %cst_17 = arith.constant dense<0xFF800000> : vector<64xf32>
    %22 = vector.multi_reduction <maximumf>, %21, %cst_17 [1] : vector<64x128xf32> to vector<64xf32>
    %23 = vector.shape_cast %22 : vector<64xf32> to vector<64x1xf32>
    %24 = vector.broadcast %23 : vector<64x1xf32> to vector<64x128xf32>
    %25 = arith.subf %21, %24 : vector<64x128xf32>
    %26 = math.exp %25 : vector<64x128xf32>
    %cst_18 = arith.constant dense<0.000000e+00> : vector<64xf32>
    %27 = vector.multi_reduction <add>, %26, %cst_18 [1] : vector<64x128xf32> to vector<64xf32>
    %28 = vector.shape_cast %27 : vector<64xf32> to vector<64x1xf32>
    %29 = tpu.reciprocal %28 {approx = true} : vector<64x1xf32> -> vector<64x1xf32>
    %30 = vector.broadcast %29 : vector<64x1xf32> to vector<64x128xf32>
    %31 = arith.mulf %26, %30 : vector<64x128xf32>
    %32 = arith.truncf %31 : vector<64x128xf32> to vector<64x128xbf16>
    %c0_19 = arith.constant 0 : index
    %c0_20 = arith.constant 0 : index
    %33 = vector.load %arg8[%c0_19, %c0_20] : memref<64x128xbf16, #tpu.memory_space<vmem>>, vector<64x128xbf16>
    tpu.vector_store %arg8[%c0_19, %c0_20], %32 {strides = array<i32>} : memref<64x128xbf16, #tpu.memory_space<vmem>>, vector<64x128xbf16>,
    return
  }
  func.func @transform_0(%arg0: i32) -> (i32, i32) {
    %c0_i32 = arith.constant 0 : i32
    %c0_i32_0 = arith.constant 0 : i32
    return %arg0, %c0_i32 : i32, i32
  }
  func.func @transform_1(%arg0: i32) -> (i32, i32) {
    %c0_i32 = arith.constant 0 : i32
    %c0_i32_0 = arith.constant 0 : i32
    %c0_i32_1 = arith.constant 0 : i32
    return %c0_i32, %c0_i32_0 : i32, i32
  }
  func.func @transform_2(%arg0: i32) -> (i32, i32) {
    %c0_i32 = arith.constant 0 : i32
    %c0_i32_0 = arith.constant 0 : i32
    %c0_i32_1 = arith.constant 0 : i32
    return %c0_i32, %c0_i32_0 : i32, i32
  }
  func.func @transform_3(%arg0: i32) -> (i32, i32) {
    %c0_i32 = arith.constant 0 : i32
    %c0_i32_0 = arith.constant 0 : i32
    %c0_i32_1 = arith.constant 0 : i32
    return %c0_i32, %c0_i32_0 : i32, i32
  }
  func.func @transform_4(%arg0: i32) -> (i32, i32) {
    %c0_i32 = arith.constant 0 : i32
    %c0_i32_0 = arith.constant 0 : i32
    %c0_i32_1 = arith.constant 0 : i32
    return %c0_i32, %c0_i32_0 : i32, i32
  }
  func.func @transform_5(%arg0: i32) -> (i32, i32) {
    %c0_i32 = arith.constant 0 : i32
    %c0_i32_0 = arith.constant 0 : i32
    %c0_i32_1 = arith.constant 0 : i32
    return %c0_i32, %c0_i32_0 : i32, i32
  }
  func.func @transform_6(%arg0: i32) -> (i32, i32) {
    %c0_i32 = arith.constant 0 : i32
    %c0_i32_0 = arith.constant 0 : i32
    %c0_i32_1 = arith.constant 0 : i32
    return %c0_i32, %c0_i32_0 : i32, i32
  }
  func.func @transform_7(%arg0: i32) -> (i32, i32) {
    %c0_i32 = arith.constant 0 : i32
    %c0_i32_0 = arith.constant 0 : i32
    return %arg0, %c0_i32 : i32, i32
  }
}

</mosaic_0001>

<llo_original>
// kernel: tpu_custom_call.1
$region0: #{tpu_custom_call.1}
  #allocation0 [shape = 'u32[]', space=smem, size = 0x4, offset = 0x4, fixed_abs, tag = 'smem constant byte address 0x4 - core index']
  #allocation1 [shape = 'u32[72,128]{1,0:T(1,128)}', space=vmem, size = 0x9000, scoped, tag = 'internal scratch']
  %s0 = inlined_call_operand.hbm [shape: bf16[64,784], index: 0, kind: input, shape index: {}]
  %s1 = inlined_call_operand.hbm [shape: bf16[784,512], index: 1, kind: input, shape index: {}]
  %s2 = inlined_call_operand.hbm [shape: f32[1,512], index: 2, kind: input, shape index: {}]
  %s3 = inlined_call_operand.hbm [shape: bf16[512,512], index: 3, kind: input, shape index: {}]
  %s4 = inlined_call_operand.hbm [shape: f32[1,512], index: 4, kind: input, shape index: {}]
  %s5 = inlined_call_operand.hbm [shape: bf16[512,128], index: 5, kind: input, shape index: {}]
  %s6 = inlined_call_operand.vmem [shape: f32[1,128], index: 6, kind: input, shape index: {}]
  %s7 = inlined_call_operand.hbm [shape: bf16[64,128], index: 7, kind: output, shape index: {}]
  %s8 = sld [smem:[#allocation0]]
  $region62: #{tpu_custom_call.1} parent=0
    _
  %s10 = ssub.s32 1, %s8
  %s11 = scalar_select 0, %s10, %s8
  $region1: #{tpu_custom_call.1} parent=0
    #allocation2 [shape = 'u8[114688]{0}', space=vmem, size = 0x1c000, scoped, tag = 'input window, operand 0, single buffered']
    #allocation3 [shape = 's32[1]{0}', space=sflag, size = 0x4, scoped, tag = 'scoped memory for tpu_custom_call.1']
    #allocation4 [shape = 's32[1]{0}', space=sflag, size = 0x4, scoped, tag = 'scoped memory for tpu_custom_call.1']
    #allocation5 [shape = 'u8[802816]{0}', space=vmem, size = 0xc4000, scoped, tag = 'input window, operand 1, single buffered']
    #allocation6 [shape = 's32[1]{0}', space=sflag, size = 0x4, scoped, tag = 'scoped memory for tpu_custom_call.1']
    #allocation7 [shape = 'u8[2048]{0}', space=vmem, size = 0x800, scoped, tag = 'input window, operand 2, single buffered']
    #allocation8 [shape = 'u8[524288]{0}', space=vmem, size = 0x80000, scoped, tag = 'input window, operand 3, single buffered']
    #allocation9 [shape = 's32[1]{0}', space=sflag, size = 0x4, scoped, tag = 'scoped memory for tpu_custom_call.1']
    #allocation10 [shape = 'u8[2048]{0}', space=vmem, size = 0x800, scoped, tag = 'input window, operand 4, single buffered']
    #allocation11 [shape = 'u8[131072]{0}', space=vmem, size = 0x20000, scoped, tag = 'input window, operand 5, single buffered']
    #allocation12 [shape = 's32[1]{0}', space=sflag, size = 0x4, scoped, tag = 'scoped memory for tpu_custom_call.1']
    #allocation13 [shape = 'u8[16384]{0}', space=vmem, size = 0x4000, scoped, tag = 'output window, operand 0, single buffered']
    %12 = vsyncpa [#allocation3], 0
    %13 = vsyncpa [#allocation6], 0
    %14 = vsyncpa [#allocation9], 0
    %15 = vsyncpa [#allocation12], 0
    %16 = vsyncpa [#allocation4], 0
    // Predicated region
    $region2: #{tpu_custom_call.1} parent=1 // pred_check
      _
    $region3: #{tpu_custom_call.1} parent=1 // pred_check_branch
      %18 = sbr.rel (0) target = $region5
    $region4: #{tpu_custom_call.1} parent=1 // pred_region
      %20 = vsyncadd [#allocation3], 0
      %s21 = sshll.u32 %s0, 4
      %s22 = int_to_ptr.hbm [resolvable:$true] %s21
      %s23 = sshll.u32 [#allocation2], 4
      %s24 = int_to_ptr.vmem [resolvable:$true] %s23
      %29 = dma.hbm_to_vmem [thread:$0]  %s22, 3584, %s24, [#allocation3], 448, 448, 28
    $region5: #{tpu_custom_call.1} parent=1 // pred_fallthru
      _
    // Predicated region
    $region6: #{tpu_custom_call.1} parent=1 // pred_check
      _
    $region7: #{tpu_custom_call.1} parent=1 // pred_check_branch
      %31 = sbr.rel (0) target = $region9
    $region8: #{tpu_custom_call.1} parent=1 // pred_region
      %33 = vsyncadd [#allocation6], 0
      %s34 = sshll.u32 %s1, 4
      %s35 = int_to_ptr.hbm [resolvable:$true] %s34
      %s36 = sshll.u32 [#allocation5], 4
      %s37 = int_to_ptr.vmem [resolvable:$true] %s36
      %42 = dma.hbm_to_vmem [thread:$0]  %s35, 25088, %s37, [#allocation6], 256, 256, 16
    $region9: #{tpu_custom_call.1} parent=1 // pred_fallthru
      _
    // Predicated region
    $region10: #{tpu_custom_call.1} parent=1 // pred_check
      _
    $region11: #{tpu_custom_call.1} parent=1 // pred_check_branch
      %44 = sbr.rel (0) target = $region13
    $region12: #{tpu_custom_call.1} parent=1 // pred_region
      %46 = vsyncadd [#allocation6], 0
      %s48 = sshll.u32 %s2, 4
      %s49 = int_to_ptr.hbm [resolvable:$true] %s48
      %s50 = sshll.u32 [#allocation7], 4
      %s51 = int_to_ptr.vmem [resolvable:$true] %s50
      %53 = dma.hbm_to_vmem [thread:$0]  %s49, 64, %s51, [#allocation6]
    $region13: #{tpu_custom_call.1} parent=1 // pred_fallthru
      _
    // Predicated region
    $region14: #{tpu_custom_call.1} parent=1 // pred_check
      _
    $region15: #{tpu_custom_call.1} parent=1 // pred_check_branch
      %55 = sbr.rel (0) target = $region17
    $region16: #{tpu_custom_call.1} parent=1 // pred_region
      %57 = vsyncadd [#allocation9], 0
      %s58 = sshll.u32 %s3, 4
      %s59 = int_to_ptr.hbm [resolvable:$true] %s58
      %s60 = sshll.u32 [#allocation8], 4
      %s61 = int_to_ptr.vmem [resolvable:$true] %s60
      %66 = dma.hbm_to_vmem [thread:$0]  %s59, 16384, %s61, [#allocation9], 256, 256, 16
    $region17: #{tpu_custom_call.1} parent=1 // pred_fallthru
      _
    // Predicated region
    $region18: #{tpu_custom_call.1} parent=1 // pred_check
      _
    $region19: #{tpu_custom_call.1} parent=1 // pred_check_branch
      %68 = sbr.rel (0) target = $region21
    $region20: #{tpu_custom_call.1} parent=1 // pred_region
      %70 = vsyncadd [#allocation9], 0
      %s72 = sshll.u32 %s4, 4
      %s73 = int_to_ptr.hbm [resolvable:$true] %s72
      %s74 = sshll.u32 [#allocation10], 4
      %s75 = int_to_ptr.vmem [resolvable:$true] %s74
      %77 = dma.hbm_to_vmem [thread:$0]  %s73, 64, %s75, [#allocation9]
    $region21: #{tpu_custom_call.1} parent=1 // pred_fallthru
      _
    // Predicated region
    $region22: #{tpu_custom_call.1} parent=1 // pred_check
      _
    $region23: #{tpu_custom_call.1} parent=1 // pred_check_branch
      %79 = sbr.rel (0) target = $region25
    $region24: #{tpu_custom_call.1} parent=1 // pred_region
      %81 = vsyncadd [#allocation12], 0
      %s82 = sshll.u32 %s5, 4
      %s83 = int_to_ptr.hbm [resolvable:$true] %s82
      %s84 = sshll.u32 [#allocation11], 4
      %s85 = int_to_ptr.vmem [resolvable:$true] %s84
      %90 = dma.hbm_to_vmem [thread:$0]  %s83, 4096, %s85, [#allocation12], 64, 64, 4
    $region25: #{tpu_custom_call.1} parent=1 // pred_fallthru
      _
    // Predicated region
    $region26: #{tpu_custom_call.1} parent=1 // pred_check
      _
    $region27: #{tpu_custom_call.1} parent=1 // pred_check_branch
      %92 = sbr.rel (0) target = $region29
    $region28: #{tpu_custom_call.1} parent=1 // pred_region
      _
    $region29: #{tpu_custom_call.1} parent=1 // pred_fallthru
      _
    // Predicated region
    $region30: #{tpu_custom_call.1} parent=1 // pred_check
      _
    $region31: #{tpu_custom_call.1} parent=1 // pred_check_branch
      %94 = sbr.rel (0) target = $region33
    $region32: #{tpu_custom_call.1} parent=1 // pred_region
      %96 = dma.done [#allocation3], 3584
    $region33: #{tpu_custom_call.1} parent=1 // pred_fallthru
      _
    // Predicated region
    $region34: #{tpu_custom_call.1} parent=1 // pred_check
      _
    $region35: #{tpu_custom_call.1} parent=1 // pred_check_branch
      %98 = sbr.rel (0) target = $region37
    $region36: #{tpu_custom_call.1} parent=1 // pred_region
      %100 = dma.done [#allocation6], 25088
    $region37: #{tpu_custom_call.1} parent=1 // pred_fallthru
      _
    // Predicated region
    $region38: #{tpu_custom_call.1} parent=1 // pred_check
      _
    $region39: #{tpu_custom_call.1} parent=1 // pred_check_branch
      %102 = sbr.rel (0) target = $region41
    $region40: #{tpu_custom_call.1} parent=1 // pred_region
      %104 = dma.done [#allocation6], 64
    $region41: #{tpu_custom_call.1} parent=1 // pred_fallthru
      _
    // Predicated region
    $region42: #{tpu_custom_call.1} parent=1 // pred_check
      _
    $region43: #{tpu_custom_call.1} parent=1 // pred_check_branch
      %106 = sbr.rel (0) target = $region45
    $region44: #{tpu_custom_call.1} parent=1 // pred_region
      %108 = dma.done [#allocation9], 16384
    $region45: #{tpu_custom_call.1} parent=1 // pred_fallthru
      _
    // Predicated region
    $region46: #{tpu_custom_call.1} parent=1 // pred_check
      _
    $region47: #{tpu_custom_call.1} parent=1 // pred_check_branch
      %110 = sbr.rel (0) target = $region49
    $region48: #{tpu_custom_call.1} parent=1 // pred_region
      %112 = dma.done [#allocation9], 64
    $region49: #{tpu_custom_call.1} parent=1 // pred_fallthru
      _
    // Predicated region
    $region50: #{tpu_custom_call.1} parent=1 // pred_check
      _
    $region51: #{tpu_custom_call.1} parent=1 // pred_check_branch
      %114 = sbr.rel (0) target = $region53
    $region52: #{tpu_custom_call.1} parent=1 // pred_region
      %116 = dma.done [#allocation12], 4096
    $region53: #{tpu_custom_call.1} parent=1 // pred_fallthru
      _
    %v118 = vld [vmem:[#allocation2] sm:$0xff]
    %v119 = vld [vmem:[#allocation2 + $0x8] sm:$0xff]
    %v120 = vld [vmem:[#allocation2 + $0x10] sm:$0xff]
    %v121 = vld [vmem:[#allocation2 + $0x18] sm:$0xf]
    %v122 = vld [vmem:[#allocation2 + $0x1c] sm:$0xff]
    %v123 = vld [vmem:[#allocation2 + $0x24] sm:$0xff]
    %v124 = vld [vmem:[#allocation2 + $0x2c] sm:$0xff]
    %v125 = vld [vmem:[#allocation2 + $0x34] sm:$0xf]
    %v126 = vld [vmem:[#allocation2 + $0x38] sm:$0xff]
    %v127 = vld [vmem:[#allocation2 + $0x40] sm:$0xff]
    %v128 = vld [vmem:[#allocation2 + $0x48] sm:$0xff]
    %v129 = vld [vmem:[#allocation2 + $0x50] sm:$0xf]
    %v130 = vld [vmem:[#allocation2 + $0x54] sm:$0xff]
    %v131 = vld [vmem:[#allocation2 + $0x5c] sm:$0xff]
    %v132 = vld [vmem:[#allocation2 + $0x64] sm:$0xff]
    %v133 = vld [vmem:[#allocation2 + $0x6c] sm:$0xf]
    %v134 = vld [vmem:[#allocation2 + $0x70] sm:$0xff]
    %v135 = vld [vmem:[#allocation2 + $0x78] sm:$0xff]
    %v136 = vld [vmem:[#allocation2 + $0x80] sm:$0xff]
    %v137 = vld [vmem:[#allocation2 + $0x88] sm:$0xf]
    %v138 = vld [vmem:[#allocation2 + $0x8c] sm:$0xff]
    %v139 = vld [vmem:[#allocation2 + $0x94] sm:$0xff]
    %v140 = vld [vmem:[#allocation2 + $0x9c] sm:$0xff]
    %v141 = vld [vmem:[#allocation2 + $0xa4] sm:$0xf]
    %v142 = vld [vmem:[#allocation2 + $0xa8] sm:$0xff]
    %v143 = vld [vmem:[#allocation2 + $0xb0] sm:$0xff]
    %v144 = vld [vmem:[#allocation2 + $0xb8] sm:$0xff]
    %v145 = vld [vmem:[#allocation2 + $0xc0] sm:$0xf]
    %v146 = vld [vmem:[#allocation2 + $0xc4] sm:$0xff]
    %v147 = vld [vmem:[#allocation2 + $0xcc] sm:$0xff]
    %v148 = vld [vmem:[#allocation2 + $0xd4] sm:$0xff]
    %v149 = vld [vmem:[#allocation2 + $0xdc] sm:$0xf]
    %v150 = vld [vmem:[#allocation5] sm:$0xff]
    %v151 = vld [vmem:[#allocation5 + $0x8] sm:$0xff]
    %v152 = vld [vmem:[#allocation5 + $0x10] sm:$0xff]
    %v153 = vld [vmem:[#allocation5 + $0x18] sm:$0xff]
    %v154 = vld [vmem:[#allocation5 + $0x20] sm:$0xff]
    %v155 = vld [vmem:[#allocation5 + $0x28] sm:$0xff]
    %v156 = vld [vmem:[#allocation5 + $0x30] sm:$0xff]
    %v157 = vld [vmem:[#allocation5 + $0x38] sm:$0xff]
    %v158 = vld [vmem:[#allocation5 + $0x40] sm:$0xff]
    %v159 = vld [vmem:[#allocation5 + $0x48] sm:$0xff]
    %v160 = vld [vmem:[#allocation5 + $0x50] sm:$0xff]
    %v161 = vld [vmem:[#allocation5 + $0x58] sm:$0xff]
    %v162 = vld [vmem:[#allocation5 + $0x60] sm:$0xff]
    %v163 = vld [vmem:[#allocation5 + $0x68] sm:$0xff]
    %v164 = vld [vmem:[#allocation5 + $0x70] sm:$0xff]
    %v165 = vld [vmem:[#allocation5 + $0x78] sm:$0xff]
    %v166 = vld [vmem:[#allocation5 + $0x80] sm:$0xff]
    %v167 = vld [vmem:[#allocation5 + $0x88] sm:$0xff]
    %v168 = vld [vmem:[#allocation5 + $0x90] sm:$0xff]
    %v169 = vld [vmem:[#allocation5 + $0x98] sm:$0xff]
    %v170 = vld [vmem:[#allocation5 + $0xa0] sm:$0xff]
    %v171 = vld [vmem:[#allocation5 + $0xa8] sm:$0xff]
    %v172 = vld [vmem:[#allocation5 + $0xb0] sm:$0xff]
    %v173 = vld [vmem:[#allocation5 + $0xb8] sm:$0xff]
    %v174 = vld [vmem:[#allocation5 + $0xc0] sm:$0xff]
    %v175 = vld [vmem:[#allocation5 + $0xc8] sm:$0xff]
    %v176 = vld [vmem:[#allocation5 + $0xd0] sm:$0xff]
    %v177 = vld [vmem:[#allocation5 + $0xd8] sm:$0xff]
    %v178 = vld [vmem:[#allocation5 + $0xe0] sm:$0xff]
    %v179 = vld [vmem:[#allocation5 + $0xe8] sm:$0xff]
    %v180 = vld [vmem:[#allocation5 + $0xf0] sm:$0xff]
    %v181 = vld [vmem:[#allocation5 + $0xf8] sm:$0xff]
    %v182 = vld [vmem:[#allocation5 + $0x100] sm:$0xff]
    %v183 = vld [vmem:[#allocation5 + $0x108] sm:$0xff]
    %v184 = vld [vmem:[#allocation5 + $0x110] sm:$0xff]
    %v185 = vld [vmem:[#allocation5 + $0x118] sm:$0xff]
    %v186 = vld [vmem:[#allocation5 + $0x120] sm:$0xff]
    %v187 = vld [vmem:[#allocation5 + $0x128] sm:$0xff]
    %v188 = vld [vmem:[#allocation5 + $0x130] sm:$0xff]
    %v189 = vld [vmem:[#allocation5 + $0x138] sm:$0xff]
    %v190 = vld [vmem:[#allocation5 + $0x140] sm:$0xff]
    %v191 = vld [vmem:[#allocation5 + $0x148] sm:$0xff]
    %v192 = vld [vmem:[#allocation5 + $0x150] sm:$0xff]
    %v193 = vld [vmem:[#allocation5 + $0x158] sm:$0xff]
    %v194 = vld [vmem:[#allocation5 + $0x160] sm:$0xff]
    %v195 = vld [vmem:[#allocation5 + $0x168] sm:$0xff]
    %v196 = vld [vmem:[#allocation5 + $0x170] sm:$0xff]
    %v197 = vld [vmem:[#allocation5 + $0x178] sm:$0xff]
    %v198 = vld [vmem:[#allocation5 + $0x180] sm:$0xff]
    %v199 = vld [vmem:[#allocation5 + $0x188] sm:$0xff]
    %v200 = vld [vmem:[#allocation5 + $0x190] sm:$0xff]
    %v201 = vld [vmem:[#allocation5 + $0x198] sm:$0xff]
    %v202 = vld [vmem:[#allocation5 + $0x1a0] sm:$0xff]
    %v203 = vld [vmem:[#allocation5 + $0x1a8] sm:$0xff]
    %v204 = vld [vmem:[#allocation5 + $0x1b0] sm:$0xff]
    %v205 = vld [vmem:[#allocation5 + $0x1b8] sm:$0xff]
    %v206 = vld [vmem:[#allocation5 + $0x1c0] sm:$0xff]
    %v207 = vld [vmem:[#allocation5 + $0x1c8] sm:$0xff]
    %v208 = vld [vmem:[#allocation5 + $0x1d0] sm:$0xff]
    %v209 = vld [vmem:[#allocation5 + $0x1d8] sm:$0xff]
    %v210 = vld [vmem:[#allocation5 + $0x1e0] sm:$0xff]
    %v211 = vld [vmem:[#allocation5 + $0x1e8] sm:$0xff]
    %v212 = vld [vmem:[#allocation5 + $0x1f0] sm:$0xff]
    %v213 = vld [vmem:[#allocation5 + $0x1f8] sm:$0xff]
    %v214 = vld [vmem:[#allocation5 + $0x200] sm:$0xff]
    %v215 = vld [vmem:[#allocation5 + $0x208] sm:$0xff]
    %v216 = vld [vmem:[#allocation5 + $0x210] sm:$0xff]
    %v217 = vld [vmem:[#allocation5 + $0x218] sm:$0xff]
    %v218 = vld [vmem:[#allocation5 + $0x220] sm:$0xff]
    %v219 = vld [vmem:[#allocation5 + $0x228] sm:$0xff]
    %v220 = vld [vmem:[#allocation5 + $0x230] sm:$0xff]
    %v221 = vld [vmem:[#allocation5 + $0x238] sm:$0xff]
    %v222 = vld [vmem:[#allocation5 + $0x240] sm:$0xff]
    %v223 = vld [vmem:[#allocation5 + $0x248] sm:$0xff]
    %v224 = vld [vmem:[#allocation5 + $0x250] sm:$0xff]
    %v225 = vld [vmem:[#allocation5 + $0x258] sm:$0xff]
    %v226 = vld [vmem:[#allocation5 + $0x260] sm:$0xff]
    %v227 = vld [vmem:[#allocation5 + $0x268] sm:$0xff]
    %v228 = vld [vmem:[#allocation5 + $0x270] sm:$0xff]
    %v229 = vld [vmem:[#allocation5 + $0x278] sm:$0xff]
    %v230 = vld [vmem:[#allocation5 + $0x280] sm:$0xff]
    %v231 = vld [vmem:[#allocation5 + $0x288] sm:$0xff]
    %v232 = vld [vmem:[#allocation5 + $0x290] sm:$0xff]
    %v233 = vld [vmem:[#allocation5 + $0x298] sm:$0xff]
    %v234 = vld [vmem:[#allocation5 + $0x2a0] sm:$0xff]
    %v235 = vld [vmem:[#allocation5 + $0x2a8] sm:$0xff]
    %v236 = vld [vmem:[#allocation5 + $0x2b0] sm:$0xff]
    %v237 = vld [vmem:[#allocation5 + $0x2b8] sm:$0xff]
    %v238 = vld [vmem:[#allocation5 + $0x2c0] sm:$0xff]
    %v239 = vld [vmem:[#allocation5 + $0x2c8] sm:$0xff]
    %v240 = vld [vmem:[#allocation5 + $0x2d0] sm:$0xff]
    %v241 = vld [vmem:[#allocation5 + $0x2d8] sm:$0xff]
    %v242 = vld [vmem:[#allocation5 + $0x2e0] sm:$0xff]
    %v243 = vld [vmem:[#allocation5 + $0x2e8] sm:$0xff]
    %v244 = vld [vmem:[#allocation5 + $0x2f0] sm:$0xff]
    %v245 = vld [vmem:[#allocation5 + $0x2f8] sm:$0xff]
    %v246 = vld [vmem:[#allocation5 + $0x300] sm:$0xff]
    %v247 = vld [vmem:[#allocation5 + $0x308] sm:$0xff]
    %v248 = vld [vmem:[#allocation5 + $0x310] sm:$0xff]
    %v249 = vld [vmem:[#allocation5 + $0x318] sm:$0xff]
    %v250 = vld [vmem:[#allocation5 + $0x320] sm:$0xff]
    %v251 = vld [vmem:[#allocation5 + $0x328] sm:$0xff]
    %v252 = vld [vmem:[#allocation5 + $0x330] sm:$0xff]
    %v253 = vld [vmem:[#allocation5 + $0x338] sm:$0xff]
    %v254 = vld [vmem:[#allocation5 + $0x340] sm:$0xff]
    %v255 = vld [vmem:[#allocation5 + $0x348] sm:$0xff]
    %v256 = vld [vmem:[#allocation5 + $0x350] sm:$0xff]
    %v257 = vld [vmem:[#allocation5 + $0x358] sm:$0xff]
    %v258 = vld [vmem:[#allocation5 + $0x360] sm:$0xff]
    %v259 = vld [vmem:[#allocation5 + $0x368] sm:$0xff]
    %v260 = vld [vmem:[#allocation5 + $0x370] sm:$0xff]
    %v261 = vld [vmem:[#allocation5 + $0x378] sm:$0xff]
    %v262 = vld [vmem:[#allocation5 + $0x380] sm:$0xff]
    %v263 = vld [vmem:[#allocation5 + $0x388] sm:$0xff]
    %v264 = vld [vmem:[#allocation5 + $0x390] sm:$0xff]
    %v265 = vld [vmem:[#allocation5 + $0x398] sm:$0xff]
    %v266 = vld [vmem:[#allocation5 + $0x3a0] sm:$0xff]
    %v267 = vld [vmem:[#allocation5 + $0x3a8] sm:$0xff]
    %v268 = vld [vmem:[#allocation5 + $0x3b0] sm:$0xff]
    %v269 = vld [vmem:[#allocation5 + $0x3b8] sm:$0xff]
    %v270 = vld [vmem:[#allocation5 + $0x3c0] sm:$0xff]
    %v271 = vld [vmem:[#allocation5 + $0x3c8] sm:$0xff]
    %v272 = vld [vmem:[#allocation5 + $0x3d0] sm:$0xff]
    %v273 = vld [vmem:[#allocation5 + $0x3d8] sm:$0xff]
    %v274 = vld [vmem:[#allocation5 + $0x3e0] sm:$0xff]
    %v275 = vld [vmem:[#allocation5 + $0x3e8] sm:$0xff]
    %v276 = vld [vmem:[#allocation5 + $0x3f0] sm:$0xff]
    %v277 = vld [vmem:[#allocation5 + $0x3f8] sm:$0xff]
    %v278 = vld [vmem:[#allocation5 + $0x400] sm:$0xff]
    %v279 = vld [vmem:[#allocation5 + $0x408] sm:$0xff]
    %v280 = vld [vmem:[#allocation5 + $0x410] sm:$0xff]
    %v281 = vld [vmem:[#allocation5 + $0x418] sm:$0xff]
    %v282 = vld [vmem:[#allocation5 + $0x420] sm:$0xff]
    %v283 = vld [vmem:[#allocation5 + $0x428] sm:$0xff]
    %v284 = vld [vmem:[#allocation5 + $0x430] sm:$0xff]
    %v285 = vld [vmem:[#allocation5 + $0x438] sm:$0xff]
    %v286 = vld [vmem:[#allocation5 + $0x440] sm:$0xff]
    %v287 = vld [vmem:[#allocation5 + $0x448] sm:$0xff]
    %v288 = vld [vmem:[#allocation5 + $0x450] sm:$0xff]
    %v289 = vld [vmem:[#allocation5 + $0x458] sm:$0xff]
    %v290 = vld [vmem:[#allocation5 + $0x460] sm:$0xff]
    %v291 = vld [vmem:[#allocation5 + $0x468] sm:$0xff]
    %v292 = vld [vmem:[#allocation5 + $0x470] sm:$0xff]
    %v293 = vld [vmem:[#allocation5 + $0x478] sm:$0xff]
    %v294 = vld [vmem:[#allocation5 + $0x480] sm:$0xff]
    %v295 = vld [vmem:[#allocation5 + $0x488] sm:$0xff]
    %v296 = vld [vmem:[#allocation5 + $0x490] sm:$0xff]
    %v297 = vld [vmem:[#allocation5 + $0x498] sm:$0xff]
    %v298 = vld [vmem:[#allocation5 + $0x4a0] sm:$0xff]
    %v299 = vld [vmem:[#allocation5 + $0x4a8] sm:$0xff]
    %v300 = vld [vmem:[#allocation5 + $0x4b0] sm:$0xff]
    %v301 = vld [vmem:[#allocation5 + $0x4b8] sm:$0xff]
    %v302 = vld [vmem:[#allocation5 + $0x4c0] sm:$0xff]
    %v303 = vld [vmem:[#allocation5 + $0x4c8] sm:$0xff]
    %v304 = vld [vmem:[#allocation5 + $0x4d0] sm:$0xff]
    %v305 = vld [vmem:[#allocation5 + $0x4d8] sm:$0xff]
    %v306 = vld [vmem:[#allocation5 + $0x4e0] sm:$0xff]
    %v307 = vld [vmem:[#allocation5 + $0x4e8] sm:$0xff]
    %v308 = vld [vmem:[#allocation5 + $0x4f0] sm:$0xff]
    %v309 = vld [vmem:[#allocation5 + $0x4f8] sm:$0xff]
    %v310 = vld [vmem:[#allocation5 + $0x500] sm:$0xff]
    %v311 = vld [vmem:[#allocation5 + $0x508] sm:$0xff]
    %v312 = vld [vmem:[#allocation5 + $0x510] sm:$0xff]
    %v313 = vld [vmem:[#allocation5 + $0x518] sm:$0xff]
    %v314 = vld [vmem:[#allocation5 + $0x520] sm:$0xff]
    %v315 = vld [vmem:[#allocation5 + $0x528] sm:$0xff]
    %v316 = vld [vmem:[#allocation5 + $0x530] sm:$0xff]
    %v317 = vld [vmem:[#allocation5 + $0x538] sm:$0xff]
    %v318 = vld [vmem:[#allocation5 + $0x540] sm:$0xff]
    %v319 = vld [vmem:[#allocation5 + $0x548] sm:$0xff]
    %v320 = vld [vmem:[#allocation5 + $0x550] sm:$0xff]
    %v321 = vld [vmem:[#allocation5 + $0x558] sm:$0xff]
    %v322 = vld [vmem:[#allocation5 + $0x560] sm:$0xff]
    %v323 = vld [vmem:[#allocation5 + $0x568] sm:$0xff]
    %v324 = vld [vmem:[#allocation5 + $0x570] sm:$0xff]
    %v325 = vld [vmem:[#allocation5 + $0x578] sm:$0xff]
    %v326 = vld [vmem:[#allocation5 + $0x580] sm:$0xff]
    %v327 = vld [vmem:[#allocation5 + $0x588] sm:$0xff]
    %v328 = vld [vmem:[#allocation5 + $0x590] sm:$0xff]
    %v329 = vld [vmem:[#allocation5 + $0x598] sm:$0xff]
    %v330 = vld [vmem:[#allocation5 + $0x5a0] sm:$0xff]
    %v331 = vld [vmem:[#allocation5 + $0x5a8] sm:$0xff]
    %v332 = vld [vmem:[#allocation5 + $0x5b0] sm:$0xff]
    %v333 = vld [vmem:[#allocation5 + $0x5b8] sm:$0xff]
    %v334 = vld [vmem:[#allocation5 + $0x5c0] sm:$0xff]
    %v335 = vld [vmem:[#allocation5 + $0x5c8] sm:$0xff]
    %v336 = vld [vmem:[#allocation5 + $0x5d0] sm:$0xff]
    %v337 = vld [vmem:[#allocation5 + $0x5d8] sm:$0xff]
    %v338 = vld [vmem:[#allocation5 + $0x5e0] sm:$0xff]
    %v339 = vld [vmem:[#allocation5 + $0x5e8] sm:$0xff]
    %v340 = vld [vmem:[#allocation5 + $0x5f0] sm:$0xff]
    %v341 = vld [vmem:[#allocation5 + $0x5f8] sm:$0xff]
    %v342 = vld [vmem:[#allocation5 + $0x600] sm:$0xff]
    %v343 = vld [vmem:[#allocation5 + $0x608] sm:$0xff]
    %v344 = vld [vmem:[#allocation5 + $0x610] sm:$0xff]
    %v345 = vld [vmem:[#allocation5 + $0x618] sm:$0xff]
    %v346 = vld [vmem:[#allocation7] sm:$0xf]
    %v348 = vperm.slane %v346, 0
    %v349 = vperm.slane %v346, 1
    %v350 = vperm.slane %v346, 2
    %v351 = vperm.slane %v346, 3
    %v388 = vunpack.c.l.b16 %v118
    %v389 = vunpack.c.h.b16 %v118
    %v390 = vunpack.c.l.b16 %v119
    %v391 = vunpack.c.h.b16 %v119
    %v392 = vunpack.c.l.b16 %v120
    %v393 = vunpack.c.h.b16 %v120
    %v394 = vunpack.c.l.b16 %v121
    %v395 = vunpack.c.l.b16 %v122
    %v396 = vunpack.c.h.b16 %v122
    %v397 = vunpack.c.l.b16 %v123
    %v398 = vunpack.c.h.b16 %v123
    %v399 = vunpack.c.l.b16 %v124
    %v400 = vunpack.c.h.b16 %v124
    %v401 = vunpack.c.l.b16 %v125
    %v402 = vunpack.c.l.b16 %v126
    %v403 = vunpack.c.h.b16 %v126
    %v404 = vunpack.c.l.b16 %v127
    %v405 = vunpack.c.h.b16 %v127
    %v406 = vunpack.c.l.b16 %v128
    %v407 = vunpack.c.h.b16 %v128
    %v408 = vunpack.c.l.b16 %v129
    %v409 = vunpack.c.l.b16 %v130
    %v410 = vunpack.c.h.b16 %v130
    %v411 = vunpack.c.l.b16 %v131
    %v412 = vunpack.c.h.b16 %v131
    %v413 = vunpack.c.l.b16 %v132
    %v414 = vunpack.c.h.b16 %v132
    %v415 = vunpack.c.l.b16 %v133
    %v416 = vunpack.c.l.b16 %v134
    %v417 = vunpack.c.h.b16 %v134
    %v418 = vunpack.c.l.b16 %v135
    %v419 = vunpack.c.h.b16 %v135
    %v420 = vunpack.c.l.b16 %v136
    %v421 = vunpack.c.h.b16 %v136
    %v422 = vunpack.c.l.b16 %v137
    %v423 = vunpack.c.l.b16 %v138
    %v424 = vunpack.c.h.b16 %v138
    %v425 = vunpack.c.l.b16 %v139
    %v426 = vunpack.c.h.b16 %v139
    %v427 = vunpack.c.l.b16 %v140
    %v428 = vunpack.c.h.b16 %v140
    %v429 = vunpack.c.l.b16 %v141
    %v430 = vunpack.c.l.b16 %v142
    %v431 = vunpack.c.h.b16 %v142
    %v432 = vunpack.c.l.b16 %v143
    %v433 = vunpack.c.h.b16 %v143
    %v434 = vunpack.c.l.b16 %v144
    %v435 = vunpack.c.h.b16 %v144
    %v436 = vunpack.c.l.b16 %v145
    %v437 = vunpack.c.l.b16 %v146
    %v438 = vunpack.c.h.b16 %v146
    %v439 = vunpack.c.l.b16 %v147
    %v440 = vunpack.c.h.b16 %v147
    %v441 = vunpack.c.l.b16 %v148
    %v442 = vunpack.c.h.b16 %v148
    %v443 = vunpack.c.l.b16 %v149
    %v444 = vpack.c.b16 %v395, %v388
    %v445 = vpack.c.b16 %v396, %v389
    %v446 = vpack.c.b16 %v397, %v390
    %v447 = vpack.c.b16 %v398, %v391
    %v448 = vpack.c.b16 %v399, %v392
    %v449 = vpack.c.b16 %v400, %v393
    %v450 = vpack.c.b16 %v401, %v394
    %v451 = vpack.c.b16 %v409, %v402
    %v452 = vpack.c.b16 %v410, %v403
    %v453 = vpack.c.b16 %v411, %v404
    %v454 = vpack.c.b16 %v412, %v405
    %v455 = vpack.c.b16 %v413, %v406
    %v456 = vpack.c.b16 %v414, %v407
    %v457 = vpack.c.b16 %v415, %v408
    %v458 = vpack.c.b16 %v423, %v416
    %v459 = vpack.c.b16 %v424, %v417
    %v460 = vpack.c.b16 %v425, %v418
    %v461 = vpack.c.b16 %v426, %v419
    %v462 = vpack.c.b16 %v427, %v420
    %v463 = vpack.c.b16 %v428, %v421
    %v464 = vpack.c.b16 %v429, %v422
    %v465 = vpack.c.b16 %v437, %v430
    %v466 = vpack.c.b16 %v438, %v431
    %v467 = vpack.c.b16 %v439, %v432
    %v468 = vpack.c.b16 %v440, %v433
    %v469 = vpack.c.b16 %v441, %v434
    %v470 = vpack.c.b16 %v442, %v435
    %v471 = vpack.c.b16 %v443, %v436
    %v692 = vunpack.c.l.b16 %v150
    %v693 = vunpack.c.h.b16 %v150
    %v694 = vunpack.c.l.b16 %v151
    %v695 = vunpack.c.h.b16 %v151
    %v696 = vunpack.c.l.b16 %v152
    %v697 = vunpack.c.h.b16 %v152
    %v698 = vunpack.c.l.b16 %v153
    %v699 = vunpack.c.h.b16 %v153
    %v700 = vunpack.c.l.b16 %v154
    %v701 = vunpack.c.h.b16 %v154
    %v702 = vunpack.c.l.b16 %v155
    %v703 = vunpack.c.h.b16 %v155
    %v704 = vunpack.c.l.b16 %v156
    %v705 = vunpack.c.h.b16 %v156
    %v706 = vunpack.c.l.b16 %v157
    %v707 = vunpack.c.h.b16 %v157
    %v708 = vunpack.c.l.b16 %v158
    %v709 = vunpack.c.h.b16 %v158
    %v710 = vunpack.c.l.b16 %v159
    %v711 = vunpack.c.h.b16 %v159
    %v712 = vunpack.c.l.b16 %v160
    %v713 = vunpack.c.h.b16 %v160
    %v714 = vunpack.c.l.b16 %v161
    %v715 = vunpack.c.h.b16 %v161
    %v716 = vunpack.c.l.b16 %v162
    %v717 = vunpack.c.h.b16 %v162
    %v718 = vunpack.c.l.b16 %v163
    %v719 = vunpack.c.h.b16 %v163
    %v720 = vunpack.c.l.b16 %v164
    %v721 = vunpack.c.h.b16 %v164
    %v722 = vunpack.c.l.b16 %v165
    %v723 = vunpack.c.h.b16 %v165
    %v724 = vunpack.c.l.b16 %v166
    %v725 = vunpack.c.h.b16 %v166
    %v726 = vunpack.c.l.b16 %v167
    %v727 = vunpack.c.h.b16 %v167
    %v728 = vunpack.c.l.b16 %v168
    %v729 = vunpack.c.h.b16 %v168
    %v730 = vunpack.c.l.b16 %v169
    %v731 = vunpack.c.h.b16 %v169
    %v732 = vunpack.c.l.b16 %v170
    %v733 = vunpack.c.h.b16 %v170
    %v734 = vunpack.c.l.b16 %v171
    %v735 = vunpack.c.h.b16 %v171
    %v736 = vunpack.c.l.b16 %v172
    %v737 = vunpack.c.h.b16 %v172
    %v738 = vunpack.c.l.b16 %v173
    %v739 = vunpack.c.h.b16 %v173
    %v740 = vunpack.c.l.b16 %v174
    %v741 = vunpack.c.h.b16 %v174
    %v742 = vunpack.c.l.b16 %v175
    %v743 = vunpack.c.h.b16 %v175
    %v744 = vunpack.c.l.b16 %v176
    %v745 = vunpack.c.h.b16 %v176
    %v746 = vunpack.c.l.b16 %v177
    %v747 = vunpack.c.h.b16 %v177
    %v748 = vunpack.c.l.b16 %v178
    %v749 = vunpack.c.h.b16 %v178
    %v750 = vunpack.c.l.b16 %v179
    %v751 = vunpack.c.h.b16 %v179
    %v752 = vunpack.c.l.b16 %v180
    %v753 = vunpack.c.h.b16 %v180
    %v754 = vunpack.c.l.b16 %v181
    %v755 = vunpack.c.h.b16 %v181
    %v756 = vunpack.c.l.b16 %v182
    %v757 = vunpack.c.h.b16 %v182
    %v758 = vunpack.c.l.b16 %v183
    %v759 = vunpack.c.h.b16 %v183
    %v760 = vunpack.c.l.b16 %v184
    %v761 = vunpack.c.h.b16 %v184
    %v762 = vunpack.c.l.b16 %v185
    %v763 = vunpack.c.h.b16 %v185
    %v764 = vunpack.c.l.b16 %v186
    %v765 = vunpack.c.h.b16 %v186
    %v766 = vunpack.c.l.b16 %v187
    %v767 = vunpack.c.h.b16 %v187
    %v768 = vunpack.c.l.b16 %v188
    %v769 = vunpack.c.h.b16 %v188
    %v770 = vunpack.c.l.b16 %v189
    %v771 = vunpack.c.h.b16 %v189
    %v772 = vunpack.c.l.b16 %v190
    %v773 = vunpack.c.h.b16 %v190
    %v774 = vunpack.c.l.b16 %v191
    %v775 = vunpack.c.h.b16 %v191
    %v776 = vunpack.c.l.b16 %v192
    %v777 = vunpack.c.h.b16 %v192
    %v778 = vunpack.c.l.b16 %v193
    %v779 = vunpack.c.h.b16 %v193
    %v780 = vunpack.c.l.b16 %v194
    %v781 = vunpack.c.h.b16 %v194
    %v782 = vunpack.c.l.b16 %v195
    %v783 = vunpack.c.h.b16 %v195
    %v784 = vunpack.c.l.b16 %v196
    %v785 = vunpack.c.h.b16 %v196
    %v786 = vunpack.c.l.b16 %v197
    %v787 = vunpack.c.h.b16 %v197
    %v788 = vunpack.c.l.b16 %v198
    %v789 = vunpack.c.h.b16 %v198
    %v790 = vunpack.c.l.b16 %v199
    %v791 = vunpack.c.h.b16 %v199
    %v792 = vunpack.c.l.b16 %v200
    %v793 = vunpack.c.h.b16 %v200
    %v794 = vunpack.c.l.b16 %v201
    %v795 = vunpack.c.h.b16 %v201
    %v796 = vunpack.c.l.b16 %v202
    %v797 = vunpack.c.h.b16 %v202
    %v798 = vunpack.c.l.b16 %v203
    %v799 = vunpack.c.h.b16 %v203
    %v800 = vunpack.c.l.b16 %v204
    %v801 = vunpack.c.h.b16 %v204
    %v802 = vunpack.c.l.b16 %v205
    %v803 = vunpack.c.h.b16 %v205
    %v804 = vunpack.c.l.b16 %v206
    %v805 = vunpack.c.h.b16 %v206
    %v806 = vunpack.c.l.b16 %v207
    %v807 = vunpack.c.h.b16 %v207
    %v808 = vunpack.c.l.b16 %v208
    %v809 = vunpack.c.h.b16 %v208
    %v810 = vunpack.c.l.b16 %v209
    %v811 = vunpack.c.h.b16 %v209
    %v812 = vunpack.c.l.b16 %v210
    %v813 = vunpack.c.h.b16 %v210
    %v814 = vunpack.c.l.b16 %v211
    %v815 = vunpack.c.h.b16 %v211
    %v816 = vunpack.c.l.b16 %v212
    %v817 = vunpack.c.h.b16 %v212
    %v818 = vunpack.c.l.b16 %v213
    %v819 = vunpack.c.h.b16 %v213
    %v820 = vunpack.c.l.b16 %v214
    %v821 = vunpack.c.h.b16 %v214
    %v822 = vunpack.c.l.b16 %v215
    %v823 = vunpack.c.h.b16 %v215
    %v824 = vunpack.c.l.b16 %v216
    %v825 = vunpack.c.h.b16 %v216
    %v826 = vunpack.c.l.b16 %v217
    %v827 = vunpack.c.h.b16 %v217
    %v828 = vunpack.c.l.b16 %v218
    %v829 = vunpack.c.h.b16 %v218
    %v830 = vunpack.c.l.b16 %v219
    %v831 = vunpack.c.h.b16 %v219
    %v832 = vunpack.c.l.b16 %v220
    %v833 = vunpack.c.h.b16 %v220
    %v834 = vunpack.c.l.b16 %v221
    %v835 = vunpack.c.h.b16 %v221
    %v836 = vunpack.c.l.b16 %v222
    %v837 = vunpack.c.h.b16 %v222
    %v838 = vunpack.c.l.b16 %v223
    %v839 = vunpack.c.h.b16 %v223
    %v840 = vunpack.c.l.b16 %v224
    %v841 = vunpack.c.h.b16 %v224
    %v842 = vunpack.c.l.b16 %v225
    %v843 = vunpack.c.h.b16 %v225
    %v844 = vunpack.c.l.b16 %v226
    %v845 = vunpack.c.h.b16 %v226
    %v846 = vunpack.c.l.b16 %v227
    %v847 = vunpack.c.h.b16 %v227
    %v848 = vunpack.c.l.b16 %v228
    %v849 = vunpack.c.h.b16 %v228
    %v850 = vunpack.c.l.b16 %v229
    %v851 = vunpack.c.h.b16 %v229
    %v852 = vunpack.c.l.b16 %v230
    %v853 = vunpack.c.h.b16 %v230
    %v854 = vunpack.c.l.b16 %v231
    %v855 = vunpack.c.h.b16 %v231
    %v856 = vunpack.c.l.b16 %v232
    %v857 = vunpack.c.h.b16 %v232
    %v858 = vunpack.c.l.b16 %v233
    %v859 = vunpack.c.h.b16 %v233
    %v860 = vunpack.c.l.b16 %v234
    %v861 = vunpack.c.h.b16 %v234
    %v862 = vunpack.c.l.b16 %v235
    %v863 = vunpack.c.h.b16 %v235
    %v864 = vunpack.c.l.b16 %v236
    %v865 = vunpack.c.h.b16 %v236
    %v866 = vunpack.c.l.b16 %v237
    %v867 = vunpack.c.h.b16 %v237
    %v868 = vunpack.c.l.b16 %v238
    %v869 = vunpack.c.h.b16 %v238
    %v870 = vunpack.c.l.b16 %v239
    %v871 = vunpack.c.h.b16 %v239
    %v872 = vunpack.c.l.b16 %v240
    %v873 = vunpack.c.h.b16 %v240
    %v874 = vunpack.c.l.b16 %v241
    %v875 = vunpack.c.h.b16 %v241
    %v876 = vunpack.c.l.b16 %v242
    %v877 = vunpack.c.h.b16 %v242
    %v878 = vunpack.c.l.b16 %v243
    %v879 = vunpack.c.h.b16 %v243
    %v880 = vunpack.c.l.b16 %v244
    %v881 = vunpack.c.h.b16 %v244
    %v882 = vunpack.c.l.b16 %v245
    %v883 = vunpack.c.h.b16 %v245
    %v884 = vunpack.c.l.b16 %v246
    %v885 = vunpack.c.h.b16 %v246
    %v886 = vunpack.c.l.b16 %v247
    %v887 = vunpack.c.h.b16 %v247
    %v888 = vunpack.c.l.b16 %v248
    %v889 = vunpack.c.h.b16 %v248
    %v890 = vunpack.c.l.b16 %v249
    %v891 = vunpack.c.h.b16 %v249
    %v892 = vunpack.c.l.b16 %v250
    %v893 = vunpack.c.h.b16 %v250
    %v894 = vunpack.c.l.b16 %v251
    %v895 = vunpack.c.h.b16 %v251
    %v896 = vunpack.c.l.b16 %v252
    %v897 = vunpack.c.h.b16 %v252
    %v898 = vunpack.c.l.b16 %v253
    %v899 = vunpack.c.h.b16 %v253
    %v900 = vunpack.c.l.b16 %v254
    %v901 = vunpack.c.h.b16 %v254
    %v902 = vunpack.c.l.b16 %v255
    %v903 = vunpack.c.h.b16 %v255
    %v904 = vunpack.c.l.b16 %v256
    %v905 = vunpack.c.h.b16 %v256
    %v906 = vunpack.c.l.b16 %v257
    %v907 = vunpack.c.h.b16 %v257
    %v908 = vunpack.c.l.b16 %v258
    %v909 = vunpack.c.h.b16 %v258
    %v910 = vunpack.c.l.b16 %v259
    %v911 = vunpack.c.h.b16 %v259
    %v912 = vunpack.c.l.b16 %v260
    %v913 = vunpack.c.h.b16 %v260
    %v914 = vunpack.c.l.b16 %v261
    %v915 = vunpack.c.h.b16 %v261
    %v916 = vunpack.c.l.b16 %v262
    %v917 = vunpack.c.h.b16 %v262
    %v918 = vunpack.c.l.b16 %v263
    %v919 = vunpack.c.h.b16 %v263
    %v920 = vunpack.c.l.b16 %v264
    %v921 = vunpack.c.h.b16 %v264
    %v922 = vunpack.c.l.b16 %v265
    %v923 = vunpack.c.h.b16 %v265
    %v924 = vunpack.c.l.b16 %v266
    %v925 = vunpack.c.h.b16 %v266
    %v926 = vunpack.c.l.b16 %v267
    %v927 = vunpack.c.h.b16 %v267
    %v928 = vunpack.c.l.b16 %v268
    %v929 = vunpack.c.h.b16 %v268
    %v930 = vunpack.c.l.b16 %v269
    %v931 = vunpack.c.h.b16 %v269
    %v932 = vunpack.c.l.b16 %v270
    %v933 = vunpack.c.h.b16 %v270
    %v934 = vunpack.c.l.b16 %v271
    %v935 = vunpack.c.h.b16 %v271
    %v936 = vunpack.c.l.b16 %v272
    %v937 = vunpack.c.h.b16 %v272
    %v938 = vunpack.c.l.b16 %v273
    %v939 = vunpack.c.h.b16 %v273
    %v940 = vunpack.c.l.b16 %v274
    %v941 = vunpack.c.h.b16 %v274
    %v942 = vunpack.c.l.b16 %v275
    %v943 = vunpack.c.h.b16 %v275
    %v944 = vunpack.c.l.b16 %v276
    %v945 = vunpack.c.h.b16 %v276
    %v946 = vunpack.c.l.b16 %v277
    %v947 = vunpack.c.h.b16 %v277
    %v948 = vunpack.c.l.b16 %v278
    %v949 = vunpack.c.h.b16 %v278
    %v950 = vunpack.c.l.b16 %v279
    %v951 = vunpack.c.h.b16 %v279
    %v952 = vunpack.c.l.b16 %v280
    %v953 = vunpack.c.h.b16 %v280
    %v954 = vunpack.c.l.b16 %v281
    %v955 = vunpack.c.h.b16 %v281
    %v956 = vunpack.c.l.b16 %v282
    %v957 = vunpack.c.h.b16 %v282
    %v958 = vunpack.c.l.b16 %v283
    %v959 = vunpack.c.h.b16 %v283
    %v960 = vunpack.c.l.b16 %v284
    %v961 = vunpack.c.h.b16 %v284
    %v962 = vunpack.c.l.b16 %v285
    %v963 = vunpack.c.h.b16 %v285
    %v964 = vunpack.c.l.b16 %v286
    %v965 = vunpack.c.h.b16 %v286
    %v966 = vunpack.c.l.b16 %v287
    %v967 = vunpack.c.h.b16 %v287
    %v968 = vunpack.c.l.b16 %v288
    %v969 = vunpack.c.h.b16 %v288
    %v970 = vunpack.c.l.b16 %v289
    %v971 = vunpack.c.h.b16 %v289
    %v972 = vunpack.c.l.b16 %v290
    %v973 = vunpack.c.h.b16 %v290
    %v974 = vunpack.c.l.b16 %v291
    %v975 = vunpack.c.h.b16 %v291
    %v976 = vunpack.c.l.b16 %v292
    %v977 = vunpack.c.h.b16 %v292
    %v978 = vunpack.c.l.b16 %v293
    %v979 = vunpack.c.h.b16 %v293
    %v980 = vunpack.c.l.b16 %v294
    %v981 = vunpack.c.h.b16 %v294
    %v982 = vunpack.c.l.b16 %v295
    %v983 = vunpack.c.h.b16 %v295
    %v984 = vunpack.c.l.b16 %v296
    %v985 = vunpack.c.h.b16 %v296
    %v986 = vunpack.c.l.b16 %v297
    %v987 = vunpack.c.h.b16 %v297
    %v988 = vunpack.c.l.b16 %v298
    %v989 = vunpack.c.h.b16 %v298
    %v990 = vunpack.c.l.b16 %v299
    %v991 = vunpack.c.h.b16 %v299
    %v992 = vunpack.c.l.b16 %v300
    %v993 = vunpack.c.h.b16 %v300
    %v994 = vunpack.c.l.b16 %v301
    %v995 = vunpack.c.h.b16 %v301
    %v996 = vunpack.c.l.b16 %v302
    %v997 = vunpack.c.h.b16 %v302
    %v998 = vunpack.c.l.b16 %v303
    %v999 = vunpack.c.h.b16 %v303
    %v1000 = vunpack.c.l.b16 %v304
    %v1001 = vunpack.c.h.b16 %v304
    %v1002 = vunpack.c.l.b16 %v305
    %v1003 = vunpack.c.h.b16 %v305
    %v1004 = vunpack.c.l.b16 %v306
    %v1005 = vunpack.c.h.b16 %v306
    %v1006 = vunpack.c.l.b16 %v307
    %v1007 = vunpack.c.h.b16 %v307
    %v1008 = vunpack.c.l.b16 %v308
    %v1009 = vunpack.c.h.b16 %v308
    %v1010 = vunpack.c.l.b16 %v309
    %v1011 = vunpack.c.h.b16 %v309
    %v1012 = vunpack.c.l.b16 %v310
    %v1013 = vunpack.c.h.b16 %v310
    %v1014 = vunpack.c.l.b16 %v311
    %v1015 = vunpack.c.h.b16 %v311
    %v1016 = vunpack.c.l.b16 %v312
    %v1017 = vunpack.c.h.b16 %v312
    %v1018 = vunpack.c.l.b16 %v313
    %v1019 = vunpack.c.h.b16 %v313
    %v1020 = vunpack.c.l.b16 %v314
    %v1021 = vunpack.c.h.b16 %v314
    %v1022 = vunpack.c.l.b16 %v315
    %v1023 = vunpack.c.h.b16 %v315
    %v1024 = vunpack.c.l.b16 %v316
    %v1025 = vunpack.c.h.b16 %v316
    %v1026 = vunpack.c.l.b16 %v317
    %v1027 = vunpack.c.h.b16 %v317
    %v1028 = vunpack.c.l.b16 %v318
    %v1029 = vunpack.c.h.b16 %v318
    %v1030 = vunpack.c.l.b16 %v319
    %v1031 = vunpack.c.h.b16 %v319
    %v1032 = vunpack.c.l.b16 %v320
    %v1033 = vunpack.c.h.b16 %v320
    %v1034 = vunpack.c.l.b16 %v321
    %v1035 = vunpack.c.h.b16 %v321
    %v1036 = vunpack.c.l.b16 %v322
    %v1037 = vunpack.c.h.b16 %v322
    %v1038 = vunpack.c.l.b16 %v323
    %v1039 = vunpack.c.h.b16 %v323
    %v1040 = vunpack.c.l.b16 %v324
    %v1041 = vunpack.c.h.b16 %v324
    %v1042 = vunpack.c.l.b16 %v325
    %v1043 = vunpack.c.h.b16 %v325
    %v1044 = vunpack.c.l.b16 %v326
    %v1045 = vunpack.c.h.b16 %v326
    %v1046 = vunpack.c.l.b16 %v327
    %v1047 = vunpack.c.h.b16 %v327
    %v1048 = vunpack.c.l.b16 %v328
    %v1049 = vunpack.c.h.b16 %v328
    %v1050 = vunpack.c.l.b16 %v329
    %v1051 = vunpack.c.h.b16 %v329
    %v1052 = vunpack.c.l.b16 %v330
    %v1053 = vunpack.c.h.b16 %v330
    %v1054 = vunpack.c.l.b16 %v331
    %v1055 = vunpack.c.h.b16 %v331
    %v1056 = vunpack.c.l.b16 %v332
    %v1057 = vunpack.c.h.b16 %v332
    %v1058 = vunpack.c.l.b16 %v333
    %v1059 = vunpack.c.h.b16 %v333
    %v1060 = vunpack.c.l.b16 %v334
    %v1061 = vunpack.c.h.b16 %v334
    %v1062 = vunpack.c.l.b16 %v335
    %v1063 = vunpack.c.h.b16 %v335
    %v1064 = vunpack.c.l.b16 %v336
    %v1065 = vunpack.c.h.b16 %v336
    %v1066 = vunpack.c.l.b16 %v337
    %v1067 = vunpack.c.h.b16 %v337
    %v1068 = vunpack.c.l.b16 %v338
    %v1069 = vunpack.c.h.b16 %v338
    %v1070 = vunpack.c.l.b16 %v339
    %v1071 = vunpack.c.h.b16 %v339
    %v1072 = vunpack.c.l.b16 %v340
    %v1073 = vunpack.c.h.b16 %v340
    %v1074 = vunpack.c.l.b16 %v341
    %v1075 = vunpack.c.h.b16 %v341
    %v1076 = vunpack.c.l.b16 %v342
    %v1077 = vunpack.c.h.b16 %v342
    %v1078 = vunpack.c.l.b16 %v343
    %v1079 = vunpack.c.h.b16 %v343
    %v1080 = vunpack.c.l.b16 %v344
    %v1081 = vunpack.c.h.b16 %v344
    %v1082 = vunpack.c.l.b16 %v345
    %v1083 = vunpack.c.h.b16 %v345
    %v1084 = vpack.c.b16 %v696, %v692
    %v1085 = vpack.c.b16 %v697, %v693
    %v1086 = vpack.c.b16 %v698, %v694
    %v1087 = vpack.c.b16 %v699, %v695
    %v1088 = vpack.c.b16 %v704, %v700
    %v1089 = vpack.c.b16 %v705, %v701
    %v1090 = vpack.c.b16 %v706, %v702
    %v1091 = vpack.c.b16 %v707, %v703
    %v1092 = vpack.c.b16 %v712, %v708
    %v1093 = vpack.c.b16 %v713, %v709
    %v1094 = vpack.c.b16 %v714, %v710
    %v1095 = vpack.c.b16 %v715, %v711
    %v1096 = vpack.c.b16 %v720, %v716
    %v1097 = vpack.c.b16 %v721, %v717
    %v1098 = vpack.c.b16 %v722, %v718
    %v1099 = vpack.c.b16 %v723, %v719
    %v1100 = vpack.c.b16 %v728, %v724
    %v1101 = vpack.c.b16 %v729, %v725
    %v1102 = vpack.c.b16 %v730, %v726
    %v1103 = vpack.c.b16 %v731, %v727
    %v1104 = vpack.c.b16 %v736, %v732
    %v1105 = vpack.c.b16 %v737, %v733
    %v1106 = vpack.c.b16 %v738, %v734
    %v1107 = vpack.c.b16 %v739, %v735
    %v1108 = vpack.c.b16 %v744, %v740
    %v1109 = vpack.c.b16 %v745, %v741
    %v1110 = vpack.c.b16 %v746, %v742
    %v1111 = vpack.c.b16 %v747, %v743
    %v1112 = vpack.c.b16 %v752, %v748
    %v1113 = vpack.c.b16 %v753, %v749
    %v1114 = vpack.c.b16 %v754, %v750
    %v1115 = vpack.c.b16 %v755, %v751
    %v1116 = vpack.c.b16 %v760, %v756
    %v1117 = vpack.c.b16 %v761, %v757
    %v1118 = vpack.c.b16 %v762, %v758
    %v1119 = vpack.c.b16 %v763, %v759
    %v1120 = vpack.c.b16 %v768, %v764
    %v1121 = vpack.c.b16 %v769, %v765
    %v1122 = vpack.c.b16 %v770, %v766
    %v1123 = vpack.c.b16 %v771, %v767
    %v1124 = vpack.c.b16 %v776, %v772
    %v1125 = vpack.c.b16 %v777, %v773
    %v1126 = vpack.c.b16 %v778, %v774
    %v1127 = vpack.c.b16 %v779, %v775
    %v1128 = vpack.c.b16 %v784, %v780
    %v1129 = vpack.c.b16 %v785, %v781
    %v1130 = vpack.c.b16 %v786, %v782
    %v1131 = vpack.c.b16 %v787, %v783
    %v1132 = vpack.c.b16 %v792, %v788
    %v1133 = vpack.c.b16 %v793, %v789
    %v1134 = vpack.c.b16 %v794, %v790
    %v1135 = vpack.c.b16 %v795, %v791
    %v1136 = vpack.c.b16 %v800, %v796
    %v1137 = vpack.c.b16 %v801, %v797
    %v1138 = vpack.c.b16 %v802, %v798
    %v1139 = vpack.c.b16 %v803, %v799
    %v1140 = vpack.c.b16 %v808, %v804
    %v1141 = vpack.c.b16 %v809, %v805
    %v1142 = vpack.c.b16 %v810, %v806
    %v1143 = vpack.c.b16 %v811, %v807
    %v1144 = vpack.c.b16 %v816, %v812
    %v1145 = vpack.c.b16 %v817, %v813
    %v1146 = vpack.c.b16 %v818, %v814
    %v1147 = vpack.c.b16 %v819, %v815
    %v1148 = vpack.c.b16 %v824, %v820
    %v1149 = vpack.c.b16 %v825, %v821
    %v1150 = vpack.c.b16 %v826, %v822
    %v1151 = vpack.c.b16 %v827, %v823
    %v1152 = vpack.c.b16 %v832, %v828
    %v1153 = vpack.c.b16 %v833, %v829
    %v1154 = vpack.c.b16 %v834, %v830
    %v1155 = vpack.c.b16 %v835, %v831
    %v1156 = vpack.c.b16 %v840, %v836
    %v1157 = vpack.c.b16 %v841, %v837
    %v1158 = vpack.c.b16 %v842, %v838
    %v1159 = vpack.c.b16 %v843, %v839
    %v1160 = vpack.c.b16 %v848, %v844
    %v1161 = vpack.c.b16 %v849, %v845
    %v1162 = vpack.c.b16 %v850, %v846
    %v1163 = vpack.c.b16 %v851, %v847
    %v1164 = vpack.c.b16 %v856, %v852
    %v1165 = vpack.c.b16 %v857, %v853
    %v1166 = vpack.c.b16 %v858, %v854
    %v1167 = vpack.c.b16 %v859, %v855
    %v1168 = vpack.c.b16 %v864, %v860
    %v1169 = vpack.c.b16 %v865, %v861
    %v1170 = vpack.c.b16 %v866, %v862
    %v1171 = vpack.c.b16 %v867, %v863
    %v1172 = vpack.c.b16 %v872, %v868
    %v1173 = vpack.c.b16 %v873, %v869
    %v1174 = vpack.c.b16 %v874, %v870
    %v1175 = vpack.c.b16 %v875, %v871
    %v1176 = vpack.c.b16 %v880, %v876
    %v1177 = vpack.c.b16 %v881, %v877
    %v1178 = vpack.c.b16 %v882, %v878
    %v1179 = vpack.c.b16 %v883, %v879
    %v1180 = vpack.c.b16 %v888, %v884
    %v1181 = vpack.c.b16 %v889, %v885
    %v1182 = vpack.c.b16 %v890, %v886
    %v1183 = vpack.c.b16 %v891, %v887
    %v1184 = vpack.c.b16 %v896, %v892
    %v1185 = vpack.c.b16 %v897, %v893
    %v1186 = vpack.c.b16 %v898, %v894
    %v1187 = vpack.c.b16 %v899, %v895
    %v1188 = vpack.c.b16 %v904, %v900
    %v1189 = vpack.c.b16 %v905, %v901
    %v1190 = vpack.c.b16 %v906, %v902
    %v1191 = vpack.c.b16 %v907, %v903
    %v1192 = vpack.c.b16 %v912, %v908
    %v1193 = vpack.c.b16 %v913, %v909
    %v1194 = vpack.c.b16 %v914, %v910
    %v1195 = vpack.c.b16 %v915, %v911
    %v1196 = vpack.c.b16 %v920, %v916
    %v1197 = vpack.c.b16 %v921, %v917
    %v1198 = vpack.c.b16 %v922, %v918
    %v1199 = vpack.c.b16 %v923, %v919
    %v1200 = vpack.c.b16 %v928, %v924
    %v1201 = vpack.c.b16 %v929, %v925
    %v1202 = vpack.c.b16 %v930, %v926
    %v1203 = vpack.c.b16 %v931, %v927
    %v1204 = vpack.c.b16 %v936, %v932
    %v1205 = vpack.c.b16 %v937, %v933
    %v1206 = vpack.c.b16 %v938, %v934
    %v1207 = vpack.c.b16 %v939, %v935
    %v1208 = vpack.c.b16 %v944, %v940
    %v1209 = vpack.c.b16 %v945, %v941
    %v1210 = vpack.c.b16 %v946, %v942
    %v1211 = vpack.c.b16 %v947, %v943
    %v1212 = vpack.c.b16 %v952, %v948
    %v1213 = vpack.c.b16 %v953, %v949
    %v1214 = vpack.c.b16 %v954, %v950
    %v1215 = vpack.c.b16 %v955, %v951
    %v1216 = vpack.c.b16 %v960, %v956
    %v1217 = vpack.c.b16 %v961, %v957
    %v1218 = vpack.c.b16 %v962, %v958
    %v1219 = vpack.c.b16 %v963, %v959
    %v1220 = vpack.c.b16 %v968, %v964
    %v1221 = vpack.c.b16 %v969, %v965
    %v1222 = vpack.c.b16 %v970, %v966
    %v1223 = vpack.c.b16 %v971, %v967
    %v1224 = vpack.c.b16 %v976, %v972
    %v1225 = vpack.c.b16 %v977, %v973
    %v1226 = vpack.c.b16 %v978, %v974
    %v1227 = vpack.c.b16 %v979, %v975
    %v1228 = vpack.c.b16 %v984, %v980
    %v1229 = vpack.c.b16 %v985, %v981
    %v1230 = vpack.c.b16 %v986, %v982
    %v1231 = vpack.c.b16 %v987, %v983
    %v1232 = vpack.c.b16 %v992, %v988
    %v1233 = vpack.c.b16 %v993, %v989
    %v1234 = vpack.c.b16 %v994, %v990
    %v1235 = vpack.c.b16 %v995, %v991
    %v1236 = vpack.c.b16 %v1000, %v996
    %v1237 = vpack.c.b16 %v1001, %v997
    %v1238 = vpack.c.b16 %v1002, %v998
    %v1239 = vpack.c.b16 %v1003, %v999
    %v1240 = vpack.c.b16 %v1008, %v1004
    %v1241 = vpack.c.b16 %v1009, %v1005
    %v1242 = vpack.c.b16 %v1010, %v1006
    %v1243 = vpack.c.b16 %v1011, %v1007
    %v1244 = vpack.c.b16 %v1016, %v1012
    %v1245 = vpack.c.b16 %v1017, %v1013
    %v1246 = vpack.c.b16 %v1018, %v1014
    %v1247 = vpack.c.b16 %v1019, %v1015
    %v1248 = vpack.c.b16 %v1024, %v1020
    %v1249 = vpack.c.b16 %v1025, %v1021
    %v1250 = vpack.c.b16 %v1026, %v1022
    %v1251 = vpack.c.b16 %v1027, %v1023
    %v1252 = vpack.c.b16 %v1032, %v1028
    %v1253 = vpack.c.b16 %v1033, %v1029
    %v1254 = vpack.c.b16 %v1034, %v1030
    %v1255 = vpack.c.b16 %v1035, %v1031
    %v1256 = vpack.c.b16 %v1040, %v1036
    %v1257 = vpack.c.b16 %v1041, %v1037
    %v1258 = vpack.c.b16 %v1042, %v1038
    %v1259 = vpack.c.b16 %v1043, %v1039
    %v1260 = vpack.c.b16 %v1048, %v1044
    %v1261 = vpack.c.b16 %v1049, %v1045
    %v1262 = vpack.c.b16 %v1050, %v1046
    %v1263 = vpack.c.b16 %v1051, %v1047
    %v1264 = vpack.c.b16 %v1056, %v1052
    %v1265 = vpack.c.b16 %v1057, %v1053
    %v1266 = vpack.c.b16 %v1058, %v1054
    %v1267 = vpack.c.b16 %v1059, %v1055
    %v1268 = vpack.c.b16 %v1064, %v1060
    %v1269 = vpack.c.b16 %v1065, %v1061
    %v1270 = vpack.c.b16 %v1066, %v1062
    %v1271 = vpack.c.b16 %v1067, %v1063
    %v1272 = vpack.c.b16 %v1072, %v1068
    %v1273 = vpack.c.b16 %v1073, %v1069
    %v1274 = vpack.c.b16 %v1074, %v1070
    %v1275 = vpack.c.b16 %v1075, %v1071
    %v1276 = vpack.c.b16 %v1080, %v1076
    %v1277 = vpack.c.b16 %v1081, %v1077
    %v1278 = vpack.c.b16 %v1082, %v1078
    %v1279 = vpack.c.b16 %v1083, %v1079
    %vm1476 = vcmask 130048
    %v1478 = vsel %vm1476, %v450, 0
    %v1481 = vsel %vm1476, %v457, 0
    %v1484 = vsel %vm1476, %v464, 0
    %v1487 = vsel %vm1476, %v471, 0
    %1489 = vmatpush.bf16.msra.mxu0 %v1112
    %1490 = vmatpush.bf16.msra.mxu0 %v1108
    %1491 = vmatpush.bf16.msra.mxu0 %v1104
    %1492 = vmatpush.bf16.msra.mxu0 %v1100
    %1493 = vmatpush.bf16.msra.mxu0 %v1096
    %1494 = vmatpush.bf16.msra.mxu0 %v1092
    %1495 = vmatpush.bf16.msra.mxu0 %v1088
    %1496 = vmatpush.bf16.msra.mxu0 %v1084
    %1497 = vmatmul.bf16.gmra.mxu0 %v444
    %v1498 = vpop.f32.mrf.mxu0
    %v1499 = vadd.f32 %v348, %v1498
    %v1500 = vpop.f32.mrf.mxu0
    %v1501 = vadd.f32 %v348, %v1500
    %1502 = vmatmul.bf16.gmra.mxu0 %v451
    %v1503 = vpop.f32.mrf.mxu0
    %v1504 = vadd.f32 %v348, %v1503
    %v1505 = vpop.f32.mrf.mxu0
    %v1506 = vadd.f32 %v348, %v1505
    %1507 = vmatmul.bf16.gmra.mxu0 %v458
    %v1508 = vpop.f32.mrf.mxu0
    %v1509 = vadd.f32 %v348, %v1508
    %v1510 = vpop.f32.mrf.mxu0
    %v1511 = vadd.f32 %v348, %v1510
    %1512 = vmatmul.bf16.gmra.mxu0 %v465
    %v1513 = vpop.f32.mrf.mxu0
    %v1514 = vadd.f32 %v348, %v1513
    %v1515 = vpop.f32.mrf.mxu0
    %v1516 = vadd.f32 %v348, %v1515
    %1517 = vdwg.mxu0
    %1518 = vmatpush.bf16.msra.mxu0 %v1144
    %1519 = vmatpush.bf16.msra.mxu0 %v1140
    %1520 = vmatpush.bf16.msra.mxu0 %v1136
    %1521 = vmatpush.bf16.msra.mxu0 %v1132
    %1522 = vmatpush.bf16.msra.mxu0 %v1128
    %1523 = vmatpush.bf16.msra.mxu0 %v1124
    %1524 = vmatpush.bf16.msra.mxu0 %v1120
    %1525 = vmatpush.bf16.msra.mxu0 %v1116
    %1526 = vmatmul.bf16.gmra.mxu0 %v445
    %v1527 = vpop.f32.mrf.mxu0
    %v1528 = vadd.f32 %v1499, %v1527
    %v1529 = vpop.f32.mrf.mxu0
    %v1530 = vadd.f32 %v1501, %v1529
    %1531 = vmatmul.bf16.gmra.mxu0 %v452
    %v1532 = vpop.f32.mrf.mxu0
    %v1533 = vadd.f32 %v1504, %v1532
    %v1534 = vpop.f32.mrf.mxu0
    %v1535 = vadd.f32 %v1506, %v1534
    %1536 = vmatmul.bf16.gmra.mxu0 %v459
    %v1537 = vpop.f32.mrf.mxu0
    %v1538 = vadd.f32 %v1509, %v1537
    %v1539 = vpop.f32.mrf.mxu0
    %v1540 = vadd.f32 %v1511, %v1539
    %1541 = vmatmul.bf16.gmra.mxu0 %v466
    %v1542 = vpop.f32.mrf.mxu0
    %v1543 = vadd.f32 %v1514, %v1542
    %v1544 = vpop.f32.mrf.mxu0
    %v1545 = vadd.f32 %v1516, %v1544
    %1546 = vdwg.mxu0
    %1547 = vmatpush.bf16.msra.mxu0 %v1176
    %1548 = vmatpush.bf16.msra.mxu0 %v1172
    %1549 = vmatpush.bf16.msra.mxu0 %v1168
    %1550 = vmatpush.bf16.msra.mxu0 %v1164
    %1551 = vmatpush.bf16.msra.mxu0 %v1160
    %1552 = vmatpush.bf16.msra.mxu0 %v1156
    %1553 = vmatpush.bf16.msra.mxu0 %v1152
    %1554 = vmatpush.bf16.msra.mxu0 %v1148
    %1555 = vmatmul.bf16.gmra.mxu0 %v446
    %v1556 = vpop.f32.mrf.mxu0
    %v1557 = vadd.f32 %v1528, %v1556
    %v1558 = vpop.f32.mrf.mxu0
    %v1559 = vadd.f32 %v1530, %v1558
    %1560 = vmatmul.bf16.gmra.mxu0 %v453
    %v1561 = vpop.f32.mrf.mxu0
    %v1562 = vadd.f32 %v1533, %v1561
    %v1563 = vpop.f32.mrf.mxu0
    %v1564 = vadd.f32 %v1535, %v1563
    %1565 = vmatmul.bf16.gmra.mxu0 %v460
    %v1566 = vpop.f32.mrf.mxu0
    %v1567 = vadd.f32 %v1538, %v1566
    %v1568 = vpop.f32.mrf.mxu0
    %v1569 = vadd.f32 %v1540, %v1568
    %1570 = vmatmul.bf16.gmra.mxu0 %v467
    %v1571 = vpop.f32.mrf.mxu0
    %v1572 = vadd.f32 %v1543, %v1571
    %v1573 = vpop.f32.mrf.mxu0
    %v1574 = vadd.f32 %v1545, %v1573
    %1575 = vdwg.mxu0
    %1576 = vmatpush.bf16.msra.mxu0 %v1208
    %1577 = vmatpush.bf16.msra.mxu0 %v1204
    %1578 = vmatpush.bf16.msra.mxu0 %v1200
    %1579 = vmatpush.bf16.msra.mxu0 %v1196
    %1580 = vmatpush.bf16.msra.mxu0 %v1192
    %1581 = vmatpush.bf16.msra.mxu0 %v1188
    %1582 = vmatpush.bf16.msra.mxu0 %v1184
    %1583 = vmatpush.bf16.msra.mxu0 %v1180
    %1584 = vmatmul.bf16.gmra.mxu0 %v447
    %v1585 = vpop.f32.mrf.mxu0
    %v1586 = vadd.f32 %v1557, %v1585
    %v1587 = vpop.f32.mrf.mxu0
    %v1588 = vadd.f32 %v1559, %v1587
    %1589 = vmatmul.bf16.gmra.mxu0 %v454
    %v1590 = vpop.f32.mrf.mxu0
    %v1591 = vadd.f32 %v1562, %v1590
    %v1592 = vpop.f32.mrf.mxu0
    %v1593 = vadd.f32 %v1564, %v1592
    %1594 = vmatmul.bf16.gmra.mxu0 %v461
    %v1595 = vpop.f32.mrf.mxu0
    %v1596 = vadd.f32 %v1567, %v1595
    %v1597 = vpop.f32.mrf.mxu0
    %v1598 = vadd.f32 %v1569, %v1597
    %1599 = vmatmul.bf16.gmra.mxu0 %v468
    %v1600 = vpop.f32.mrf.mxu0
    %v1601 = vadd.f32 %v1572, %v1600
    %v1602 = vpop.f32.mrf.mxu0
    %v1603 = vadd.f32 %v1574, %v1602
    %1604 = vdwg.mxu0
    %1605 = vmatpush.bf16.msra.mxu0 %v1240
    %1606 = vmatpush.bf16.msra.mxu0 %v1236
    %1607 = vmatpush.bf16.msra.mxu0 %v1232
    %1608 = vmatpush.bf16.msra.mxu0 %v1228
    %1609 = vmatpush.bf16.msra.mxu0 %v1224
    %1610 = vmatpush.bf16.msra.mxu0 %v1220
    %1611 = vmatpush.bf16.msra.mxu0 %v1216
    %1612 = vmatpush.bf16.msra.mxu0 %v1212
    %1613 = vmatmul.bf16.gmra.mxu0 %v448
    %v1614 = vpop.f32.mrf.mxu0
    %v1615 = vadd.f32 %v1586, %v1614
    %v1616 = vpop.f32.mrf.mxu0
    %v1617 = vadd.f32 %v1588, %v1616
    %1618 = vmatmul.bf16.gmra.mxu0 %v455
    %v1619 = vpop.f32.mrf.mxu0
    %v1620 = vadd.f32 %v1591, %v1619
    %v1621 = vpop.f32.mrf.mxu0
    %v1622 = vadd.f32 %v1593, %v1621
    %1623 = vmatmul.bf16.gmra.mxu0 %v462
    %v1624 = vpop.f32.mrf.mxu0
    %v1625 = vadd.f32 %v1596, %v1624
    %v1626 = vpop.f32.mrf.mxu0
    %v1627 = vadd.f32 %v1598, %v1626
    %1628 = vmatmul.bf16.gmra.mxu0 %v469
    %v1629 = vpop.f32.mrf.mxu0
    %v1630 = vadd.f32 %v1601, %v1629
    %v1631 = vpop.f32.mrf.mxu0
    %v1632 = vadd.f32 %v1603, %v1631
    %1633 = vdwg.mxu0
    %1634 = vmatpush.bf16.msra.mxu0 %v1272
    %1635 = vmatpush.bf16.msra.mxu0 %v1268
    %1636 = vmatpush.bf16.msra.mxu0 %v1264
    %1637 = vmatpush.bf16.msra.mxu0 %v1260
    %1638 = vmatpush.bf16.msra.mxu0 %v1256
    %1639 = vmatpush.bf16.msra.mxu0 %v1252
    %1640 = vmatpush.bf16.msra.mxu0 %v1248
    %1641 = vmatpush.bf16.msra.mxu0 %v1244
    %1642 = vmatmul.bf16.gmra.mxu0 %v449
    %v1643 = vpop.f32.mrf.mxu0
    %v1644 = vadd.f32 %v1615, %v1643
    %v1645 = vpop.f32.mrf.mxu0
    %v1646 = vadd.f32 %v1617, %v1645
    %1647 = vmatmul.bf16.gmra.mxu0 %v456
    %v1648 = vpop.f32.mrf.mxu0
    %v1649 = vadd.f32 %v1620, %v1648
    %v1650 = vpop.f32.mrf.mxu0
    %v1651 = vadd.f32 %v1622, %v1650
    %1652 = vmatmul.bf16.gmra.mxu0 %v463
    %v1653 = vpop.f32.mrf.mxu0
    %v1654 = vadd.f32 %v1625, %v1653
    %v1655 = vpop.f32.mrf.mxu0
    %v1656 = vadd.f32 %v1627, %v1655
    %1657 = vmatmul.bf16.gmra.mxu0 %v470
    %v1658 = vpop.f32.mrf.mxu0
    %v1659 = vadd.f32 %v1630, %v1658
    %v1660 = vpop.f32.mrf.mxu0
    %v1661 = vadd.f32 %v1632, %v1660
    %1662 = vdwg.mxu0
    %1663 = vmatpush.bf16.msra.mxu0 0
    %1664 = vmatpush.bf16.msra.mxu0 0
    %1665 = vmatpush.bf16.msra.mxu0 0
    %1666 = vmatpush.bf16.msra.mxu0 0
    %1667 = vmatpush.bf16.msra.mxu0 0
    %1668 = vmatpush.bf16.msra.mxu0 0
    %1669 = vmatpush.bf16.msra.mxu0 0
    %1670 = vmatpush.bf16.msra.mxu0 %v1276
    %1671 = vmatmul.bf16.gmra.mxu0 %v1478
    %v1672 = vpop.f32.mrf.mxu0
    %v1673 = vadd.f32 %v1644, %v1672
    %v1674 = vpop.f32.mrf.mxu0
    %v1675 = vadd.f32 %v1646, %v1674
    %1676 = vmatmul.bf16.gmra.mxu0 %v1481
    %v1677 = vpop.f32.mrf.mxu0
    %v1678 = vadd.f32 %v1649, %v1677
    %v1679 = vpop.f32.mrf.mxu0
    %v1680 = vadd.f32 %v1651, %v1679
    %1681 = vmatmul.bf16.gmra.mxu0 %v1484
    %v1682 = vpop.f32.mrf.mxu0
    %v1683 = vadd.f32 %v1654, %v1682
    %v1684 = vpop.f32.mrf.mxu0
    %v1685 = vadd.f32 %v1656, %v1684
    %1686 = vmatmul.bf16.gmra.mxu0 %v1487
    %v1687 = vpop.f32.mrf.mxu0
    %v1688 = vadd.f32 %v1659, %v1687
    %v1689 = vpop.f32.mrf.mxu0
    %v1690 = vadd.f32 %v1661, %v1689
    %1691 = vdwg.mxu0
    %1692 = vmatpush.bf16.msra.mxu0 %v1113
    %1693 = vmatpush.bf16.msra.mxu0 %v1109
    %1694 = vmatpush.bf16.msra.mxu0 %v1105
    %1695 = vmatpush.bf16.msra.mxu0 %v1101
    %1696 = vmatpush.bf16.msra.mxu0 %v1097
    %1697 = vmatpush.bf16.msra.mxu0 %v1093
    %1698 = vmatpush.bf16.msra.mxu0 %v1089
    %1699 = vmatpush.bf16.msra.mxu0 %v1085
    %1700 = vmatmul.bf16.gmra.mxu0 %v444
    %v1701 = vpop.f32.mrf.mxu0
    %v1702 = vadd.f32 %v349, %v1701
    %v1703 = vpop.f32.mrf.mxu0
    %v1704 = vadd.f32 %v349, %v1703
    %1705 = vmatmul.bf16.gmra.mxu0 %v451
    %v1706 = vpop.f32.mrf.mxu0
    %v1707 = vadd.f32 %v349, %v1706
    %v1708 = vpop.f32.mrf.mxu0
    %v1709 = vadd.f32 %v349, %v1708
    %1710 = vmatmul.bf16.gmra.mxu0 %v458
    %v1711 = vpop.f32.mrf.mxu0
    %v1712 = vadd.f32 %v349, %v1711
    %v1713 = vpop.f32.mrf.mxu0
    %v1714 = vadd.f32 %v349, %v1713
    %1715 = vmatmul.bf16.gmra.mxu0 %v465
    %v1716 = vpop.f32.mrf.mxu0
    %v1717 = vadd.f32 %v349, %v1716
    %v1718 = vpop.f32.mrf.mxu0
    %v1719 = vadd.f32 %v349, %v1718
    %1720 = vdwg.mxu0
    %1721 = vmatpush.bf16.msra.mxu0 %v1145
    %1722 = vmatpush.bf16.msra.mxu0 %v1141
    %1723 = vmatpush.bf16.msra.mxu0 %v1137
    %1724 = vmatpush.bf16.msra.mxu0 %v1133
    %1725 = vmatpush.bf16.msra.mxu0 %v1129
    %1726 = vmatpush.bf16.msra.mxu0 %v1125
    %1727 = vmatpush.bf16.msra.mxu0 %v1121
    %1728 = vmatpush.bf16.msra.mxu0 %v1117
    %1729 = vmatmul.bf16.gmra.mxu0 %v445
    %v1730 = vpop.f32.mrf.mxu0
    %v1731 = vadd.f32 %v1702, %v1730
    %v1732 = vpop.f32.mrf.mxu0
    %v1733 = vadd.f32 %v1704, %v1732
    %1734 = vmatmul.bf16.gmra.mxu0 %v452
    %v1735 = vpop.f32.mrf.mxu0
    %v1736 = vadd.f32 %v1707, %v1735
    %v1737 = vpop.f32.mrf.mxu0
    %v1738 = vadd.f32 %v1709, %v1737
    %1739 = vmatmul.bf16.gmra.mxu0 %v459
    %v1740 = vpop.f32.mrf.mxu0
    %v1741 = vadd.f32 %v1712, %v1740
    %v1742 = vpop.f32.mrf.mxu0
    %v1743 = vadd.f32 %v1714, %v1742
    %1744 = vmatmul.bf16.gmra.mxu0 %v466
    %v1745 = vpop.f32.mrf.mxu0
    %v1746 = vadd.f32 %v1717, %v1745
    %v1747 = vpop.f32.mrf.mxu0
    %v1748 = vadd.f32 %v1719, %v1747
    %1749 = vdwg.mxu0
    %1750 = vmatpush.bf16.msra.mxu0 %v1177
    %1751 = vmatpush.bf16.msra.mxu0 %v1173
    %1752 = vmatpush.bf16.msra.mxu0 %v1169
    %1753 = vmatpush.bf16.msra.mxu0 %v1165
    %1754 = vmatpush.bf16.msra.mxu0 %v1161
    %1755 = vmatpush.bf16.msra.mxu0 %v1157
    %1756 = vmatpush.bf16.msra.mxu0 %v1153
    %1757 = vmatpush.bf16.msra.mxu0 %v1149
    %1758 = vmatmul.bf16.gmra.mxu0 %v446
    %v1759 = vpop.f32.mrf.mxu0
    %v1760 = vadd.f32 %v1731, %v1759
    %v1761 = vpop.f32.mrf.mxu0
    %v1762 = vadd.f32 %v1733, %v1761
    %1763 = vmatmul.bf16.gmra.mxu0 %v453
    %v1764 = vpop.f32.mrf.mxu0
    %v1765 = vadd.f32 %v1736, %v1764
    %v1766 = vpop.f32.mrf.mxu0
    %v1767 = vadd.f32 %v1738, %v1766
    %1768 = vmatmul.bf16.gmra.mxu0 %v460
    %v1769 = vpop.f32.mrf.mxu0
    %v1770 = vadd.f32 %v1741, %v1769
    %v1771 = vpop.f32.mrf.mxu0
    %v1772 = vadd.f32 %v1743, %v1771
    %1773 = vmatmul.bf16.gmra.mxu0 %v467
    %v1774 = vpop.f32.mrf.mxu0
    %v1775 = vadd.f32 %v1746, %v1774
    %v1776 = vpop.f32.mrf.mxu0
    %v1777 = vadd.f32 %v1748, %v1776
    %1778 = vdwg.mxu0
    %1779 = vmatpush.bf16.msra.mxu0 %v1209
    %1780 = vmatpush.bf16.msra.mxu0 %v1205
    %1781 = vmatpush.bf16.msra.mxu0 %v1201
    %1782 = vmatpush.bf16.msra.mxu0 %v1197
    %1783 = vmatpush.bf16.msra.mxu0 %v1193
    %1784 = vmatpush.bf16.msra.mxu0 %v1189
    %1785 = vmatpush.bf16.msra.mxu0 %v1185
    %1786 = vmatpush.bf16.msra.mxu0 %v1181
    %1787 = vmatmul.bf16.gmra.mxu0 %v447
    %v1788 = vpop.f32.mrf.mxu0
    %v1789 = vadd.f32 %v1760, %v1788
    %v1790 = vpop.f32.mrf.mxu0
    %v1791 = vadd.f32 %v1762, %v1790
    %1792 = vmatmul.bf16.gmra.mxu0 %v454
    %v1793 = vpop.f32.mrf.mxu0
    %v1794 = vadd.f32 %v1765, %v1793
    %v1795 = vpop.f32.mrf.mxu0
    %v1796 = vadd.f32 %v1767, %v1795
    %1797 = vmatmul.bf16.gmra.mxu0 %v461
    %v1798 = vpop.f32.mrf.mxu0
    %v1799 = vadd.f32 %v1770, %v1798
    %v1800 = vpop.f32.mrf.mxu0
    %v1801 = vadd.f32 %v1772, %v1800
    %1802 = vmatmul.bf16.gmra.mxu0 %v468
    %v1803 = vpop.f32.mrf.mxu0
    %v1804 = vadd.f32 %v1775, %v1803
    %v1805 = vpop.f32.mrf.mxu0
    %v1806 = vadd.f32 %v1777, %v1805
    %1807 = vdwg.mxu0
    %1808 = vmatpush.bf16.msra.mxu0 %v1241
    %1809 = vmatpush.bf16.msra.mxu0 %v1237
    %1810 = vmatpush.bf16.msra.mxu0 %v1233
    %1811 = vmatpush.bf16.msra.mxu0 %v1229
    %1812 = vmatpush.bf16.msra.mxu0 %v1225
    %1813 = vmatpush.bf16.msra.mxu0 %v1221
    %1814 = vmatpush.bf16.msra.mxu0 %v1217
    %1815 = vmatpush.bf16.msra.mxu0 %v1213
    %1816 = vmatmul.bf16.gmra.mxu0 %v448
    %v1817 = vpop.f32.mrf.mxu0
    %v1818 = vadd.f32 %v1789, %v1817
    %v1819 = vpop.f32.mrf.mxu0
    %v1820 = vadd.f32 %v1791, %v1819
    %1821 = vmatmul.bf16.gmra.mxu0 %v455
    %v1822 = vpop.f32.mrf.mxu0
    %v1823 = vadd.f32 %v1794, %v1822
    %v1824 = vpop.f32.mrf.mxu0
    %v1825 = vadd.f32 %v1796, %v1824
    %1826 = vmatmul.bf16.gmra.mxu0 %v462
    %v1827 = vpop.f32.mrf.mxu0
    %v1828 = vadd.f32 %v1799, %v1827
    %v1829 = vpop.f32.mrf.mxu0
    %v1830 = vadd.f32 %v1801, %v1829
    %1831 = vmatmul.bf16.gmra.mxu0 %v469
    %v1832 = vpop.f32.mrf.mxu0
    %v1833 = vadd.f32 %v1804, %v1832
    %v1834 = vpop.f32.mrf.mxu0
    %v1835 = vadd.f32 %v1806, %v1834
    %1836 = vdwg.mxu0
    %1837 = vmatpush.bf16.msra.mxu0 %v1273
    %1838 = vmatpush.bf16.msra.mxu0 %v1269
    %1839 = vmatpush.bf16.msra.mxu0 %v1265
    %1840 = vmatpush.bf16.msra.mxu0 %v1261
    %1841 = vmatpush.bf16.msra.mxu0 %v1257
    %1842 = vmatpush.bf16.msra.mxu0 %v1253
    %1843 = vmatpush.bf16.msra.mxu0 %v1249
    %1844 = vmatpush.bf16.msra.mxu0 %v1245
    %1845 = vmatmul.bf16.gmra.mxu0 %v449
    %v1846 = vpop.f32.mrf.mxu0
    %v1847 = vadd.f32 %v1818, %v1846
    %v1848 = vpop.f32.mrf.mxu0
    %v1849 = vadd.f32 %v1820, %v1848
    %1850 = vmatmul.bf16.gmra.mxu0 %v456
    %v1851 = vpop.f32.mrf.mxu0
    %v1852 = vadd.f32 %v1823, %v1851
    %v1853 = vpop.f32.mrf.mxu0
    %v1854 = vadd.f32 %v1825, %v1853
    %1855 = vmatmul.bf16.gmra.mxu0 %v463
    %v1856 = vpop.f32.mrf.mxu0
    %v1857 = vadd.f32 %v1828, %v1856
    %v1858 = vpop.f32.mrf.mxu0
    %v1859 = vadd.f32 %v1830, %v1858
    %1860 = vmatmul.bf16.gmra.mxu0 %v470
    %v1861 = vpop.f32.mrf.mxu0
    %v1862 = vadd.f32 %v1833, %v1861
    %v1863 = vpop.f32.mrf.mxu0
    %v1864 = vadd.f32 %v1835, %v1863
    %1865 = vdwg.mxu0
    %1866 = vmatpush.bf16.msra.mxu0 0
    %1867 = vmatpush.bf16.msra.mxu0 0
    %1868 = vmatpush.bf16.msra.mxu0 0
    %1869 = vmatpush.bf16.msra.mxu0 0
    %1870 = vmatpush.bf16.msra.mxu0 0
    %1871 = vmatpush.bf16.msra.mxu0 0
    %1872 = vmatpush.bf16.msra.mxu0 0
    %1873 = vmatpush.bf16.msra.mxu0 %v1277
    %1874 = vmatmul.bf16.gmra.mxu0 %v1478
    %v1875 = vpop.f32.mrf.mxu0
    %v1876 = vadd.f32 %v1847, %v1875
    %v1877 = vpop.f32.mrf.mxu0
    %v1878 = vadd.f32 %v1849, %v1877
    %1879 = vmatmul.bf16.gmra.mxu0 %v1481
    %v1880 = vpop.f32.mrf.mxu0
    %v1881 = vadd.f32 %v1852, %v1880
    %v1882 = vpop.f32.mrf.mxu0
    %v1883 = vadd.f32 %v1854, %v1882
    %1884 = vmatmul.bf16.gmra.mxu0 %v1484
    %v1885 = vpop.f32.mrf.mxu0
    %v1886 = vadd.f32 %v1857, %v1885
    %v1887 = vpop.f32.mrf.mxu0
    %v1888 = vadd.f32 %v1859, %v1887
    %1889 = vmatmul.bf16.gmra.mxu0 %v1487
    %v1890 = vpop.f32.mrf.mxu0
    %v1891 = vadd.f32 %v1862, %v1890
    %v1892 = vpop.f32.mrf.mxu0
    %v1893 = vadd.f32 %v1864, %v1892
    %1894 = vdwg.mxu0
    %1895 = vmatpush.bf16.msra.mxu0 %v1114
    %1896 = vmatpush.bf16.msra.mxu0 %v1110
    %1897 = vmatpush.bf16.msra.mxu0 %v1106
    %1898 = vmatpush.bf16.msra.mxu0 %v1102
    %1899 = vmatpush.bf16.msra.mxu0 %v1098
    %1900 = vmatpush.bf16.msra.mxu0 %v1094
    %1901 = vmatpush.bf16.msra.mxu0 %v1090
    %1902 = vmatpush.bf16.msra.mxu0 %v1086
    %1903 = vmatmul.bf16.gmra.mxu0 %v444
    %v1904 = vpop.f32.mrf.mxu0
    %v1905 = vadd.f32 %v350, %v1904
    %v1906 = vpop.f32.mrf.mxu0
    %v1907 = vadd.f32 %v350, %v1906
    %1908 = vmatmul.bf16.gmra.mxu0 %v451
    %v1909 = vpop.f32.mrf.mxu0
    %v1910 = vadd.f32 %v350, %v1909
    %v1911 = vpop.f32.mrf.mxu0
    %v1912 = vadd.f32 %v350, %v1911
    %1913 = vmatmul.bf16.gmra.mxu0 %v458
    %v1914 = vpop.f32.mrf.mxu0
    %v1915 = vadd.f32 %v350, %v1914
    %v1916 = vpop.f32.mrf.mxu0
    %v1917 = vadd.f32 %v350, %v1916
    %1918 = vmatmul.bf16.gmra.mxu0 %v465
    %v1919 = vpop.f32.mrf.mxu0
    %v1920 = vadd.f32 %v350, %v1919
    %v1921 = vpop.f32.mrf.mxu0
    %v1922 = vadd.f32 %v350, %v1921
    %1923 = vdwg.mxu0
    %1924 = vmatpush.bf16.msra.mxu0 %v1146
    %1925 = vmatpush.bf16.msra.mxu0 %v1142
    %1926 = vmatpush.bf16.msra.mxu0 %v1138
    %1927 = vmatpush.bf16.msra.mxu0 %v1134
    %1928 = vmatpush.bf16.msra.mxu0 %v1130
    %1929 = vmatpush.bf16.msra.mxu0 %v1126
    %1930 = vmatpush.bf16.msra.mxu0 %v1122
    %1931 = vmatpush.bf16.msra.mxu0 %v1118
    %1932 = vmatmul.bf16.gmra.mxu0 %v445
    %v1933 = vpop.f32.mrf.mxu0
    %v1934 = vadd.f32 %v1905, %v1933
    %v1935 = vpop.f32.mrf.mxu0
    %v1936 = vadd.f32 %v1907, %v1935
    %1937 = vmatmul.bf16.gmra.mxu0 %v452
    %v1938 = vpop.f32.mrf.mxu0
    %v1939 = vadd.f32 %v1910, %v1938
    %v1940 = vpop.f32.mrf.mxu0
    %v1941 = vadd.f32 %v1912, %v1940
    %1942 = vmatmul.bf16.gmra.mxu0 %v459
    %v1943 = vpop.f32.mrf.mxu0
    %v1944 = vadd.f32 %v1915, %v1943
    %v1945 = vpop.f32.mrf.mxu0
    %v1946 = vadd.f32 %v1917, %v1945
    %1947 = vmatmul.bf16.gmra.mxu0 %v466
    %v1948 = vpop.f32.mrf.mxu0
    %v1949 = vadd.f32 %v1920, %v1948
    %v1950 = vpop.f32.mrf.mxu0
    %v1951 = vadd.f32 %v1922, %v1950
    %1952 = vdwg.mxu0
    %1953 = vmatpush.bf16.msra.mxu0 %v1178
    %1954 = vmatpush.bf16.msra.mxu0 %v1174
    %1955 = vmatpush.bf16.msra.mxu0 %v1170
    %1956 = vmatpush.bf16.msra.mxu0 %v1166
    %1957 = vmatpush.bf16.msra.mxu0 %v1162
    %1958 = vmatpush.bf16.msra.mxu0 %v1158
    %1959 = vmatpush.bf16.msra.mxu0 %v1154
    %1960 = vmatpush.bf16.msra.mxu0 %v1150
    %1961 = vmatmul.bf16.gmra.mxu0 %v446
    %v1962 = vpop.f32.mrf.mxu0
    %v1963 = vadd.f32 %v1934, %v1962
    %v1964 = vpop.f32.mrf.mxu0
    %v1965 = vadd.f32 %v1936, %v1964
    %1966 = vmatmul.bf16.gmra.mxu0 %v453
    %v1967 = vpop.f32.mrf.mxu0
    %v1968 = vadd.f32 %v1939, %v1967
    %v1969 = vpop.f32.mrf.mxu0
    %v1970 = vadd.f32 %v1941, %v1969
    %1971 = vmatmul.bf16.gmra.mxu0 %v460
    %v1972 = vpop.f32.mrf.mxu0
    %v1973 = vadd.f32 %v1944, %v1972
    %v1974 = vpop.f32.mrf.mxu0
    %v1975 = vadd.f32 %v1946, %v1974
    %1976 = vmatmul.bf16.gmra.mxu0 %v467
    %v1977 = vpop.f32.mrf.mxu0
    %v1978 = vadd.f32 %v1949, %v1977
    %v1979 = vpop.f32.mrf.mxu0
    %v1980 = vadd.f32 %v1951, %v1979
    %1981 = vdwg.mxu0
    %1982 = vmatpush.bf16.msra.mxu0 %v1210
    %1983 = vmatpush.bf16.msra.mxu0 %v1206
    %1984 = vmatpush.bf16.msra.mxu0 %v1202
    %1985 = vmatpush.bf16.msra.mxu0 %v1198
    %1986 = vmatpush.bf16.msra.mxu0 %v1194
    %1987 = vmatpush.bf16.msra.mxu0 %v1190
    %1988 = vmatpush.bf16.msra.mxu0 %v1186
    %1989 = vmatpush.bf16.msra.mxu0 %v1182
    %1990 = vmatmul.bf16.gmra.mxu0 %v447
    %v1991 = vpop.f32.mrf.mxu0
    %v1992 = vadd.f32 %v1963, %v1991
    %v1993 = vpop.f32.mrf.mxu0
    %v1994 = vadd.f32 %v1965, %v1993
    %1995 = vmatmul.bf16.gmra.mxu0 %v454
    %v1996 = vpop.f32.mrf.mxu0
    %v1997 = vadd.f32 %v1968, %v1996
    %v1998 = vpop.f32.mrf.mxu0
    %v1999 = vadd.f32 %v1970, %v1998
    %2000 = vmatmul.bf16.gmra.mxu0 %v461
    %v2001 = vpop.f32.mrf.mxu0
    %v2002 = vadd.f32 %v1973, %v2001
    %v2003 = vpop.f32.mrf.mxu0
    %v2004 = vadd.f32 %v1975, %v2003
    %2005 = vmatmul.bf16.gmra.mxu0 %v468
    %v2006 = vpop.f32.mrf.mxu0
    %v2007 = vadd.f32 %v1978, %v2006
    %v2008 = vpop.f32.mrf.mxu0
    %v2009 = vadd.f32 %v1980, %v2008
    %2010 = vdwg.mxu0
    %2011 = vmatpush.bf16.msra.mxu0 %v1242
    %2012 = vmatpush.bf16.msra.mxu0 %v1238
    %2013 = vmatpush.bf16.msra.mxu0 %v1234
    %2014 = vmatpush.bf16.msra.mxu0 %v1230
    %2015 = vmatpush.bf16.msra.mxu0 %v1226
    %2016 = vmatpush.bf16.msra.mxu0 %v1222
    %2017 = vmatpush.bf16.msra.mxu0 %v1218
    %2018 = vmatpush.bf16.msra.mxu0 %v1214
    %2019 = vmatmul.bf16.gmra.mxu0 %v448
    %v2020 = vpop.f32.mrf.mxu0
    %v2021 = vadd.f32 %v1992, %v2020
    %v2022 = vpop.f32.mrf.mxu0
    %v2023 = vadd.f32 %v1994, %v2022
    %2024 = vmatmul.bf16.gmra.mxu0 %v455
    %v2025 = vpop.f32.mrf.mxu0
    %v2026 = vadd.f32 %v1997, %v2025
    %v2027 = vpop.f32.mrf.mxu0
    %v2028 = vadd.f32 %v1999, %v2027
    %2029 = vmatmul.bf16.gmra.mxu0 %v462
    %v2030 = vpop.f32.mrf.mxu0
    %v2031 = vadd.f32 %v2002, %v2030
    %v2032 = vpop.f32.mrf.mxu0
    %v2033 = vadd.f32 %v2004, %v2032
    %2034 = vmatmul.bf16.gmra.mxu0 %v469
    %v2035 = vpop.f32.mrf.mxu0
    %v2036 = vadd.f32 %v2007, %v2035
    %v2037 = vpop.f32.mrf.mxu0
    %v2038 = vadd.f32 %v2009, %v2037
    %2039 = vdwg.mxu0
    %2040 = vmatpush.bf16.msra.mxu0 %v1274
    %2041 = vmatpush.bf16.msra.mxu0 %v1270
    %2042 = vmatpush.bf16.msra.mxu0 %v1266
    %2043 = vmatpush.bf16.msra.mxu0 %v1262
    %2044 = vmatpush.bf16.msra.mxu0 %v1258
    %2045 = vmatpush.bf16.msra.mxu0 %v1254
    %2046 = vmatpush.bf16.msra.mxu0 %v1250
    %2047 = vmatpush.bf16.msra.mxu0 %v1246
    %2048 = vmatmul.bf16.gmra.mxu0 %v449
    %v2049 = vpop.f32.mrf.mxu0
    %v2050 = vadd.f32 %v2021, %v2049
    %v2051 = vpop.f32.mrf.mxu0
    %v2052 = vadd.f32 %v2023, %v2051
    %2053 = vmatmul.bf16.gmra.mxu0 %v456
    %v2054 = vpop.f32.mrf.mxu0
    %v2055 = vadd.f32 %v2026, %v2054
    %v2056 = vpop.f32.mrf.mxu0
    %v2057 = vadd.f32 %v2028, %v2056
    %2058 = vmatmul.bf16.gmra.mxu0 %v463
    %v2059 = vpop.f32.mrf.mxu0
    %v2060 = vadd.f32 %v2031, %v2059
    %v2061 = vpop.f32.mrf.mxu0
    %v2062 = vadd.f32 %v2033, %v2061
    %2063 = vmatmul.bf16.gmra.mxu0 %v470
    %v2064 = vpop.f32.mrf.mxu0
    %v2065 = vadd.f32 %v2036, %v2064
    %v2066 = vpop.f32.mrf.mxu0
    %v2067 = vadd.f32 %v2038, %v2066
    %2068 = vdwg.mxu0
    %2069 = vmatpush.bf16.msra.mxu0 0
    %2070 = vmatpush.bf16.msra.mxu0 0
    %2071 = vmatpush.bf16.msra.mxu0 0
    %2072 = vmatpush.bf16.msra.mxu0 0
    %2073 = vmatpush.bf16.msra.mxu0 0
    %2074 = vmatpush.bf16.msra.mxu0 0
    %2075 = vmatpush.bf16.msra.mxu0 0
    %2076 = vmatpush.bf16.msra.mxu0 %v1278
    %2077 = vmatmul.bf16.gmra.mxu0 %v1478
    %v2078 = vpop.f32.mrf.mxu0
    %v2079 = vadd.f32 %v2050, %v2078
    %v2080 = vpop.f32.mrf.mxu0
    %v2081 = vadd.f32 %v2052, %v2080
    %2082 = vmatmul.bf16.gmra.mxu0 %v1481
    %v2083 = vpop.f32.mrf.mxu0
    %v2084 = vadd.f32 %v2055, %v2083
    %v2085 = vpop.f32.mrf.mxu0
    %v2086 = vadd.f32 %v2057, %v2085
    %2087 = vmatmul.bf16.gmra.mxu0 %v1484
    %v2088 = vpop.f32.mrf.mxu0
    %v2089 = vadd.f32 %v2060, %v2088
    %v2090 = vpop.f32.mrf.mxu0
    %v2091 = vadd.f32 %v2062, %v2090
    %2092 = vmatmul.bf16.gmra.mxu0 %v1487
    %v2093 = vpop.f32.mrf.mxu0
    %v2094 = vadd.f32 %v2065, %v2093
    %v2095 = vpop.f32.mrf.mxu0
    %v2096 = vadd.f32 %v2067, %v2095
    %2097 = vdwg.mxu0
    %2098 = vmatpush.bf16.msra.mxu0 %v1115
    %2099 = vmatpush.bf16.msra.mxu0 %v1111
    %2100 = vmatpush.bf16.msra.mxu0 %v1107
    %2101 = vmatpush.bf16.msra.mxu0 %v1103
    %2102 = vmatpush.bf16.msra.mxu0 %v1099
    %2103 = vmatpush.bf16.msra.mxu0 %v1095
    %2104 = vmatpush.bf16.msra.mxu0 %v1091
    %2105 = vmatpush.bf16.msra.mxu0 %v1087
    %2106 = vmatmul.bf16.gmra.mxu0 %v444
    %v2107 = vpop.f32.mrf.mxu0
    %v2108 = vadd.f32 %v351, %v2107
    %v2109 = vpop.f32.mrf.mxu0
    %v2110 = vadd.f32 %v351, %v2109
    %2111 = vmatmul.bf16.gmra.mxu0 %v451
    %v2112 = vpop.f32.mrf.mxu0
    %v2113 = vadd.f32 %v351, %v2112
    %v2114 = vpop.f32.mrf.mxu0
    %v2115 = vadd.f32 %v351, %v2114
    %2116 = vmatmul.bf16.gmra.mxu0 %v458
    %v2117 = vpop.f32.mrf.mxu0
    %v2118 = vadd.f32 %v351, %v2117
    %v2119 = vpop.f32.mrf.mxu0
    %v2120 = vadd.f32 %v351, %v2119
    %2121 = vmatmul.bf16.gmra.mxu0 %v465
    %v2122 = vpop.f32.mrf.mxu0
    %v2123 = vadd.f32 %v351, %v2122
    %v2124 = vpop.f32.mrf.mxu0
    %v2125 = vadd.f32 %v351, %v2124
    %2126 = vdwg.mxu0
    %2127 = vmatpush.bf16.msra.mxu0 %v1147
    %2128 = vmatpush.bf16.msra.mxu0 %v1143
    %2129 = vmatpush.bf16.msra.mxu0 %v1139
    %2130 = vmatpush.bf16.msra.mxu0 %v1135
    %2131 = vmatpush.bf16.msra.mxu0 %v1131
    %2132 = vmatpush.bf16.msra.mxu0 %v1127
    %2133 = vmatpush.bf16.msra.mxu0 %v1123
    %2134 = vmatpush.bf16.msra.mxu0 %v1119
    %2135 = vmatmul.bf16.gmra.mxu0 %v445
    %v2136 = vpop.f32.mrf.mxu0
    %v2137 = vadd.f32 %v2108, %v2136
    %v2138 = vpop.f32.mrf.mxu0
    %v2139 = vadd.f32 %v2110, %v2138
    %2140 = vmatmul.bf16.gmra.mxu0 %v452
    %v2141 = vpop.f32.mrf.mxu0
    %v2142 = vadd.f32 %v2113, %v2141
    %v2143 = vpop.f32.mrf.mxu0
    %v2144 = vadd.f32 %v2115, %v2143
    %2145 = vmatmul.bf16.gmra.mxu0 %v459
    %v2146 = vpop.f32.mrf.mxu0
    %v2147 = vadd.f32 %v2118, %v2146
    %v2148 = vpop.f32.mrf.mxu0
    %v2149 = vadd.f32 %v2120, %v2148
    %2150 = vmatmul.bf16.gmra.mxu0 %v466
    %v2151 = vpop.f32.mrf.mxu0
    %v2152 = vadd.f32 %v2123, %v2151
    %v2153 = vpop.f32.mrf.mxu0
    %v2154 = vadd.f32 %v2125, %v2153
    %2155 = vdwg.mxu0
    %2156 = vmatpush.bf16.msra.mxu0 %v1179
    %2157 = vmatpush.bf16.msra.mxu0 %v1175
    %2158 = vmatpush.bf16.msra.mxu0 %v1171
    %2159 = vmatpush.bf16.msra.mxu0 %v1167
    %2160 = vmatpush.bf16.msra.mxu0 %v1163
    %2161 = vmatpush.bf16.msra.mxu0 %v1159
    %2162 = vmatpush.bf16.msra.mxu0 %v1155
    %2163 = vmatpush.bf16.msra.mxu0 %v1151
    %2164 = vmatmul.bf16.gmra.mxu0 %v446
    %v2165 = vpop.f32.mrf.mxu0
    %v2166 = vadd.f32 %v2137, %v2165
    %v2167 = vpop.f32.mrf.mxu0
    %v2168 = vadd.f32 %v2139, %v2167
    %2169 = vmatmul.bf16.gmra.mxu0 %v453
    %v2170 = vpop.f32.mrf.mxu0
    %v2171 = vadd.f32 %v2142, %v2170
    %v2172 = vpop.f32.mrf.mxu0
    %v2173 = vadd.f32 %v2144, %v2172
    %2174 = vmatmul.bf16.gmra.mxu0 %v460
    %v2175 = vpop.f32.mrf.mxu0
    %v2176 = vadd.f32 %v2147, %v2175
    %v2177 = vpop.f32.mrf.mxu0
    %v2178 = vadd.f32 %v2149, %v2177
    %2179 = vmatmul.bf16.gmra.mxu0 %v467
    %v2180 = vpop.f32.mrf.mxu0
    %v2181 = vadd.f32 %v2152, %v2180
    %v2182 = vpop.f32.mrf.mxu0
    %v2183 = vadd.f32 %v2154, %v2182
    %2184 = vdwg.mxu0
    %2185 = vmatpush.bf16.msra.mxu0 %v1211
    %2186 = vmatpush.bf16.msra.mxu0 %v1207
    %2187 = vmatpush.bf16.msra.mxu0 %v1203
    %2188 = vmatpush.bf16.msra.mxu0 %v1199
    %2189 = vmatpush.bf16.msra.mxu0 %v1195
    %2190 = vmatpush.bf16.msra.mxu0 %v1191
    %2191 = vmatpush.bf16.msra.mxu0 %v1187
    %2192 = vmatpush.bf16.msra.mxu0 %v1183
    %2193 = vmatmul.bf16.gmra.mxu0 %v447
    %v2194 = vpop.f32.mrf.mxu0
    %v2195 = vadd.f32 %v2166, %v2194
    %v2196 = vpop.f32.mrf.mxu0
    %v2197 = vadd.f32 %v2168, %v2196
    %2198 = vmatmul.bf16.gmra.mxu0 %v454
    %v2199 = vpop.f32.mrf.mxu0
    %v2200 = vadd.f32 %v2171, %v2199
    %v2201 = vpop.f32.mrf.mxu0
    %v2202 = vadd.f32 %v2173, %v2201
    %2203 = vmatmul.bf16.gmra.mxu0 %v461
    %v2204 = vpop.f32.mrf.mxu0
    %v2205 = vadd.f32 %v2176, %v2204
    %v2206 = vpop.f32.mrf.mxu0
    %v2207 = vadd.f32 %v2178, %v2206
    %2208 = vmatmul.bf16.gmra.mxu0 %v468
    %v2209 = vpop.f32.mrf.mxu0
    %v2210 = vadd.f32 %v2181, %v2209
    %v2211 = vpop.f32.mrf.mxu0
    %v2212 = vadd.f32 %v2183, %v2211
    %2213 = vdwg.mxu0
    %2214 = vmatpush.bf16.msra.mxu0 %v1243
    %2215 = vmatpush.bf16.msra.mxu0 %v1239
    %2216 = vmatpush.bf16.msra.mxu0 %v1235
    %2217 = vmatpush.bf16.msra.mxu0 %v1231
    %2218 = vmatpush.bf16.msra.mxu0 %v1227
    %2219 = vmatpush.bf16.msra.mxu0 %v1223
    %2220 = vmatpush.bf16.msra.mxu0 %v1219
    %2221 = vmatpush.bf16.msra.mxu0 %v1215
    %2222 = vmatmul.bf16.gmra.mxu0 %v448
    %v2223 = vpop.f32.mrf.mxu0
    %v2224 = vadd.f32 %v2195, %v2223
    %v2225 = vpop.f32.mrf.mxu0
    %v2226 = vadd.f32 %v2197, %v2225
    %2227 = vmatmul.bf16.gmra.mxu0 %v455
    %v2228 = vpop.f32.mrf.mxu0
    %v2229 = vadd.f32 %v2200, %v2228
    %v2230 = vpop.f32.mrf.mxu0
    %v2231 = vadd.f32 %v2202, %v2230
    %2232 = vmatmul.bf16.gmra.mxu0 %v462
    %v2233 = vpop.f32.mrf.mxu0
    %v2234 = vadd.f32 %v2205, %v2233
    %v2235 = vpop.f32.mrf.mxu0
    %v2236 = vadd.f32 %v2207, %v2235
    %2237 = vmatmul.bf16.gmra.mxu0 %v469
    %v2238 = vpop.f32.mrf.mxu0
    %v2239 = vadd.f32 %v2210, %v2238
    %v2240 = vpop.f32.mrf.mxu0
    %v2241 = vadd.f32 %v2212, %v2240
    %2242 = vdwg.mxu0
    %2243 = vmatpush.bf16.msra.mxu0 %v1275
    %2244 = vmatpush.bf16.msra.mxu0 %v1271
    %2245 = vmatpush.bf16.msra.mxu0 %v1267
    %2246 = vmatpush.bf16.msra.mxu0 %v1263
    %2247 = vmatpush.bf16.msra.mxu0 %v1259
    %2248 = vmatpush.bf16.msra.mxu0 %v1255
    %2249 = vmatpush.bf16.msra.mxu0 %v1251
    %2250 = vmatpush.bf16.msra.mxu0 %v1247
    %2251 = vmatmul.bf16.gmra.mxu0 %v449
    %v2252 = vpop.f32.mrf.mxu0
    %v2253 = vadd.f32 %v2224, %v2252
    %v2254 = vpop.f32.mrf.mxu0
    %v2255 = vadd.f32 %v2226, %v2254
    %2256 = vmatmul.bf16.gmra.mxu0 %v456
    %v2257 = vpop.f32.mrf.mxu0
    %v2258 = vadd.f32 %v2229, %v2257
    %v2259 = vpop.f32.mrf.mxu0
    %v2260 = vadd.f32 %v2231, %v2259
    %2261 = vmatmul.bf16.gmra.mxu0 %v463
    %v2262 = vpop.f32.mrf.mxu0
    %v2263 = vadd.f32 %v2234, %v2262
    %v2264 = vpop.f32.mrf.mxu0
    %v2265 = vadd.f32 %v2236, %v2264
    %2266 = vmatmul.bf16.gmra.mxu0 %v470
    %v2267 = vpop.f32.mrf.mxu0
    %v2268 = vadd.f32 %v2239, %v2267
    %v2269 = vpop.f32.mrf.mxu0
    %v2270 = vadd.f32 %v2241, %v2269
    %2271 = vdwg.mxu0
    %2272 = vmatpush.bf16.msra.mxu0 0
    %2273 = vmatpush.bf16.msra.mxu0 0
    %2274 = vmatpush.bf16.msra.mxu0 0
    %2275 = vmatpush.bf16.msra.mxu0 0
    %2276 = vmatpush.bf16.msra.mxu0 0
    %2277 = vmatpush.bf16.msra.mxu0 0
    %2278 = vmatpush.bf16.msra.mxu0 0
    %2279 = vmatpush.bf16.msra.mxu0 %v1279
    %2280 = vmatmul.bf16.gmra.mxu0 %v1478
    %v2281 = vpop.f32.mrf.mxu0
    %v2282 = vadd.f32 %v2253, %v2281
    %v2283 = vpop.f32.mrf.mxu0
    %v2284 = vadd.f32 %v2255, %v2283
    %2285 = vmatmul.bf16.gmra.mxu0 %v1481
    %v2286 = vpop.f32.mrf.mxu0
    %v2287 = vadd.f32 %v2258, %v2286
    %v2288 = vpop.f32.mrf.mxu0
    %v2289 = vadd.f32 %v2260, %v2288
    %2290 = vmatmul.bf16.gmra.mxu0 %v1484
    %v2291 = vpop.f32.mrf.mxu0
    %v2292 = vadd.f32 %v2263, %v2291
    %v2293 = vpop.f32.mrf.mxu0
    %v2294 = vadd.f32 %v2265, %v2293
    %2295 = vmatmul.bf16.gmra.mxu0 %v1487
    %v2296 = vpop.f32.mrf.mxu0
    %v2297 = vadd.f32 %v2268, %v2296
    %v2298 = vpop.f32.mrf.mxu0
    %v2299 = vadd.f32 %v2270, %v2298
    %2300 = vdwg.mxu0
    %v2301 = vmax.f32 %v1673, 0.0
    %v2302 = vmax.f32 %v1876, 0.0
    %v2303 = vmax.f32 %v2079, 0.0
    %v2304 = vmax.f32 %v2282, 0.0
    %v2305 = vmax.f32 %v1675, 0.0
    %v2306 = vmax.f32 %v1878, 0.0
    %v2307 = vmax.f32 %v2081, 0.0
    %v2308 = vmax.f32 %v2284, 0.0
    %v2309 = vmax.f32 %v1678, 0.0
    %v2310 = vmax.f32 %v1881, 0.0
    %v2311 = vmax.f32 %v2084, 0.0
    %v2312 = vmax.f32 %v2287, 0.0
    %v2313 = vmax.f32 %v1680, 0.0
    %v2314 = vmax.f32 %v1883, 0.0
    %v2315 = vmax.f32 %v2086, 0.0
    %v2316 = vmax.f32 %v2289, 0.0
    %v2317 = vmax.f32 %v1683, 0.0
    %v2318 = vmax.f32 %v1886, 0.0
    %v2319 = vmax.f32 %v2089, 0.0
    %v2320 = vmax.f32 %v2292, 0.0
    %v2321 = vmax.f32 %v1685, 0.0
    %v2322 = vmax.f32 %v1888, 0.0
    %v2323 = vmax.f32 %v2091, 0.0
    %v2324 = vmax.f32 %v2294, 0.0
    %v2325 = vmax.f32 %v1688, 0.0
    %v2326 = vmax.f32 %v1891, 0.0
    %v2327 = vmax.f32 %v2094, 0.0
    %v2328 = vmax.f32 %v2297, 0.0
    %v2329 = vmax.f32 %v1690, 0.0
    %v2330 = vmax.f32 %v1893, 0.0
    %v2331 = vmax.f32 %v2096, 0.0
    %v2332 = vmax.f32 %v2299, 0.0
    %v2333 = vpack.c.bf16 %v2305, %v2301
    %v2334 = vpack.c.bf16 %v2306, %v2302
    %v2335 = vpack.c.bf16 %v2307, %v2303
    %v2336 = vpack.c.bf16 %v2308, %v2304
    %v2337 = vpack.c.bf16 %v2313, %v2309
    %v2338 = vpack.c.bf16 %v2314, %v2310
    %v2339 = vpack.c.bf16 %v2315, %v2311
    %v2340 = vpack.c.bf16 %v2316, %v2312
    %v2341 = vpack.c.bf16 %v2321, %v2317
    %v2342 = vpack.c.bf16 %v2322, %v2318
    %v2343 = vpack.c.bf16 %v2323, %v2319
    %v2344 = vpack.c.bf16 %v2324, %v2320
    %v2345 = vpack.c.bf16 %v2329, %v2325
    %v2346 = vpack.c.bf16 %v2330, %v2326
    %v2347 = vpack.c.bf16 %v2331, %v2327
    %v2348 = vpack.c.bf16 %v2332, %v2328
    %v2349 = vld [vmem:[#allocation8] sm:$0xff]
    %v2350 = vld [vmem:[#allocation8 + $0x8] sm:$0xff]
    %v2351 = vld [vmem:[#allocation8 + $0x10] sm:$0xff]
    %v2352 = vld [vmem:[#allocation8 + $0x18] sm:$0xff]
    %v2353 = vld [vmem:[#allocation8 + $0x20] sm:$0xff]
    %v2354 = vld [vmem:[#allocation8 + $0x28] sm:$0xff]
    %v2355 = vld [vmem:[#allocation8 + $0x30] sm:$0xff]
    %v2356 = vld [vmem:[#allocation8 + $0x38] sm:$0xff]
    %v2357 = vld [vmem:[#allocation8 + $0x40] sm:$0xff]
    %v2358 = vld [vmem:[#allocation8 + $0x48] sm:$0xff]
    %v2359 = vld [vmem:[#allocation8 + $0x50] sm:$0xff]
    %v2360 = vld [vmem:[#allocation8 + $0x58] sm:$0xff]
    %v2361 = vld [vmem:[#allocation8 + $0x60] sm:$0xff]
    %v2362 = vld [vmem:[#allocation8 + $0x68] sm:$0xff]
    %v2363 = vld [vmem:[#allocation8 + $0x70] sm:$0xff]
    %v2364 = vld [vmem:[#allocation8 + $0x78] sm:$0xff]
    %v2365 = vld [vmem:[#allocation8 + $0x80] sm:$0xff]
    %v2366 = vld [vmem:[#allocation8 + $0x88] sm:$0xff]
    %v2367 = vld [vmem:[#allocation8 + $0x90] sm:$0xff]
    %v2368 = vld [vmem:[#allocation8 + $0x98] sm:$0xff]
    %v2369 = vld [vmem:[#allocation8 + $0xa0] sm:$0xff]
    %v2370 = vld [vmem:[#allocation8 + $0xa8] sm:$0xff]
    %v2371 = vld [vmem:[#allocation8 + $0xb0] sm:$0xff]
    %v2372 = vld [vmem:[#allocation8 + $0xb8] sm:$0xff]
    %v2373 = vld [vmem:[#allocation8 + $0xc0] sm:$0xff]
    %v2374 = vld [vmem:[#allocation8 + $0xc8] sm:$0xff]
    %v2375 = vld [vmem:[#allocation8 + $0xd0] sm:$0xff]
    %v2376 = vld [vmem:[#allocation8 + $0xd8] sm:$0xff]
    %v2377 = vld [vmem:[#allocation8 + $0xe0] sm:$0xff]
    %v2378 = vld [vmem:[#allocation8 + $0xe8] sm:$0xff]
    %v2379 = vld [vmem:[#allocation8 + $0xf0] sm:$0xff]
    %v2380 = vld [vmem:[#allocation8 + $0xf8] sm:$0xff]
    %v2381 = vld [vmem:[#allocation8 + $0x100] sm:$0xff]
    %v2382 = vld [vmem:[#allocation8 + $0x108] sm:$0xff]
    %v2383 = vld [vmem:[#allocation8 + $0x110] sm:$0xff]
    %v2384 = vld [vmem:[#allocation8 + $0x118] sm:$0xff]
    %v2385 = vld [vmem:[#allocation8 + $0x120] sm:$0xff]
    %v2386 = vld [vmem:[#allocation8 + $0x128] sm:$0xff]
    %v2387 = vld [vmem:[#allocation8 + $0x130] sm:$0xff]
    %v2388 = vld [vmem:[#allocation8 + $0x138] sm:$0xff]
    %v2389 = vld [vmem:[#allocation8 + $0x140] sm:$0xff]
    %v2390 = vld [vmem:[#allocation8 + $0x148] sm:$0xff]
    %v2391 = vld [vmem:[#allocation8 + $0x150] sm:$0xff]
    %v2392 = vld [vmem:[#allocation8 + $0x158] sm:$0xff]
    %v2393 = vld [vmem:[#allocation8 + $0x160] sm:$0xff]
    %v2394 = vld [vmem:[#allocation8 + $0x168] sm:$0xff]
    %v2395 = vld [vmem:[#allocation8 + $0x170] sm:$0xff]
    %v2396 = vld [vmem:[#allocation8 + $0x178] sm:$0xff]
    %v2397 = vld [vmem:[#allocation8 + $0x180] sm:$0xff]
    %v2398 = vld [vmem:[#allocation8 + $0x188] sm:$0xff]
    %v2399 = vld [vmem:[#allocation8 + $0x190] sm:$0xff]
    %v2400 = vld [vmem:[#allocation8 + $0x198] sm:$0xff]
    %v2401 = vld [vmem:[#allocation8 + $0x1a0] sm:$0xff]
    %v2402 = vld [vmem:[#allocation8 + $0x1a8] sm:$0xff]
    %v2403 = vld [vmem:[#allocation8 + $0x1b0] sm:$0xff]
    %v2404 = vld [vmem:[#allocation8 + $0x1b8] sm:$0xff]
    %v2405 = vld [vmem:[#allocation8 + $0x1c0] sm:$0xff]
    %v2406 = vld [vmem:[#allocation8 + $0x1c8] sm:$0xff]
    %v2407 = vld [vmem:[#allocation8 + $0x1d0] sm:$0xff]
    %v2408 = vld [vmem:[#allocation8 + $0x1d8] sm:$0xff]
    %v2409 = vld [vmem:[#allocation8 + $0x1e0] sm:$0xff]
    %v2410 = vld [vmem:[#allocation8 + $0x1e8] sm:$0xff]
    %v2411 = vld [vmem:[#allocation8 + $0x1f0] sm:$0xff]
    %v2412 = vld [vmem:[#allocation8 + $0x1f8] sm:$0xff]
    %v2413 = vld [vmem:[#allocation8 + $0x200] sm:$0xff]
    %v2414 = vld [vmem:[#allocation8 + $0x208] sm:$0xff]
    %v2415 = vld [vmem:[#allocation8 + $0x210] sm:$0xff]
    %v2416 = vld [vmem:[#allocation8 + $0x218] sm:$0xff]
    %v2417 = vld [vmem:[#allocation8 + $0x220] sm:$0xff]
    %v2418 = vld [vmem:[#allocation8 + $0x228] sm:$0xff]
    %v2419 = vld [vmem:[#allocation8 + $0x230] sm:$0xff]
    %v2420 = vld [vmem:[#allocation8 + $0x238] sm:$0xff]
    %v2421 = vld [vmem:[#allocation8 + $0x240] sm:$0xff]
    %v2422 = vld [vmem:[#allocation8 + $0x248] sm:$0xff]
    %v2423 = vld [vmem:[#allocation8 + $0x250] sm:$0xff]
    %v2424 = vld [vmem:[#allocation8 + $0x258] sm:$0xff]
    %v2425 = vld [vmem:[#allocation8 + $0x260] sm:$0xff]
    %v2426 = vld [vmem:[#allocation8 + $0x268] sm:$0xff]
    %v2427 = vld [vmem:[#allocation8 + $0x270] sm:$0xff]
    %v2428 = vld [vmem:[#allocation8 + $0x278] sm:$0xff]
    %v2429 = vld [vmem:[#allocation8 + $0x280] sm:$0xff]
    %v2430 = vld [vmem:[#allocation8 + $0x288] sm:$0xff]
    %v2431 = vld [vmem:[#allocation8 + $0x290] sm:$0xff]
    %v2432 = vld [vmem:[#allocation8 + $0x298] sm:$0xff]
    %v2433 = vld [vmem:[#allocation8 + $0x2a0] sm:$0xff]
    %v2434 = vld [vmem:[#allocation8 + $0x2a8] sm:$0xff]
    %v2435 = vld [vmem:[#allocation8 + $0x2b0] sm:$0xff]
    %v2436 = vld [vmem:[#allocation8 + $0x2b8] sm:$0xff]
    %v2437 = vld [vmem:[#allocation8 + $0x2c0] sm:$0xff]
    %v2438 = vld [vmem:[#allocation8 + $0x2c8] sm:$0xff]
    %v2439 = vld [vmem:[#allocation8 + $0x2d0] sm:$0xff]
    %v2440 = vld [vmem:[#allocation8 + $0x2d8] sm:$0xff]
    %v2441 = vld [vmem:[#allocation8 + $0x2e0] sm:$0xff]
    %v2442 = vld [vmem:[#allocation8 + $0x2e8] sm:$0xff]
    %v2443 = vld [vmem:[#allocation8 + $0x2f0] sm:$0xff]
    %v2444 = vld [vmem:[#allocation8 + $0x2f8] sm:$0xff]
    %v2445 = vld [vmem:[#allocation8 + $0x300] sm:$0xff]
    %v2446 = vld [vmem:[#allocation8 + $0x308] sm:$0xff]
    %v2447 = vld [vmem:[#allocation8 + $0x310] sm:$0xff]
    %v2448 = vld [vmem:[#allocation8 + $0x318] sm:$0xff]
    %v2449 = vld [vmem:[#allocation8 + $0x320] sm:$0xff]
    %v2450 = vld [vmem:[#allocation8 + $0x328] sm:$0xff]
    %v2451 = vld [vmem:[#allocation8 + $0x330] sm:$0xff]
    %v2452 = vld [vmem:[#allocation8 + $0x338] sm:$0xff]
    %v2453 = vld [vmem:[#allocation8 + $0x340] sm:$0xff]
    %v2454 = vld [vmem:[#allocation8 + $0x348] sm:$0xff]
    %v2455 = vld [vmem:[#allocation8 + $0x350] sm:$0xff]
    %v2456 = vld [vmem:[#allocation8 + $0x358] sm:$0xff]
    %v2457 = vld [vmem:[#allocation8 + $0x360] sm:$0xff]
    %v2458 = vld [vmem:[#allocation8 + $0x368] sm:$0xff]
    %v2459 = vld [vmem:[#allocation8 + $0x370] sm:$0xff]
    %v2460 = vld [vmem:[#allocation8 + $0x378] sm:$0xff]
    %v2461 = vld [vmem:[#allocation8 + $0x380] sm:$0xff]
    %v2462 = vld [vmem:[#allocation8 + $0x388] sm:$0xff]
    %v2463 = vld [vmem:[#allocation8 + $0x390] sm:$0xff]
    %v2464 = vld [vmem:[#allocation8 + $0x398] sm:$0xff]
    %v2465 = vld [vmem:[#allocation8 + $0x3a0] sm:$0xff]
    %v2466 = vld [vmem:[#allocation8 + $0x3a8] sm:$0xff]
    %v2467 = vld [vmem:[#allocation8 + $0x3b0] sm:$0xff]
    %v2468 = vld [vmem:[#allocation8 + $0x3b8] sm:$0xff]
    %v2469 = vld [vmem:[#allocation8 + $0x3c0] sm:$0xff]
    %v2470 = vld [vmem:[#allocation8 + $0x3c8] sm:$0xff]
    %v2471 = vld [vmem:[#allocation8 + $0x3d0] sm:$0xff]
    %v2472 = vld [vmem:[#allocation8 + $0x3d8] sm:$0xff]
    %v2473 = vld [vmem:[#allocation8 + $0x3e0] sm:$0xff]
    %v2474 = vld [vmem:[#allocation8 + $0x3e8] sm:$0xff]
    %v2475 = vld [vmem:[#allocation8 + $0x3f0] sm:$0xff]
    %v2476 = vld [vmem:[#allocation8 + $0x3f8] sm:$0xff]
    %v2477 = vld [vmem:[#allocation10] sm:$0xf]
    %v2479 = vperm.slane %v2477, 0
    %v2480 = vperm.slane %v2477, 1
    %v2481 = vperm.slane %v2477, 2
    %v2482 = vperm.slane %v2477, 3
    %v2615 = vunpack.c.l.b16 %v2349
    %v2616 = vunpack.c.h.b16 %v2349
    %v2617 = vunpack.c.l.b16 %v2350
    %v2618 = vunpack.c.h.b16 %v2350
    %v2619 = vunpack.c.l.b16 %v2351
    %v2620 = vunpack.c.h.b16 %v2351
    %v2621 = vunpack.c.l.b16 %v2352
    %v2622 = vunpack.c.h.b16 %v2352
    %v2623 = vunpack.c.l.b16 %v2353
    %v2624 = vunpack.c.h.b16 %v2353
    %v2625 = vunpack.c.l.b16 %v2354
    %v2626 = vunpack.c.h.b16 %v2354
    %v2627 = vunpack.c.l.b16 %v2355
    %v2628 = vunpack.c.h.b16 %v2355
    %v2629 = vunpack.c.l.b16 %v2356
    %v2630 = vunpack.c.h.b16 %v2356
    %v2631 = vunpack.c.l.b16 %v2357
    %v2632 = vunpack.c.h.b16 %v2357
    %v2633 = vunpack.c.l.b16 %v2358
    %v2634 = vunpack.c.h.b16 %v2358
    %v2635 = vunpack.c.l.b16 %v2359
    %v2636 = vunpack.c.h.b16 %v2359
    %v2637 = vunpack.c.l.b16 %v2360
    %v2638 = vunpack.c.h.b16 %v2360
    %v2639 = vunpack.c.l.b16 %v2361
    %v2640 = vunpack.c.h.b16 %v2361
    %v2641 = vunpack.c.l.b16 %v2362
    %v2642 = vunpack.c.h.b16 %v2362
    %v2643 = vunpack.c.l.b16 %v2363
    %v2644 = vunpack.c.h.b16 %v2363
    %v2645 = vunpack.c.l.b16 %v2364
    %v2646 = vunpack.c.h.b16 %v2364
    %v2647 = vunpack.c.l.b16 %v2365
    %v2648 = vunpack.c.h.b16 %v2365
    %v2649 = vunpack.c.l.b16 %v2366
    %v2650 = vunpack.c.h.b16 %v2366
    %v2651 = vunpack.c.l.b16 %v2367
    %v2652 = vunpack.c.h.b16 %v2367
    %v2653 = vunpack.c.l.b16 %v2368
    %v2654 = vunpack.c.h.b16 %v2368
    %v2655 = vunpack.c.l.b16 %v2369
    %v2656 = vunpack.c.h.b16 %v2369
    %v2657 = vunpack.c.l.b16 %v2370
    %v2658 = vunpack.c.h.b16 %v2370
    %v2659 = vunpack.c.l.b16 %v2371
    %v2660 = vunpack.c.h.b16 %v2371
    %v2661 = vunpack.c.l.b16 %v2372
    %v2662 = vunpack.c.h.b16 %v2372
    %v2663 = vunpack.c.l.b16 %v2373
    %v2664 = vunpack.c.h.b16 %v2373
    %v2665 = vunpack.c.l.b16 %v2374
    %v2666 = vunpack.c.h.b16 %v2374
    %v2667 = vunpack.c.l.b16 %v2375
    %v2668 = vunpack.c.h.b16 %v2375
    %v2669 = vunpack.c.l.b16 %v2376
    %v2670 = vunpack.c.h.b16 %v2376
    %v2671 = vunpack.c.l.b16 %v2377
    %v2672 = vunpack.c.h.b16 %v2377
    %v2673 = vunpack.c.l.b16 %v2378
    %v2674 = vunpack.c.h.b16 %v2378
    %v2675 = vunpack.c.l.b16 %v2379
    %v2676 = vunpack.c.h.b16 %v2379
    %v2677 = vunpack.c.l.b16 %v2380
    %v2678 = vunpack.c.h.b16 %v2380
    %v2679 = vunpack.c.l.b16 %v2381
    %v2680 = vunpack.c.h.b16 %v2381
    %v2681 = vunpack.c.l.b16 %v2382
    %v2682 = vunpack.c.h.b16 %v2382
    %v2683 = vunpack.c.l.b16 %v2383
    %v2684 = vunpack.c.h.b16 %v2383
    %v2685 = vunpack.c.l.b16 %v2384
    %v2686 = vunpack.c.h.b16 %v2384
    %v2687 = vunpack.c.l.b16 %v2385
    %v2688 = vunpack.c.h.b16 %v2385
    %v2689 = vunpack.c.l.b16 %v2386
    %v2690 = vunpack.c.h.b16 %v2386
    %v2691 = vunpack.c.l.b16 %v2387
    %v2692 = vunpack.c.h.b16 %v2387
    %v2693 = vunpack.c.l.b16 %v2388
    %v2694 = vunpack.c.h.b16 %v2388
    %v2695 = vunpack.c.l.b16 %v2389
    %v2696 = vunpack.c.h.b16 %v2389
    %v2697 = vunpack.c.l.b16 %v2390
    %v2698 = vunpack.c.h.b16 %v2390
    %v2699 = vunpack.c.l.b16 %v2391
    %v2700 = vunpack.c.h.b16 %v2391
    %v2701 = vunpack.c.l.b16 %v2392
    %v2702 = vunpack.c.h.b16 %v2392
    %v2703 = vunpack.c.l.b16 %v2393
    %v2704 = vunpack.c.h.b16 %v2393
    %v2705 = vunpack.c.l.b16 %v2394
    %v2706 = vunpack.c.h.b16 %v2394
    %v2707 = vunpack.c.l.b16 %v2395
    %v2708 = vunpack.c.h.b16 %v2395
    %v2709 = vunpack.c.l.b16 %v2396
    %v2710 = vunpack.c.h.b16 %v2396
    %v2711 = vunpack.c.l.b16 %v2397
    %v2712 = vunpack.c.h.b16 %v2397
    %v2713 = vunpack.c.l.b16 %v2398
    %v2714 = vunpack.c.h.b16 %v2398
    %v2715 = vunpack.c.l.b16 %v2399
    %v2716 = vunpack.c.h.b16 %v2399
    %v2717 = vunpack.c.l.b16 %v2400
    %v2718 = vunpack.c.h.b16 %v2400
    %v2719 = vunpack.c.l.b16 %v2401
    %v2720 = vunpack.c.h.b16 %v2401
    %v2721 = vunpack.c.l.b16 %v2402
    %v2722 = vunpack.c.h.b16 %v2402
    %v2723 = vunpack.c.l.b16 %v2403
    %v2724 = vunpack.c.h.b16 %v2403
    %v2725 = vunpack.c.l.b16 %v2404
    %v2726 = vunpack.c.h.b16 %v2404
    %v2727 = vunpack.c.l.b16 %v2405
    %v2728 = vunpack.c.h.b16 %v2405
    %v2729 = vunpack.c.l.b16 %v2406
    %v2730 = vunpack.c.h.b16 %v2406
    %v2731 = vunpack.c.l.b16 %v2407
    %v2732 = vunpack.c.h.b16 %v2407
    %v2733 = vunpack.c.l.b16 %v2408
    %v2734 = vunpack.c.h.b16 %v2408
    %v2735 = vunpack.c.l.b16 %v2409
    %v2736 = vunpack.c.h.b16 %v2409
    %v2737 = vunpack.c.l.b16 %v2410
    %v2738 = vunpack.c.h.b16 %v2410
    %v2739 = vunpack.c.l.b16 %v2411
    %v2740 = vunpack.c.h.b16 %v2411
    %v2741 = vunpack.c.l.b16 %v2412
    %v2742 = vunpack.c.h.b16 %v2412
    %v2743 = vunpack.c.l.b16 %v2413
    %v2744 = vunpack.c.h.b16 %v2413
    %v2745 = vunpack.c.l.b16 %v2414
    %v2746 = vunpack.c.h.b16 %v2414
    %v2747 = vunpack.c.l.b16 %v2415
    %v2748 = vunpack.c.h.b16 %v2415
    %v2749 = vunpack.c.l.b16 %v2416
    %v2750 = vunpack.c.h.b16 %v2416
    %v2751 = vunpack.c.l.b16 %v2417
    %v2752 = vunpack.c.h.b16 %v2417
    %v2753 = vunpack.c.l.b16 %v2418
    %v2754 = vunpack.c.h.b16 %v2418
    %v2755 = vunpack.c.l.b16 %v2419
    %v2756 = vunpack.c.h.b16 %v2419
    %v2757 = vunpack.c.l.b16 %v2420
    %v2758 = vunpack.c.h.b16 %v2420
    %v2759 = vunpack.c.l.b16 %v2421
    %v2760 = vunpack.c.h.b16 %v2421
    %v2761 = vunpack.c.l.b16 %v2422
    %v2762 = vunpack.c.h.b16 %v2422
    %v2763 = vunpack.c.l.b16 %v2423
    %v2764 = vunpack.c.h.b16 %v2423
    %v2765 = vunpack.c.l.b16 %v2424
    %v2766 = vunpack.c.h.b16 %v2424
    %v2767 = vunpack.c.l.b16 %v2425
    %v2768 = vunpack.c.h.b16 %v2425
    %v2769 = vunpack.c.l.b16 %v2426
    %v2770 = vunpack.c.h.b16 %v2426
    %v2771 = vunpack.c.l.b16 %v2427
    %v2772 = vunpack.c.h.b16 %v2427
    %v2773 = vunpack.c.l.b16 %v2428
    %v2774 = vunpack.c.h.b16 %v2428
    %v2775 = vunpack.c.l.b16 %v2429
    %v2776 = vunpack.c.h.b16 %v2429
    %v2777 = vunpack.c.l.b16 %v2430
    %v2778 = vunpack.c.h.b16 %v2430
    %v2779 = vunpack.c.l.b16 %v2431
    %v2780 = vunpack.c.h.b16 %v2431
    %v2781 = vunpack.c.l.b16 %v2432
    %v2782 = vunpack.c.h.b16 %v2432
    %v2783 = vunpack.c.l.b16 %v2433
    %v2784 = vunpack.c.h.b16 %v2433
    %v2785 = vunpack.c.l.b16 %v2434
    %v2786 = vunpack.c.h.b16 %v2434
    %v2787 = vunpack.c.l.b16 %v2435
    %v2788 = vunpack.c.h.b16 %v2435
    %v2789 = vunpack.c.l.b16 %v2436
    %v2790 = vunpack.c.h.b16 %v2436
    %v2791 = vunpack.c.l.b16 %v2437
    %v2792 = vunpack.c.h.b16 %v2437
    %v2793 = vunpack.c.l.b16 %v2438
    %v2794 = vunpack.c.h.b16 %v2438
    %v2795 = vunpack.c.l.b16 %v2439
    %v2796 = vunpack.c.h.b16 %v2439
    %v2797 = vunpack.c.l.b16 %v2440
    %v2798 = vunpack.c.h.b16 %v2440
    %v2799 = vunpack.c.l.b16 %v2441
    %v2800 = vunpack.c.h.b16 %v2441
    %v2801 = vunpack.c.l.b16 %v2442
    %v2802 = vunpack.c.h.b16 %v2442
    %v2803 = vunpack.c.l.b16 %v2443
    %v2804 = vunpack.c.h.b16 %v2443
    %v2805 = vunpack.c.l.b16 %v2444
    %v2806 = vunpack.c.h.b16 %v2444
    %v2807 = vunpack.c.l.b16 %v2445
    %v2808 = vunpack.c.h.b16 %v2445
    %v2809 = vunpack.c.l.b16 %v2446
    %v2810 = vunpack.c.h.b16 %v2446
    %v2811 = vunpack.c.l.b16 %v2447
    %v2812 = vunpack.c.h.b16 %v2447
    %v2813 = vunpack.c.l.b16 %v2448
    %v2814 = vunpack.c.h.b16 %v2448
    %v2815 = vunpack.c.l.b16 %v2449
    %v2816 = vunpack.c.h.b16 %v2449
    %v2817 = vunpack.c.l.b16 %v2450
    %v2818 = vunpack.c.h.b16 %v2450
    %v2819 = vunpack.c.l.b16 %v2451
    %v2820 = vunpack.c.h.b16 %v2451
    %v2821 = vunpack.c.l.b16 %v2452
    %v2822 = vunpack.c.h.b16 %v2452
    %v2823 = vunpack.c.l.b16 %v2453
    %v2824 = vunpack.c.h.b16 %v2453
    %v2825 = vunpack.c.l.b16 %v2454
    %v2826 = vunpack.c.h.b16 %v2454
    %v2827 = vunpack.c.l.b16 %v2455
    %v2828 = vunpack.c.h.b16 %v2455
    %v2829 = vunpack.c.l.b16 %v2456
    %v2830 = vunpack.c.h.b16 %v2456
    %v2831 = vunpack.c.l.b16 %v2457
    %v2832 = vunpack.c.h.b16 %v2457
    %v2833 = vunpack.c.l.b16 %v2458
    %v2834 = vunpack.c.h.b16 %v2458
    %v2835 = vunpack.c.l.b16 %v2459
    %v2836 = vunpack.c.h.b16 %v2459
    %v2837 = vunpack.c.l.b16 %v2460
    %v2838 = vunpack.c.h.b16 %v2460
    %v2839 = vunpack.c.l.b16 %v2461
    %v2840 = vunpack.c.h.b16 %v2461
    %v2841 = vunpack.c.l.b16 %v2462
    %v2842 = vunpack.c.h.b16 %v2462
    %v2843 = vunpack.c.l.b16 %v2463
    %v2844 = vunpack.c.h.b16 %v2463
    %v2845 = vunpack.c.l.b16 %v2464
    %v2846 = vunpack.c.h.b16 %v2464
    %v2847 = vunpack.c.l.b16 %v2465
    %v2848 = vunpack.c.h.b16 %v2465
    %v2849 = vunpack.c.l.b16 %v2466
    %v2850 = vunpack.c.h.b16 %v2466
    %v2851 = vunpack.c.l.b16 %v2467
    %v2852 = vunpack.c.h.b16 %v2467
    %v2853 = vunpack.c.l.b16 %v2468
    %v2854 = vunpack.c.h.b16 %v2468
    %v2855 = vunpack.c.l.b16 %v2469
    %v2856 = vunpack.c.h.b16 %v2469
    %v2857 = vunpack.c.l.b16 %v2470
    %v2858 = vunpack.c.h.b16 %v2470
    %v2859 = vunpack.c.l.b16 %v2471
    %v2860 = vunpack.c.h.b16 %v2471
    %v2861 = vunpack.c.l.b16 %v2472
    %v2862 = vunpack.c.h.b16 %v2472
    %v2863 = vunpack.c.l.b16 %v2473
    %v2864 = vunpack.c.h.b16 %v2473
    %v2865 = vunpack.c.l.b16 %v2474
    %v2866 = vunpack.c.h.b16 %v2474
    %v2867 = vunpack.c.l.b16 %v2475
    %v2868 = vunpack.c.h.b16 %v2475
    %v2869 = vunpack.c.l.b16 %v2476
    %v2870 = vunpack.c.h.b16 %v2476
    %v2871 = vpack.c.b16 %v2619, %v2615
    %v2872 = vpack.c.b16 %v2620, %v2616
    %v2873 = vpack.c.b16 %v2621, %v2617
    %v2874 = vpack.c.b16 %v2622, %v2618
    %v2875 = vpack.c.b16 %v2627, %v2623
    %v2876 = vpack.c.b16 %v2628, %v2624
    %v2877 = vpack.c.b16 %v2629, %v2625
    %v2878 = vpack.c.b16 %v2630, %v2626
    %v2879 = vpack.c.b16 %v2635, %v2631
    %v2880 = vpack.c.b16 %v2636, %v2632
    %v2881 = vpack.c.b16 %v2637, %v2633
    %v2882 = vpack.c.b16 %v2638, %v2634
    %v2883 = vpack.c.b16 %v2643, %v2639
    %v2884 = vpack.c.b16 %v2644, %v2640
    %v2885 = vpack.c.b16 %v2645, %v2641
    %v2886 = vpack.c.b16 %v2646, %v2642
    %v2887 = vpack.c.b16 %v2651, %v2647
    %v2888 = vpack.c.b16 %v2652, %v2648
    %v2889 = vpack.c.b16 %v2653, %v2649
    %v2890 = vpack.c.b16 %v2654, %v2650
    %v2891 = vpack.c.b16 %v2659, %v2655
    %v2892 = vpack.c.b16 %v2660, %v2656
    %v2893 = vpack.c.b16 %v2661, %v2657
    %v2894 = vpack.c.b16 %v2662, %v2658
    %v2895 = vpack.c.b16 %v2667, %v2663
    %v2896 = vpack.c.b16 %v2668, %v2664
    %v2897 = vpack.c.b16 %v2669, %v2665
    %v2898 = vpack.c.b16 %v2670, %v2666
    %v2899 = vpack.c.b16 %v2675, %v2671
    %v2900 = vpack.c.b16 %v2676, %v2672
    %v2901 = vpack.c.b16 %v2677, %v2673
    %v2902 = vpack.c.b16 %v2678, %v2674
    %v2903 = vpack.c.b16 %v2683, %v2679
    %v2904 = vpack.c.b16 %v2684, %v2680
    %v2905 = vpack.c.b16 %v2685, %v2681
    %v2906 = vpack.c.b16 %v2686, %v2682
    %v2907 = vpack.c.b16 %v2691, %v2687
    %v2908 = vpack.c.b16 %v2692, %v2688
    %v2909 = vpack.c.b16 %v2693, %v2689
    %v2910 = vpack.c.b16 %v2694, %v2690
    %v2911 = vpack.c.b16 %v2699, %v2695
    %v2912 = vpack.c.b16 %v2700, %v2696
    %v2913 = vpack.c.b16 %v2701, %v2697
    %v2914 = vpack.c.b16 %v2702, %v2698
    %v2915 = vpack.c.b16 %v2707, %v2703
    %v2916 = vpack.c.b16 %v2708, %v2704
    %v2917 = vpack.c.b16 %v2709, %v2705
    %v2918 = vpack.c.b16 %v2710, %v2706
    %v2919 = vpack.c.b16 %v2715, %v2711
    %v2920 = vpack.c.b16 %v2716, %v2712
    %v2921 = vpack.c.b16 %v2717, %v2713
    %v2922 = vpack.c.b16 %v2718, %v2714
    %v2923 = vpack.c.b16 %v2723, %v2719
    %v2924 = vpack.c.b16 %v2724, %v2720
    %v2925 = vpack.c.b16 %v2725, %v2721
    %v2926 = vpack.c.b16 %v2726, %v2722
    %v2927 = vpack.c.b16 %v2731, %v2727
    %v2928 = vpack.c.b16 %v2732, %v2728
    %v2929 = vpack.c.b16 %v2733, %v2729
    %v2930 = vpack.c.b16 %v2734, %v2730
    %v2931 = vpack.c.b16 %v2739, %v2735
    %v2932 = vpack.c.b16 %v2740, %v2736
    %v2933 = vpack.c.b16 %v2741, %v2737
    %v2934 = vpack.c.b16 %v2742, %v2738
    %v2935 = vpack.c.b16 %v2747, %v2743
    %v2936 = vpack.c.b16 %v2748, %v2744
    %v2937 = vpack.c.b16 %v2749, %v2745
    %v2938 = vpack.c.b16 %v2750, %v2746
    %v2939 = vpack.c.b16 %v2755, %v2751
    %v2940 = vpack.c.b16 %v2756, %v2752
    %v2941 = vpack.c.b16 %v2757, %v2753
    %v2942 = vpack.c.b16 %v2758, %v2754
    %v2943 = vpack.c.b16 %v2763, %v2759
    %v2944 = vpack.c.b16 %v2764, %v2760
    %v2945 = vpack.c.b16 %v2765, %v2761
    %v2946 = vpack.c.b16 %v2766, %v2762
    %v2947 = vpack.c.b16 %v2771, %v2767
    %v2948 = vpack.c.b16 %v2772, %v2768
    %v2949 = vpack.c.b16 %v2773, %v2769
    %v2950 = vpack.c.b16 %v2774, %v2770
    %v2951 = vpack.c.b16 %v2779, %v2775
    %v2952 = vpack.c.b16 %v2780, %v2776
    %v2953 = vpack.c.b16 %v2781, %v2777
    %v2954 = vpack.c.b16 %v2782, %v2778
    %v2955 = vpack.c.b16 %v2787, %v2783
    %v2956 = vpack.c.b16 %v2788, %v2784
    %v2957 = vpack.c.b16 %v2789, %v2785
    %v2958 = vpack.c.b16 %v2790, %v2786
    %v2959 = vpack.c.b16 %v2795, %v2791
    %v2960 = vpack.c.b16 %v2796, %v2792
    %v2961 = vpack.c.b16 %v2797, %v2793
    %v2962 = vpack.c.b16 %v2798, %v2794
    %v2963 = vpack.c.b16 %v2803, %v2799
    %v2964 = vpack.c.b16 %v2804, %v2800
    %v2965 = vpack.c.b16 %v2805, %v2801
    %v2966 = vpack.c.b16 %v2806, %v2802
    %v2967 = vpack.c.b16 %v2811, %v2807
    %v2968 = vpack.c.b16 %v2812, %v2808
    %v2969 = vpack.c.b16 %v2813, %v2809
    %v2970 = vpack.c.b16 %v2814, %v2810
    %v2971 = vpack.c.b16 %v2819, %v2815
    %v2972 = vpack.c.b16 %v2820, %v2816
    %v2973 = vpack.c.b16 %v2821, %v2817
    %v2974 = vpack.c.b16 %v2822, %v2818
    %v2975 = vpack.c.b16 %v2827, %v2823
    %v2976 = vpack.c.b16 %v2828, %v2824
    %v2977 = vpack.c.b16 %v2829, %v2825
    %v2978 = vpack.c.b16 %v2830, %v2826
    %v2979 = vpack.c.b16 %v2835, %v2831
    %v2980 = vpack.c.b16 %v2836, %v2832
    %v2981 = vpack.c.b16 %v2837, %v2833
    %v2982 = vpack.c.b16 %v2838, %v2834
    %v2983 = vpack.c.b16 %v2843, %v2839
    %v2984 = vpack.c.b16 %v2844, %v2840
    %v2985 = vpack.c.b16 %v2845, %v2841
    %v2986 = vpack.c.b16 %v2846, %v2842
    %v2987 = vpack.c.b16 %v2851, %v2847
    %v2988 = vpack.c.b16 %v2852, %v2848
    %v2989 = vpack.c.b16 %v2853, %v2849
    %v2990 = vpack.c.b16 %v2854, %v2850
    %v2991 = vpack.c.b16 %v2859, %v2855
    %v2992 = vpack.c.b16 %v2860, %v2856
    %v2993 = vpack.c.b16 %v2861, %v2857
    %v2994 = vpack.c.b16 %v2862, %v2858
    %v2995 = vpack.c.b16 %v2867, %v2863
    %v2996 = vpack.c.b16 %v2868, %v2864
    %v2997 = vpack.c.b16 %v2869, %v2865
    %v2998 = vpack.c.b16 %v2870, %v2866
    %3127 = vmatpush.bf16.msra.mxu0 %v2899
    %3128 = vmatpush.bf16.msra.mxu0 %v2895
    %3129 = vmatpush.bf16.msra.mxu0 %v2891
    %3130 = vmatpush.bf16.msra.mxu0 %v2887
    %3131 = vmatpush.bf16.msra.mxu0 %v2883
    %3132 = vmatpush.bf16.msra.mxu0 %v2879
    %3133 = vmatpush.bf16.msra.mxu0 %v2875
    %3134 = vmatpush.bf16.msra.mxu0 %v2871
    %3135 = vmatmul.bf16.gmra.mxu0 %v2333
    %v3136 = vpop.f32.mrf.mxu0
    %v3137 = vadd.f32 %v2479, %v3136
    %v3138 = vpop.f32.mrf.mxu0
    %v3139 = vadd.f32 %v2479, %v3138
    %3140 = vmatmul.bf16.gmra.mxu0 %v2337
    %v3141 = vpop.f32.mrf.mxu0
    %v3142 = vadd.f32 %v2479, %v3141
    %v3143 = vpop.f32.mrf.mxu0
    %v3144 = vadd.f32 %v2479, %v3143
    %3145 = vmatmul.bf16.gmra.mxu0 %v2341
    %v3146 = vpop.f32.mrf.mxu0
    %v3147 = vadd.f32 %v2479, %v3146
    %v3148 = vpop.f32.mrf.mxu0
    %v3149 = vadd.f32 %v2479, %v3148
    %3150 = vmatmul.bf16.gmra.mxu0 %v2345
    %v3151 = vpop.f32.mrf.mxu0
    %v3152 = vadd.f32 %v2479, %v3151
    %v3153 = vpop.f32.mrf.mxu0
    %v3154 = vadd.f32 %v2479, %v3153
    %3155 = vdwg.mxu0
    %3156 = vmatpush.bf16.msra.mxu0 %v2931
    %3157 = vmatpush.bf16.msra.mxu0 %v2927
    %3158 = vmatpush.bf16.msra.mxu0 %v2923
    %3159 = vmatpush.bf16.msra.mxu0 %v2919
    %3160 = vmatpush.bf16.msra.mxu0 %v2915
    %3161 = vmatpush.bf16.msra.mxu0 %v2911
    %3162 = vmatpush.bf16.msra.mxu0 %v2907
    %3163 = vmatpush.bf16.msra.mxu0 %v2903
    %3164 = vmatmul.bf16.gmra.mxu0 %v2334
    %v3165 = vpop.f32.mrf.mxu0
    %v3166 = vadd.f32 %v3137, %v3165
    %v3167 = vpop.f32.mrf.mxu0
    %v3168 = vadd.f32 %v3139, %v3167
    %3169 = vmatmul.bf16.gmra.mxu0 %v2338
    %v3170 = vpop.f32.mrf.mxu0
    %v3171 = vadd.f32 %v3142, %v3170
    %v3172 = vpop.f32.mrf.mxu0
    %v3173 = vadd.f32 %v3144, %v3172
    %3174 = vmatmul.bf16.gmra.mxu0 %v2342
    %v3175 = vpop.f32.mrf.mxu0
    %v3176 = vadd.f32 %v3147, %v3175
    %v3177 = vpop.f32.mrf.mxu0
    %v3178 = vadd.f32 %v3149, %v3177
    %3179 = vmatmul.bf16.gmra.mxu0 %v2346
    %v3180 = vpop.f32.mrf.mxu0
    %v3181 = vadd.f32 %v3152, %v3180
    %v3182 = vpop.f32.mrf.mxu0
    %v3183 = vadd.f32 %v3154, %v3182
    %3184 = vdwg.mxu0
    %3185 = vmatpush.bf16.msra.mxu0 %v2963
    %3186 = vmatpush.bf16.msra.mxu0 %v2959
    %3187 = vmatpush.bf16.msra.mxu0 %v2955
    %3188 = vmatpush.bf16.msra.mxu0 %v2951
    %3189 = vmatpush.bf16.msra.mxu0 %v2947
    %3190 = vmatpush.bf16.msra.mxu0 %v2943
    %3191 = vmatpush.bf16.msra.mxu0 %v2939
    %3192 = vmatpush.bf16.msra.mxu0 %v2935
    %3193 = vmatmul.bf16.gmra.mxu0 %v2335
    %v3194 = vpop.f32.mrf.mxu0
    %v3195 = vadd.f32 %v3166, %v3194
    %v3196 = vpop.f32.mrf.mxu0
    %v3197 = vadd.f32 %v3168, %v3196
    %3198 = vmatmul.bf16.gmra.mxu0 %v2339
    %v3199 = vpop.f32.mrf.mxu0
    %v3200 = vadd.f32 %v3171, %v3199
    %v3201 = vpop.f32.mrf.mxu0
    %v3202 = vadd.f32 %v3173, %v3201
    %3203 = vmatmul.bf16.gmra.mxu0 %v2343
    %v3204 = vpop.f32.mrf.mxu0
    %v3205 = vadd.f32 %v3176, %v3204
    %v3206 = vpop.f32.mrf.mxu0
    %v3207 = vadd.f32 %v3178, %v3206
    %3208 = vmatmul.bf16.gmra.mxu0 %v2347
    %v3209 = vpop.f32.mrf.mxu0
    %v3210 = vadd.f32 %v3181, %v3209
    %v3211 = vpop.f32.mrf.mxu0
    %v3212 = vadd.f32 %v3183, %v3211
    %3213 = vdwg.mxu0
    %3214 = vmatpush.bf16.msra.mxu0 %v2995
    %3215 = vmatpush.bf16.msra.mxu0 %v2991
    %3216 = vmatpush.bf16.msra.mxu0 %v2987
    %3217 = vmatpush.bf16.msra.mxu0 %v2983
    %3218 = vmatpush.bf16.msra.mxu0 %v2979
    %3219 = vmatpush.bf16.msra.mxu0 %v2975
    %3220 = vmatpush.bf16.msra.mxu0 %v2971
    %3221 = vmatpush.bf16.msra.mxu0 %v2967
    %3222 = vmatmul.bf16.gmra.mxu0 %v2336
    %v3223 = vpop.f32.mrf.mxu0
    %v3224 = vadd.f32 %v3195, %v3223
    %v3225 = vpop.f32.mrf.mxu0
    %v3226 = vadd.f32 %v3197, %v3225
    %3227 = vmatmul.bf16.gmra.mxu0 %v2340
    %v3228 = vpop.f32.mrf.mxu0
    %v3229 = vadd.f32 %v3200, %v3228
    %v3230 = vpop.f32.mrf.mxu0
    %v3231 = vadd.f32 %v3202, %v3230
    %3232 = vmatmul.bf16.gmra.mxu0 %v2344
    %v3233 = vpop.f32.mrf.mxu0
    %v3234 = vadd.f32 %v3205, %v3233
    %v3235 = vpop.f32.mrf.mxu0
    %v3236 = vadd.f32 %v3207, %v3235
    %3237 = vmatmul.bf16.gmra.mxu0 %v2348
    %v3238 = vpop.f32.mrf.mxu0
    %v3239 = vadd.f32 %v3210, %v3238
    %v3240 = vpop.f32.mrf.mxu0
    %v3241 = vadd.f32 %v3212, %v3240
    %3242 = vdwg.mxu0
    %3243 = vmatpush.bf16.msra.mxu0 %v2900
    %3244 = vmatpush.bf16.msra.mxu0 %v2896
    %3245 = vmatpush.bf16.msra.mxu0 %v2892
    %3246 = vmatpush.bf16.msra.mxu0 %v2888
    %3247 = vmatpush.bf16.msra.mxu0 %v2884
    %3248 = vmatpush.bf16.msra.mxu0 %v2880
    %3249 = vmatpush.bf16.msra.mxu0 %v2876
    %3250 = vmatpush.bf16.msra.mxu0 %v2872
    %3251 = vmatmul.bf16.gmra.mxu0 %v2333
    %v3252 = vpop.f32.mrf.mxu0
    %v3253 = vadd.f32 %v2480, %v3252
    %v3254 = vpop.f32.mrf.mxu0
    %v3255 = vadd.f32 %v2480, %v3254
    %3256 = vmatmul.bf16.gmra.mxu0 %v2337
    %v3257 = vpop.f32.mrf.mxu0
    %v3258 = vadd.f32 %v2480, %v3257
    %v3259 = vpop.f32.mrf.mxu0
    %v3260 = vadd.f32 %v2480, %v3259
    %3261 = vmatmul.bf16.gmra.mxu0 %v2341
    %v3262 = vpop.f32.mrf.mxu0
    %v3263 = vadd.f32 %v2480, %v3262
    %v3264 = vpop.f32.mrf.mxu0
    %v3265 = vadd.f32 %v2480, %v3264
    %3266 = vmatmul.bf16.gmra.mxu0 %v2345
    %v3267 = vpop.f32.mrf.mxu0
    %v3268 = vadd.f32 %v2480, %v3267
    %v3269 = vpop.f32.mrf.mxu0
    %v3270 = vadd.f32 %v2480, %v3269
    %3271 = vdwg.mxu0
    %3272 = vmatpush.bf16.msra.mxu0 %v2932
    %3273 = vmatpush.bf16.msra.mxu0 %v2928
    %3274 = vmatpush.bf16.msra.mxu0 %v2924
    %3275 = vmatpush.bf16.msra.mxu0 %v2920
    %3276 = vmatpush.bf16.msra.mxu0 %v2916
    %3277 = vmatpush.bf16.msra.mxu0 %v2912
    %3278 = vmatpush.bf16.msra.mxu0 %v2908
    %3279 = vmatpush.bf16.msra.mxu0 %v2904
    %3280 = vmatmul.bf16.gmra.mxu0 %v2334
    %v3281 = vpop.f32.mrf.mxu0
    %v3282 = vadd.f32 %v3253, %v3281
    %v3283 = vpop.f32.mrf.mxu0
    %v3284 = vadd.f32 %v3255, %v3283
    %3285 = vmatmul.bf16.gmra.mxu0 %v2338
    %v3286 = vpop.f32.mrf.mxu0
    %v3287 = vadd.f32 %v3258, %v3286
    %v3288 = vpop.f32.mrf.mxu0
    %v3289 = vadd.f32 %v3260, %v3288
    %3290 = vmatmul.bf16.gmra.mxu0 %v2342
    %v3291 = vpop.f32.mrf.mxu0
    %v3292 = vadd.f32 %v3263, %v3291
    %v3293 = vpop.f32.mrf.mxu0
    %v3294 = vadd.f32 %v3265, %v3293
    %3295 = vmatmul.bf16.gmra.mxu0 %v2346
    %v3296 = vpop.f32.mrf.mxu0
    %v3297 = vadd.f32 %v3268, %v3296
    %v3298 = vpop.f32.mrf.mxu0
    %v3299 = vadd.f32 %v3270, %v3298
    %3300 = vdwg.mxu0
    %3301 = vmatpush.bf16.msra.mxu0 %v2964
    %3302 = vmatpush.bf16.msra.mxu0 %v2960
    %3303 = vmatpush.bf16.msra.mxu0 %v2956
    %3304 = vmatpush.bf16.msra.mxu0 %v2952
    %3305 = vmatpush.bf16.msra.mxu0 %v2948
    %3306 = vmatpush.bf16.msra.mxu0 %v2944
    %3307 = vmatpush.bf16.msra.mxu0 %v2940
    %3308 = vmatpush.bf16.msra.mxu0 %v2936
    %3309 = vmatmul.bf16.gmra.mxu0 %v2335
    %v3310 = vpop.f32.mrf.mxu0
    %v3311 = vadd.f32 %v3282, %v3310
    %v3312 = vpop.f32.mrf.mxu0
    %v3313 = vadd.f32 %v3284, %v3312
    %3314 = vmatmul.bf16.gmra.mxu0 %v2339
    %v3315 = vpop.f32.mrf.mxu0
    %v3316 = vadd.f32 %v3287, %v3315
    %v3317 = vpop.f32.mrf.mxu0
    %v3318 = vadd.f32 %v3289, %v3317
    %3319 = vmatmul.bf16.gmra.mxu0 %v2343
    %v3320 = vpop.f32.mrf.mxu0
    %v3321 = vadd.f32 %v3292, %v3320
    %v3322 = vpop.f32.mrf.mxu0
    %v3323 = vadd.f32 %v3294, %v3322
    %3324 = vmatmul.bf16.gmra.mxu0 %v2347
    %v3325 = vpop.f32.mrf.mxu0
    %v3326 = vadd.f32 %v3297, %v3325
    %v3327 = vpop.f32.mrf.mxu0
    %v3328 = vadd.f32 %v3299, %v3327
    %3329 = vdwg.mxu0
    %3330 = vmatpush.bf16.msra.mxu0 %v2996
    %3331 = vmatpush.bf16.msra.mxu0 %v2992
    %3332 = vmatpush.bf16.msra.mxu0 %v2988
    %3333 = vmatpush.bf16.msra.mxu0 %v2984
    %3334 = vmatpush.bf16.msra.mxu0 %v2980
    %3335 = vmatpush.bf16.msra.mxu0 %v2976
    %3336 = vmatpush.bf16.msra.mxu0 %v2972
    %3337 = vmatpush.bf16.msra.mxu0 %v2968
    %3338 = vmatmul.bf16.gmra.mxu0 %v2336
    %v3339 = vpop.f32.mrf.mxu0
    %v3340 = vadd.f32 %v3311, %v3339
    %v3341 = vpop.f32.mrf.mxu0
    %v3342 = vadd.f32 %v3313, %v3341
    %3343 = vmatmul.bf16.gmra.mxu0 %v2340
    %v3344 = vpop.f32.mrf.mxu0
    %v3345 = vadd.f32 %v3316, %v3344
    %v3346 = vpop.f32.mrf.mxu0
    %v3347 = vadd.f32 %v3318, %v3346
    %3348 = vmatmul.bf16.gmra.mxu0 %v2344
    %v3349 = vpop.f32.mrf.mxu0
    %v3350 = vadd.f32 %v3321, %v3349
    %v3351 = vpop.f32.mrf.mxu0
    %v3352 = vadd.f32 %v3323, %v3351
    %3353 = vmatmul.bf16.gmra.mxu0 %v2348
    %v3354 = vpop.f32.mrf.mxu0
    %v3355 = vadd.f32 %v3326, %v3354
    %v3356 = vpop.f32.mrf.mxu0
    %v3357 = vadd.f32 %v3328, %v3356
    %3358 = vdwg.mxu0
    %3359 = vmatpush.bf16.msra.mxu0 %v2901
    %3360 = vmatpush.bf16.msra.mxu0 %v2897
    %3361 = vmatpush.bf16.msra.mxu0 %v2893
    %3362 = vmatpush.bf16.msra.mxu0 %v2889
    %3363 = vmatpush.bf16.msra.mxu0 %v2885
    %3364 = vmatpush.bf16.msra.mxu0 %v2881
    %3365 = vmatpush.bf16.msra.mxu0 %v2877
    %3366 = vmatpush.bf16.msra.mxu0 %v2873
    %3367 = vmatmul.bf16.gmra.mxu0 %v2333
    %v3368 = vpop.f32.mrf.mxu0
    %v3369 = vadd.f32 %v2481, %v3368
    %v3370 = vpop.f32.mrf.mxu0
    %v3371 = vadd.f32 %v2481, %v3370
    %3372 = vmatmul.bf16.gmra.mxu0 %v2337
    %v3373 = vpop.f32.mrf.mxu0
    %v3374 = vadd.f32 %v2481, %v3373
    %v3375 = vpop.f32.mrf.mxu0
    %v3376 = vadd.f32 %v2481, %v3375
    %3377 = vmatmul.bf16.gmra.mxu0 %v2341
    %v3378 = vpop.f32.mrf.mxu0
    %v3379 = vadd.f32 %v2481, %v3378
    %v3380 = vpop.f32.mrf.mxu0
    %v3381 = vadd.f32 %v2481, %v3380
    %3382 = vmatmul.bf16.gmra.mxu0 %v2345
    %v3383 = vpop.f32.mrf.mxu0
    %v3384 = vadd.f32 %v2481, %v3383
    %v3385 = vpop.f32.mrf.mxu0
    %v3386 = vadd.f32 %v2481, %v3385
    %3387 = vdwg.mxu0
    %3388 = vmatpush.bf16.msra.mxu0 %v2933
    %3389 = vmatpush.bf16.msra.mxu0 %v2929
    %3390 = vmatpush.bf16.msra.mxu0 %v2925
    %3391 = vmatpush.bf16.msra.mxu0 %v2921
    %3392 = vmatpush.bf16.msra.mxu0 %v2917
    %3393 = vmatpush.bf16.msra.mxu0 %v2913
    %3394 = vmatpush.bf16.msra.mxu0 %v2909
    %3395 = vmatpush.bf16.msra.mxu0 %v2905
    %3396 = vmatmul.bf16.gmra.mxu0 %v2334
    %v3397 = vpop.f32.mrf.mxu0
    %v3398 = vadd.f32 %v3369, %v3397
    %v3399 = vpop.f32.mrf.mxu0
    %v3400 = vadd.f32 %v3371, %v3399
    %3401 = vmatmul.bf16.gmra.mxu0 %v2338
    %v3402 = vpop.f32.mrf.mxu0
    %v3403 = vadd.f32 %v3374, %v3402
    %v3404 = vpop.f32.mrf.mxu0
    %v3405 = vadd.f32 %v3376, %v3404
    %3406 = vmatmul.bf16.gmra.mxu0 %v2342
    %v3407 = vpop.f32.mrf.mxu0
    %v3408 = vadd.f32 %v3379, %v3407
    %v3409 = vpop.f32.mrf.mxu0
    %v3410 = vadd.f32 %v3381, %v3409
    %3411 = vmatmul.bf16.gmra.mxu0 %v2346
    %v3412 = vpop.f32.mrf.mxu0
    %v3413 = vadd.f32 %v3384, %v3412
    %v3414 = vpop.f32.mrf.mxu0
    %v3415 = vadd.f32 %v3386, %v3414
    %3416 = vdwg.mxu0
    %3417 = vmatpush.bf16.msra.mxu0 %v2965
    %3418 = vmatpush.bf16.msra.mxu0 %v2961
    %3419 = vmatpush.bf16.msra.mxu0 %v2957
    %3420 = vmatpush.bf16.msra.mxu0 %v2953
    %3421 = vmatpush.bf16.msra.mxu0 %v2949
    %3422 = vmatpush.bf16.msra.mxu0 %v2945
    %3423 = vmatpush.bf16.msra.mxu0 %v2941
    %3424 = vmatpush.bf16.msra.mxu0 %v2937
    %3425 = vmatmul.bf16.gmra.mxu0 %v2335
    %v3426 = vpop.f32.mrf.mxu0
    %v3427 = vadd.f32 %v3398, %v3426
    %v3428 = vpop.f32.mrf.mxu0
    %v3429 = vadd.f32 %v3400, %v3428
    %3430 = vmatmul.bf16.gmra.mxu0 %v2339
    %v3431 = vpop.f32.mrf.mxu0
    %v3432 = vadd.f32 %v3403, %v3431
    %v3433 = vpop.f32.mrf.mxu0
    %v3434 = vadd.f32 %v3405, %v3433
    %3435 = vmatmul.bf16.gmra.mxu0 %v2343
    %v3436 = vpop.f32.mrf.mxu0
    %v3437 = vadd.f32 %v3408, %v3436
    %v3438 = vpop.f32.mrf.mxu0
    %v3439 = vadd.f32 %v3410, %v3438
    %3440 = vmatmul.bf16.gmra.mxu0 %v2347
    %v3441 = vpop.f32.mrf.mxu0
    %v3442 = vadd.f32 %v3413, %v3441
    %v3443 = vpop.f32.mrf.mxu0
    %v3444 = vadd.f32 %v3415, %v3443
    %3445 = vdwg.mxu0
    %3446 = vmatpush.bf16.msra.mxu0 %v2997
    %3447 = vmatpush.bf16.msra.mxu0 %v2993
    %3448 = vmatpush.bf16.msra.mxu0 %v2989
    %3449 = vmatpush.bf16.msra.mxu0 %v2985
    %3450 = vmatpush.bf16.msra.mxu0 %v2981
    %3451 = vmatpush.bf16.msra.mxu0 %v2977
    %3452 = vmatpush.bf16.msra.mxu0 %v2973
    %3453 = vmatpush.bf16.msra.mxu0 %v2969
    %3454 = vmatmul.bf16.gmra.mxu0 %v2336
    %v3455 = vpop.f32.mrf.mxu0
    %v3456 = vadd.f32 %v3427, %v3455
    %v3457 = vpop.f32.mrf.mxu0
    %v3458 = vadd.f32 %v3429, %v3457
    %3459 = vmatmul.bf16.gmra.mxu0 %v2340
    %v3460 = vpop.f32.mrf.mxu0
    %v3461 = vadd.f32 %v3432, %v3460
    %v3462 = vpop.f32.mrf.mxu0
    %v3463 = vadd.f32 %v3434, %v3462
    %3464 = vmatmul.bf16.gmra.mxu0 %v2344
    %v3465 = vpop.f32.mrf.mxu0
    %v3466 = vadd.f32 %v3437, %v3465
    %v3467 = vpop.f32.mrf.mxu0
    %v3468 = vadd.f32 %v3439, %v3467
    %3469 = vmatmul.bf16.gmra.mxu0 %v2348
    %v3470 = vpop.f32.mrf.mxu0
    %v3471 = vadd.f32 %v3442, %v3470
    %v3472 = vpop.f32.mrf.mxu0
    %v3473 = vadd.f32 %v3444, %v3472
    %3474 = vdwg.mxu0
    %3475 = vmatpush.bf16.msra.mxu0 %v2902
    %3476 = vmatpush.bf16.msra.mxu0 %v2898
    %3477 = vmatpush.bf16.msra.mxu0 %v2894
    %3478 = vmatpush.bf16.msra.mxu0 %v2890
    %3479 = vmatpush.bf16.msra.mxu0 %v2886
    %3480 = vmatpush.bf16.msra.mxu0 %v2882
    %3481 = vmatpush.bf16.msra.mxu0 %v2878
    %3482 = vmatpush.bf16.msra.mxu0 %v2874
    %3483 = vmatmul.bf16.gmra.mxu0 %v2333
    %v3484 = vpop.f32.mrf.mxu0
    %v3485 = vadd.f32 %v2482, %v3484
    %v3486 = vpop.f32.mrf.mxu0
    %v3487 = vadd.f32 %v2482, %v3486
    %3488 = vmatmul.bf16.gmra.mxu0 %v2337
    %v3489 = vpop.f32.mrf.mxu0
    %v3490 = vadd.f32 %v2482, %v3489
    %v3491 = vpop.f32.mrf.mxu0
    %v3492 = vadd.f32 %v2482, %v3491
    %3493 = vmatmul.bf16.gmra.mxu0 %v2341
    %v3494 = vpop.f32.mrf.mxu0
    %v3495 = vadd.f32 %v2482, %v3494
    %v3496 = vpop.f32.mrf.mxu0
    %v3497 = vadd.f32 %v2482, %v3496
    %3498 = vmatmul.bf16.gmra.mxu0 %v2345
    %v3499 = vpop.f32.mrf.mxu0
    %v3500 = vadd.f32 %v2482, %v3499
    %v3501 = vpop.f32.mrf.mxu0
    %v3502 = vadd.f32 %v2482, %v3501
    %3503 = vdwg.mxu0
    %3504 = vmatpush.bf16.msra.mxu0 %v2934
    %3505 = vmatpush.bf16.msra.mxu0 %v2930
    %3506 = vmatpush.bf16.msra.mxu0 %v2926
    %3507 = vmatpush.bf16.msra.mxu0 %v2922
    %3508 = vmatpush.bf16.msra.mxu0 %v2918
    %3509 = vmatpush.bf16.msra.mxu0 %v2914
    %3510 = vmatpush.bf16.msra.mxu0 %v2910
    %3511 = vmatpush.bf16.msra.mxu0 %v2906
    %3512 = vmatmul.bf16.gmra.mxu0 %v2334
    %v3513 = vpop.f32.mrf.mxu0
    %v3514 = vadd.f32 %v3485, %v3513
    %v3515 = vpop.f32.mrf.mxu0
    %v3516 = vadd.f32 %v3487, %v3515
    %3517 = vmatmul.bf16.gmra.mxu0 %v2338
    %v3518 = vpop.f32.mrf.mxu0
    %v3519 = vadd.f32 %v3490, %v3518
    %v3520 = vpop.f32.mrf.mxu0
    %v3521 = vadd.f32 %v3492, %v3520
    %3522 = vmatmul.bf16.gmra.mxu0 %v2342
    %v3523 = vpop.f32.mrf.mxu0
    %v3524 = vadd.f32 %v3495, %v3523
    %v3525 = vpop.f32.mrf.mxu0
    %v3526 = vadd.f32 %v3497, %v3525
    %3527 = vmatmul.bf16.gmra.mxu0 %v2346
    %v3528 = vpop.f32.mrf.mxu0
    %v3529 = vadd.f32 %v3500, %v3528
    %v3530 = vpop.f32.mrf.mxu0
    %v3531 = vadd.f32 %v3502, %v3530
    %3532 = vdwg.mxu0
    %3533 = vmatpush.bf16.msra.mxu0 %v2966
    %3534 = vmatpush.bf16.msra.mxu0 %v2962
    %3535 = vmatpush.bf16.msra.mxu0 %v2958
    %3536 = vmatpush.bf16.msra.mxu0 %v2954
    %3537 = vmatpush.bf16.msra.mxu0 %v2950
    %3538 = vmatpush.bf16.msra.mxu0 %v2946
    %3539 = vmatpush.bf16.msra.mxu0 %v2942
    %3540 = vmatpush.bf16.msra.mxu0 %v2938
    %3541 = vmatmul.bf16.gmra.mxu0 %v2335
    %v3542 = vpop.f32.mrf.mxu0
    %v3543 = vadd.f32 %v3514, %v3542
    %v3544 = vpop.f32.mrf.mxu0
    %v3545 = vadd.f32 %v3516, %v3544
    %3546 = vmatmul.bf16.gmra.mxu0 %v2339
    %v3547 = vpop.f32.mrf.mxu0
    %v3548 = vadd.f32 %v3519, %v3547
    %v3549 = vpop.f32.mrf.mxu0
    %v3550 = vadd.f32 %v3521, %v3549
    %3551 = vmatmul.bf16.gmra.mxu0 %v2343
    %v3552 = vpop.f32.mrf.mxu0
    %v3553 = vadd.f32 %v3524, %v3552
    %v3554 = vpop.f32.mrf.mxu0
    %v3555 = vadd.f32 %v3526, %v3554
    %3556 = vmatmul.bf16.gmra.mxu0 %v2347
    %v3557 = vpop.f32.mrf.mxu0
    %v3558 = vadd.f32 %v3529, %v3557
    %v3559 = vpop.f32.mrf.mxu0
    %v3560 = vadd.f32 %v3531, %v3559
    %3561 = vdwg.mxu0
    %3562 = vmatpush.bf16.msra.mxu0 %v2998
    %3563 = vmatpush.bf16.msra.mxu0 %v2994
    %3564 = vmatpush.bf16.msra.mxu0 %v2990
    %3565 = vmatpush.bf16.msra.mxu0 %v2986
    %3566 = vmatpush.bf16.msra.mxu0 %v2982
    %3567 = vmatpush.bf16.msra.mxu0 %v2978
    %3568 = vmatpush.bf16.msra.mxu0 %v2974
    %3569 = vmatpush.bf16.msra.mxu0 %v2970
    %3570 = vmatmul.bf16.gmra.mxu0 %v2336
    %v3571 = vpop.f32.mrf.mxu0
    %v3572 = vadd.f32 %v3543, %v3571
    %v3573 = vpop.f32.mrf.mxu0
    %v3574 = vadd.f32 %v3545, %v3573
    %3575 = vmatmul.bf16.gmra.mxu0 %v2340
    %v3576 = vpop.f32.mrf.mxu0
    %v3577 = vadd.f32 %v3548, %v3576
    %v3578 = vpop.f32.mrf.mxu0
    %v3579 = vadd.f32 %v3550, %v3578
    %3580 = vmatmul.bf16.gmra.mxu0 %v2344
    %v3581 = vpop.f32.mrf.mxu0
    %v3582 = vadd.f32 %v3553, %v3581
    %v3583 = vpop.f32.mrf.mxu0
    %v3584 = vadd.f32 %v3555, %v3583
    %3585 = vmatmul.bf16.gmra.mxu0 %v2348
    %v3586 = vpop.f32.mrf.mxu0
    %v3587 = vadd.f32 %v3558, %v3586
    %v3588 = vpop.f32.mrf.mxu0
    %v3589 = vadd.f32 %v3560, %v3588
    %3590 = vdwg.mxu0
    %v3591 = vmax.f32 %v3224, 0.0
    %v3592 = vmax.f32 %v3340, 0.0
    %v3593 = vmax.f32 %v3456, 0.0
    %v3594 = vmax.f32 %v3572, 0.0
    %v3595 = vmax.f32 %v3226, 0.0
    %v3596 = vmax.f32 %v3342, 0.0
    %v3597 = vmax.f32 %v3458, 0.0
    %v3598 = vmax.f32 %v3574, 0.0
    %v3599 = vmax.f32 %v3229, 0.0
    %v3600 = vmax.f32 %v3345, 0.0
    %v3601 = vmax.f32 %v3461, 0.0
    %v3602 = vmax.f32 %v3577, 0.0
    %v3603 = vmax.f32 %v3231, 0.0
    %v3604 = vmax.f32 %v3347, 0.0
    %v3605 = vmax.f32 %v3463, 0.0
    %v3606 = vmax.f32 %v3579, 0.0
    %v3607 = vmax.f32 %v3234, 0.0
    %v3608 = vmax.f32 %v3350, 0.0
    %v3609 = vmax.f32 %v3466, 0.0
    %v3610 = vmax.f32 %v3582, 0.0
    %v3611 = vmax.f32 %v3236, 0.0
    %v3612 = vmax.f32 %v3352, 0.0
    %v3613 = vmax.f32 %v3468, 0.0
    %v3614 = vmax.f32 %v3584, 0.0
    %v3615 = vmax.f32 %v3239, 0.0
    %v3616 = vmax.f32 %v3355, 0.0
    %v3617 = vmax.f32 %v3471, 0.0
    %v3618 = vmax.f32 %v3587, 0.0
    %v3619 = vmax.f32 %v3241, 0.0
    %v3620 = vmax.f32 %v3357, 0.0
    %v3621 = vmax.f32 %v3473, 0.0
    %v3622 = vmax.f32 %v3589, 0.0
    %v3623 = vpack.c.bf16 %v3595, %v3591
    %v3624 = vpack.c.bf16 %v3596, %v3592
    %v3625 = vpack.c.bf16 %v3597, %v3593
    %v3626 = vpack.c.bf16 %v3598, %v3594
    %v3627 = vpack.c.bf16 %v3603, %v3599
    %v3628 = vpack.c.bf16 %v3604, %v3600
    %v3629 = vpack.c.bf16 %v3605, %v3601
    %v3630 = vpack.c.bf16 %v3606, %v3602
    %v3631 = vpack.c.bf16 %v3611, %v3607
    %v3632 = vpack.c.bf16 %v3612, %v3608
    %v3633 = vpack.c.bf16 %v3613, %v3609
    %v3634 = vpack.c.bf16 %v3614, %v3610
    %v3635 = vpack.c.bf16 %v3619, %v3615
    %v3636 = vpack.c.bf16 %v3620, %v3616
    %v3637 = vpack.c.bf16 %v3621, %v3617
    %v3638 = vpack.c.bf16 %v3622, %v3618
    %v3639 = vld [vmem:[#allocation11] sm:$0xf]
    %v3640 = vld [vmem:[#allocation11 + $0x4] sm:$0xf]
    %v3641 = vld [vmem:[#allocation11 + $0x8] sm:$0xf]
    %v3642 = vld [vmem:[#allocation11 + $0xc] sm:$0xf]
    %v3643 = vld [vmem:[#allocation11 + $0x10] sm:$0xf]
    %v3644 = vld [vmem:[#allocation11 + $0x14] sm:$0xf]
    %v3645 = vld [vmem:[#allocation11 + $0x18] sm:$0xf]
    %v3646 = vld [vmem:[#allocation11 + $0x1c] sm:$0xf]
    %v3647 = vld [vmem:[#allocation11 + $0x20] sm:$0xf]
    %v3648 = vld [vmem:[#allocation11 + $0x24] sm:$0xf]
    %v3649 = vld [vmem:[#allocation11 + $0x28] sm:$0xf]
    %v3650 = vld [vmem:[#allocation11 + $0x2c] sm:$0xf]
    %v3651 = vld [vmem:[#allocation11 + $0x30] sm:$0xf]
    %v3652 = vld [vmem:[#allocation11 + $0x34] sm:$0xf]
    %v3653 = vld [vmem:[#allocation11 + $0x38] sm:$0xf]
    %v3654 = vld [vmem:[#allocation11 + $0x3c] sm:$0xf]
    %v3655 = vld [vmem:[#allocation11 + $0x40] sm:$0xf]
    %v3656 = vld [vmem:[#allocation11 + $0x44] sm:$0xf]
    %v3657 = vld [vmem:[#allocation11 + $0x48] sm:$0xf]
    %v3658 = vld [vmem:[#allocation11 + $0x4c] sm:$0xf]
    %v3659 = vld [vmem:[#allocation11 + $0x50] sm:$0xf]
    %v3660 = vld [vmem:[#allocation11 + $0x54] sm:$0xf]
    %v3661 = vld [vmem:[#allocation11 + $0x58] sm:$0xf]
    %v3662 = vld [vmem:[#allocation11 + $0x5c] sm:$0xf]
    %v3663 = vld [vmem:[#allocation11 + $0x60] sm:$0xf]
    %v3664 = vld [vmem:[#allocation11 + $0x64] sm:$0xf]
    %v3665 = vld [vmem:[#allocation11 + $0x68] sm:$0xf]
    %v3666 = vld [vmem:[#allocation11 + $0x6c] sm:$0xf]
    %v3667 = vld [vmem:[#allocation11 + $0x70] sm:$0xf]
    %v3668 = vld [vmem:[#allocation11 + $0x74] sm:$0xf]
    %v3669 = vld [vmem:[#allocation11 + $0x78] sm:$0xf]
    %v3670 = vld [vmem:[#allocation11 + $0x7c] sm:$0xf]
    %v3671 = vld [vmem:[#allocation11 + $0x80] sm:$0xf]
    %v3672 = vld [vmem:[#allocation11 + $0x84] sm:$0xf]
    %v3673 = vld [vmem:[#allocation11 + $0x88] sm:$0xf]
    %v3674 = vld [vmem:[#allocation11 + $0x8c] sm:$0xf]
    %v3675 = vld [vmem:[#allocation11 + $0x90] sm:$0xf]
    %v3676 = vld [vmem:[#allocation11 + $0x94] sm:$0xf]
    %v3677 = vld [vmem:[#allocation11 + $0x98] sm:$0xf]
    %v3678 = vld [vmem:[#allocation11 + $0x9c] sm:$0xf]
    %v3679 = vld [vmem:[#allocation11 + $0xa0] sm:$0xf]
    %v3680 = vld [vmem:[#allocation11 + $0xa4] sm:$0xf]
    %v3681 = vld [vmem:[#allocation11 + $0xa8] sm:$0xf]
    %v3682 = vld [vmem:[#allocation11 + $0xac] sm:$0xf]
    %v3683 = vld [vmem:[#allocation11 + $0xb0] sm:$0xf]
    %v3684 = vld [vmem:[#allocation11 + $0xb4] sm:$0xf]
    %v3685 = vld [vmem:[#allocation11 + $0xb8] sm:$0xf]
    %v3686 = vld [vmem:[#allocation11 + $0xbc] sm:$0xf]
    %v3687 = vld [vmem:[#allocation11 + $0xc0] sm:$0xf]
    %v3688 = vld [vmem:[#allocation11 + $0xc4] sm:$0xf]
    %v3689 = vld [vmem:[#allocation11 + $0xc8] sm:$0xf]
    %v3690 = vld [vmem:[#allocation11 + $0xcc] sm:$0xf]
    %v3691 = vld [vmem:[#allocation11 + $0xd0] sm:$0xf]
    %v3692 = vld [vmem:[#allocation11 + $0xd4] sm:$0xf]
    %v3693 = vld [vmem:[#allocation11 + $0xd8] sm:$0xf]
    %v3694 = vld [vmem:[#allocation11 + $0xdc] sm:$0xf]
    %v3695 = vld [vmem:[#allocation11 + $0xe0] sm:$0xf]
    %v3696 = vld [vmem:[#allocation11 + $0xe4] sm:$0xf]
    %v3697 = vld [vmem:[#allocation11 + $0xe8] sm:$0xf]
    %v3698 = vld [vmem:[#allocation11 + $0xec] sm:$0xf]
    %v3699 = vld [vmem:[#allocation11 + $0xf0] sm:$0xf]
    %v3700 = vld [vmem:[#allocation11 + $0xf4] sm:$0xf]
    %v3701 = vld [vmem:[#allocation11 + $0xf8] sm:$0xf]
    %v3702 = vld [vmem:[#allocation11 + $0xfc] sm:$0xf]
    %v3703 = vld [vmem:[%s6] sm:$0x1]
    %v3705 = vperm.slane %v3703, 0
    %v3771 = vunpack.c.l.b16 %v3639
    %v3772 = vunpack.c.l.b16 %v3640
    %v3773 = vunpack.c.l.b16 %v3641
    %v3774 = vunpack.c.l.b16 %v3642
    %v3775 = vunpack.c.l.b16 %v3643
    %v3776 = vunpack.c.l.b16 %v3644
    %v3777 = vunpack.c.l.b16 %v3645
    %v3778 = vunpack.c.l.b16 %v3646
    %v3779 = vunpack.c.l.b16 %v3647
    %v3780 = vunpack.c.l.b16 %v3648
    %v3781 = vunpack.c.l.b16 %v3649
    %v3782 = vunpack.c.l.b16 %v3650
    %v3783 = vunpack.c.l.b16 %v3651
    %v3784 = vunpack.c.l.b16 %v3652
    %v3785 = vunpack.c.l.b16 %v3653
    %v3786 = vunpack.c.l.b16 %v3654
    %v3787 = vunpack.c.l.b16 %v3655
    %v3788 = vunpack.c.l.b16 %v3656
    %v3789 = vunpack.c.l.b16 %v3657
    %v3790 = vunpack.c.l.b16 %v3658
    %v3791 = vunpack.c.l.b16 %v3659
    %v3792 = vunpack.c.l.b16 %v3660
    %v3793 = vunpack.c.l.b16 %v3661
    %v3794 = vunpack.c.l.b16 %v3662
    %v3795 = vunpack.c.l.b16 %v3663
    %v3796 = vunpack.c.l.b16 %v3664
    %v3797 = vunpack.c.l.b16 %v3665
    %v3798 = vunpack.c.l.b16 %v3666
    %v3799 = vunpack.c.l.b16 %v3667
    %v3800 = vunpack.c.l.b16 %v3668
    %v3801 = vunpack.c.l.b16 %v3669
    %v3802 = vunpack.c.l.b16 %v3670
    %v3803 = vunpack.c.l.b16 %v3671
    %v3804 = vunpack.c.l.b16 %v3672
    %v3805 = vunpack.c.l.b16 %v3673
    %v3806 = vunpack.c.l.b16 %v3674
    %v3807 = vunpack.c.l.b16 %v3675
    %v3808 = vunpack.c.l.b16 %v3676
    %v3809 = vunpack.c.l.b16 %v3677
    %v3810 = vunpack.c.l.b16 %v3678
    %v3811 = vunpack.c.l.b16 %v3679
    %v3812 = vunpack.c.l.b16 %v3680
    %v3813 = vunpack.c.l.b16 %v3681
    %v3814 = vunpack.c.l.b16 %v3682
    %v3815 = vunpack.c.l.b16 %v3683
    %v3816 = vunpack.c.l.b16 %v3684
    %v3817 = vunpack.c.l.b16 %v3685
    %v3818 = vunpack.c.l.b16 %v3686
    %v3819 = vunpack.c.l.b16 %v3687
    %v3820 = vunpack.c.l.b16 %v3688
    %v3821 = vunpack.c.l.b16 %v3689
    %v3822 = vunpack.c.l.b16 %v3690
    %v3823 = vunpack.c.l.b16 %v3691
    %v3824 = vunpack.c.l.b16 %v3692
    %v3825 = vunpack.c.l.b16 %v3693
    %v3826 = vunpack.c.l.b16 %v3694
    %v3827 = vunpack.c.l.b16 %v3695
    %v3828 = vunpack.c.l.b16 %v3696
    %v3829 = vunpack.c.l.b16 %v3697
    %v3830 = vunpack.c.l.b16 %v3698
    %v3831 = vunpack.c.l.b16 %v3699
    %v3832 = vunpack.c.l.b16 %v3700
    %v3833 = vunpack.c.l.b16 %v3701
    %v3834 = vunpack.c.l.b16 %v3702
    %v3835 = vpack.c.b16 %v3772, %v3771
    %v3836 = vpack.c.b16 %v3774, %v3773
    %v3837 = vpack.c.b16 %v3776, %v3775
    %v3838 = vpack.c.b16 %v3778, %v3777
    %v3839 = vpack.c.b16 %v3780, %v3779
    %v3840 = vpack.c.b16 %v3782, %v3781
    %v3841 = vpack.c.b16 %v3784, %v3783
    %v3842 = vpack.c.b16 %v3786, %v3785
    %v3843 = vpack.c.b16 %v3788, %v3787
    %v3844 = vpack.c.b16 %v3790, %v3789
    %v3845 = vpack.c.b16 %v3792, %v3791
    %v3846 = vpack.c.b16 %v3794, %v3793
    %v3847 = vpack.c.b16 %v3796, %v3795
    %v3848 = vpack.c.b16 %v3798, %v3797
    %v3849 = vpack.c.b16 %v3800, %v3799
    %v3850 = vpack.c.b16 %v3802, %v3801
    %v3851 = vpack.c.b16 %v3804, %v3803
    %v3852 = vpack.c.b16 %v3806, %v3805
    %v3853 = vpack.c.b16 %v3808, %v3807
    %v3854 = vpack.c.b16 %v3810, %v3809
    %v3855 = vpack.c.b16 %v3812, %v3811
    %v3856 = vpack.c.b16 %v3814, %v3813
    %v3857 = vpack.c.b16 %v3816, %v3815
    %v3858 = vpack.c.b16 %v3818, %v3817
    %v3859 = vpack.c.b16 %v3820, %v3819
    %v3860 = vpack.c.b16 %v3822, %v3821
    %v3861 = vpack.c.b16 %v3824, %v3823
    %v3862 = vpack.c.b16 %v3826, %v3825
    %v3863 = vpack.c.b16 %v3828, %v3827
    %v3864 = vpack.c.b16 %v3830, %v3829
    %v3865 = vpack.c.b16 %v3832, %v3831
    %v3866 = vpack.c.b16 %v3834, %v3833
    %3899 = vmatpush.bf16.msra.mxu0 %v3842
    %3900 = vmatpush.bf16.msra.mxu0 %v3841
    %3901 = vmatpush.bf16.msra.mxu0 %v3840
    %3902 = vmatpush.bf16.msra.mxu0 %v3839
    %3903 = vmatpush.bf16.msra.mxu0 %v3838
    %3904 = vmatpush.bf16.msra.mxu0 %v3837
    %3905 = vmatpush.bf16.msra.mxu0 %v3836
    %3906 = vmatpush.bf16.msra.mxu0 %v3835
    %3907 = vmatmul.bf16.gmra.mxu0 %v3623
    %v3908 = vpop.f32.mrf.mxu0
    %v3909 = vadd.f32 %v3705, %v3908
    %v3910 = vpop.f32.mrf.mxu0
    %v3911 = vadd.f32 %v3705, %v3910
    %3912 = vmatmul.bf16.gmra.mxu0 %v3627
    %v3913 = vpop.f32.mrf.mxu0
    %v3914 = vadd.f32 %v3705, %v3913
    %v3915 = vpop.f32.mrf.mxu0
    %v3916 = vadd.f32 %v3705, %v3915
    %3917 = vmatmul.bf16.gmra.mxu0 %v3631
    %v3918 = vpop.f32.mrf.mxu0
    %v3919 = vadd.f32 %v3705, %v3918
    %v3920 = vpop.f32.mrf.mxu0
    %v3921 = vadd.f32 %v3705, %v3920
    %3922 = vmatmul.bf16.gmra.mxu0 %v3635
    %v3923 = vpop.f32.mrf.mxu0
    %v3924 = vadd.f32 %v3705, %v3923
    %v3925 = vpop.f32.mrf.mxu0
    %v3926 = vadd.f32 %v3705, %v3925
    %3927 = vdwg.mxu0
    %3928 = vmatpush.bf16.msra.mxu0 %v3850
    %3929 = vmatpush.bf16.msra.mxu0 %v3849
    %3930 = vmatpush.bf16.msra.mxu0 %v3848
    %3931 = vmatpush.bf16.msra.mxu0 %v3847
    %3932 = vmatpush.bf16.msra.mxu0 %v3846
    %3933 = vmatpush.bf16.msra.mxu0 %v3845
    %3934 = vmatpush.bf16.msra.mxu0 %v3844
    %3935 = vmatpush.bf16.msra.mxu0 %v3843
    %3936 = vmatmul.bf16.gmra.mxu0 %v3624
    %v3937 = vpop.f32.mrf.mxu0
    %v3938 = vadd.f32 %v3909, %v3937
    %v3939 = vpop.f32.mrf.mxu0
    %v3940 = vadd.f32 %v3911, %v3939
    %3941 = vmatmul.bf16.gmra.mxu0 %v3628
    %v3942 = vpop.f32.mrf.mxu0
    %v3943 = vadd.f32 %v3914, %v3942
    %v3944 = vpop.f32.mrf.mxu0
    %v3945 = vadd.f32 %v3916, %v3944
    %3946 = vmatmul.bf16.gmra.mxu0 %v3632
    %v3947 = vpop.f32.mrf.mxu0
    %v3948 = vadd.f32 %v3919, %v3947
    %v3949 = vpop.f32.mrf.mxu0
    %v3950 = vadd.f32 %v3921, %v3949
    %3951 = vmatmul.bf16.gmra.mxu0 %v3636
    %v3952 = vpop.f32.mrf.mxu0
    %v3953 = vadd.f32 %v3924, %v3952
    %v3954 = vpop.f32.mrf.mxu0
    %v3955 = vadd.f32 %v3926, %v3954
    %3956 = vdwg.mxu0
    %3957 = vmatpush.bf16.msra.mxu0 %v3858
    %3958 = vmatpush.bf16.msra.mxu0 %v3857
    %3959 = vmatpush.bf16.msra.mxu0 %v3856
    %3960 = vmatpush.bf16.msra.mxu0 %v3855
    %3961 = vmatpush.bf16.msra.mxu0 %v3854
    %3962 = vmatpush.bf16.msra.mxu0 %v3853
    %3963 = vmatpush.bf16.msra.mxu0 %v3852
    %3964 = vmatpush.bf16.msra.mxu0 %v3851
    %3965 = vmatmul.bf16.gmra.mxu0 %v3625
    %v3966 = vpop.f32.mrf.mxu0
    %v3967 = vadd.f32 %v3938, %v3966
    %v3968 = vpop.f32.mrf.mxu0
    %v3969 = vadd.f32 %v3940, %v3968
    %3970 = vmatmul.bf16.gmra.mxu0 %v3629
    %v3971 = vpop.f32.mrf.mxu0
    %v3972 = vadd.f32 %v3943, %v3971
    %v3973 = vpop.f32.mrf.mxu0
    %v3974 = vadd.f32 %v3945, %v3973
    %3975 = vmatmul.bf16.gmra.mxu0 %v3633
    %v3976 = vpop.f32.mrf.mxu0
    %v3977 = vadd.f32 %v3948, %v3976
    %v3978 = vpop.f32.mrf.mxu0
    %v3979 = vadd.f32 %v3950, %v3978
    %3980 = vmatmul.bf16.gmra.mxu0 %v3637
    %v3981 = vpop.f32.mrf.mxu0
    %v3982 = vadd.f32 %v3953, %v3981
    %v3983 = vpop.f32.mrf.mxu0
    %v3984 = vadd.f32 %v3955, %v3983
    %3985 = vdwg.mxu0
    %3986 = vmatpush.bf16.msra.mxu0 %v3866
    %3987 = vmatpush.bf16.msra.mxu0 %v3865
    %3988 = vmatpush.bf16.msra.mxu0 %v3864
    %3989 = vmatpush.bf16.msra.mxu0 %v3863
    %3990 = vmatpush.bf16.msra.mxu0 %v3862
    %3991 = vmatpush.bf16.msra.mxu0 %v3861
    %3992 = vmatpush.bf16.msra.mxu0 %v3860
    %3993 = vmatpush.bf16.msra.mxu0 %v3859
    %3994 = vmatmul.bf16.gmra.mxu0 %v3626
    %v3995 = vpop.f32.mrf.mxu0
    %v3996 = vadd.f32 %v3967, %v3995
    %v3997 = vpop.f32.mrf.mxu0
    %v3998 = vadd.f32 %v3969, %v3997
    %3999 = vmatmul.bf16.gmra.mxu0 %v3630
    %v4000 = vpop.f32.mrf.mxu0
    %v4001 = vadd.f32 %v3972, %v4000
    %v4002 = vpop.f32.mrf.mxu0
    %v4003 = vadd.f32 %v3974, %v4002
    %4004 = vmatmul.bf16.gmra.mxu0 %v3634
    %v4005 = vpop.f32.mrf.mxu0
    %v4006 = vadd.f32 %v3977, %v4005
    %v4007 = vpop.f32.mrf.mxu0
    %v4008 = vadd.f32 %v3979, %v4007
    %4009 = vmatmul.bf16.gmra.mxu0 %v3638
    %v4010 = vpop.f32.mrf.mxu0
    %v4011 = vadd.f32 %v3982, %v4010
    %v4012 = vpop.f32.mrf.mxu0
    %v4013 = vadd.f32 %v3984, %v4012
    %4014 = vdwg.mxu0
    %4015 = vmax.xlane.f32.xlu0 %v3996
    %v4016 = vpop.xlane.xlu0 %4015
    %4017 = vmax.xlane.f32.xlu0 %v3998
    %v4018 = vpop.xlane.xlu0 %4017
    %4019 = vmax.xlane.f32.xlu0 %v4001
    %v4020 = vpop.xlane.xlu0 %4019
    %4021 = vmax.xlane.f32.xlu0 %v4003
    %v4022 = vpop.xlane.xlu0 %4021
    %4023 = vmax.xlane.f32.xlu0 %v4006
    %v4024 = vpop.xlane.xlu0 %4023
    %4025 = vmax.xlane.f32.xlu0 %v4008
    %v4026 = vpop.xlane.xlu0 %4025
    %4027 = vmax.xlane.f32.xlu0 %v4011
    %v4028 = vpop.xlane.xlu0 %4027
    %4029 = vmax.xlane.f32.xlu0 %v4013
    %v4030 = vpop.xlane.xlu0 %4029
    %v4031 = vsub.f32 %v3996, %v4016
    %v4032 = vsub.f32 %v3998, %v4018
    %v4033 = vsub.f32 %v4001, %v4020
    %v4034 = vsub.f32 %v4003, %v4022
    %v4035 = vsub.f32 %v4006, %v4024
    %v4036 = vsub.f32 %v4008, %v4026
    %v4037 = vsub.f32 %v4011, %v4028
    %v4038 = vsub.f32 %v4013, %v4030
    %v4039 = vmul.f32 %v4031, 1.442695
    %v4040 = vpow.pop %v4039
    %v4041 = vmul.f32 %v4032, 1.442695
    %v4042 = vpow.pop %v4041
    %v4043 = vmul.f32 %v4033, 1.442695
    %v4044 = vpow.pop %v4043
    %v4045 = vmul.f32 %v4034, 1.442695
    %v4046 = vpow.pop %v4045
    %v4047 = vmul.f32 %v4035, 1.442695
    %v4048 = vpow.pop %v4047
    %v4049 = vmul.f32 %v4036, 1.442695
    %v4050 = vpow.pop %v4049
    %v4051 = vmul.f32 %v4037, 1.442695
    %v4052 = vpow.pop %v4051
    %v4053 = vmul.f32 %v4038, 1.442695
    %v4054 = vpow.pop %v4053
    %4055 = vadd.xlane.f32.xlu0 %v4040
    %v4056 = vpop.xlane.xlu0 %4055
    %4057 = vadd.xlane.f32.xlu0 %v4042
    %v4058 = vpop.xlane.xlu0 %4057
    %4059 = vadd.xlane.f32.xlu0 %v4044
    %v4060 = vpop.xlane.xlu0 %4059
    %4061 = vadd.xlane.f32.xlu0 %v4046
    %v4062 = vpop.xlane.xlu0 %4061
    %4063 = vadd.xlane.f32.xlu0 %v4048
    %v4064 = vpop.xlane.xlu0 %4063
    %4065 = vadd.xlane.f32.xlu0 %v4050
    %v4066 = vpop.xlane.xlu0 %4065
    %4067 = vadd.xlane.f32.xlu0 %v4052
    %v4068 = vpop.xlane.xlu0 %4067
    %4069 = vadd.xlane.f32.xlu0 %v4054
    %v4070 = vpop.xlane.xlu0 %4069
    %v4071 = vrcp.pop %v4056
    %v4072 = vrcp.pop %v4058
    %v4073 = vrcp.pop %v4060
    %v4074 = vrcp.pop %v4062
    %v4075 = vrcp.pop %v4064
    %v4076 = vrcp.pop %v4066
    %v4077 = vrcp.pop %v4068
    %v4078 = vrcp.pop %v4070
    %v4079 = vmul.f32 %v4040, %v4071
    %v4080 = vmul.f32 %v4042, %v4072
    %v4081 = vmul.f32 %v4044, %v4073
    %v4082 = vmul.f32 %v4046, %v4074
    %v4083 = vmul.f32 %v4048, %v4075
    %v4084 = vmul.f32 %v4050, %v4076
    %v4085 = vmul.f32 %v4052, %v4077
    %v4086 = vmul.f32 %v4054, %v4078
    %v4087 = vpack.c.bf16 %v4079, %v4079
    %v4088 = vpack.c.bf16 %v4080, %v4080
    %v4089 = vpack.c.bf16 %v4081, %v4081
    %v4090 = vpack.c.bf16 %v4082, %v4082
    %v4091 = vpack.c.bf16 %v4083, %v4083
    %v4092 = vpack.c.bf16 %v4084, %v4084
    %v4093 = vpack.c.bf16 %v4085, %v4085
    %v4094 = vpack.c.bf16 %v4086, %v4086
    %4095 = vst [vmem:[#allocation13] sm:$0xf] %v4087
    %4096 = vst [vmem:[#allocation13 + $0x4] sm:$0xf] %v4088
    %4097 = vst [vmem:[#allocation13 + $0x8] sm:$0xf] %v4089
    %4098 = vst [vmem:[#allocation13 + $0xc] sm:$0xf] %v4090
    %4099 = vst [vmem:[#allocation13 + $0x10] sm:$0xf] %v4091
    %4100 = vst [vmem:[#allocation13 + $0x14] sm:$0xf] %v4092
    %4101 = vst [vmem:[#allocation13 + $0x18] sm:$0xf] %v4093
    %4102 = vst [vmem:[#allocation13 + $0x1c] sm:$0xf] %v4094
    // Predicated region
    $region54: #{tpu_custom_call.1} parent=1 // pred_check
      _
    $region55: #{tpu_custom_call.1} parent=1 // pred_check_branch
      %4104 = sbr.rel (0) target = $region57
    $region56: #{tpu_custom_call.1} parent=1 // pred_region
      %4106 = vsyncadd [#allocation4], 0
      %s4107 = sshll.u32 [#allocation13], 4
      %s4108 = int_to_ptr.vmem [resolvable:$true] %s4107
      %s4109 = sshll.u32 %s7, 4
      %s4110 = int_to_ptr.hbm [resolvable:$true] %s4109
      %4115 = dma.vmem_to_hbm [thread:$0]  %s4108, 512, %s4110, [#allocation4], 64, 64, 4
    $region57: #{tpu_custom_call.1} parent=1 // pred_fallthru
      _
    // Predicated region
    $region58: #{tpu_custom_call.1} parent=1 // pred_check
      _
    $region59: #{tpu_custom_call.1} parent=1 // pred_check_branch
      %4117 = sbr.rel (0) target = $region61
    $region60: #{tpu_custom_call.1} parent=1 // pred_region
      %4119 = dma.done [#allocation4], 512
    $region61: #{tpu_custom_call.1} parent=1 // pred_fallthru
      _
    %4120 = vsyncpa [#allocation3], 1
    %4121 = vsyncpa [#allocation6], 1
    %4122 = vsyncpa [#allocation9], 1
    %4123 = vsyncpa [#allocation12], 1
    %4124 = vsyncpa [#allocation4], 1

</llo_original>
